<compile_context>
chip_gen: v7x
topology: tpu7x:2x2x1
jax: 0.10.0
libtpu: 0.0.40
codegen_flags: <defaults>
</compile_context>

<pallas_src>
import functools
import math

import jax
import jax.numpy as jnp
from jax.experimental import pallas as pl
from jax.experimental.pallas import tpu as pltpu


# ----------------------------- tiny-BERT configuration ---------------------------------
VOCAB_SIZE = 512
HIDDEN = 128                 # lane-dense: multiple of 128
NUM_HEADS = 2
HEAD_DIM = HIDDEN // NUM_HEADS
HEAD_PAD = 128               # each head's q/k/v occupies a full 128-lane slot (zero padded)
INTERMEDIATE = 512
NUM_LAYERS = 2
MAX_POS = 16
TYPE_VOCAB = 2
LN_EPS = 1e-12


# ----------------------------- shared math helpers (kernel + reference) -----------------
def _layernorm(x, g, b):
    mu = jnp.mean(x, axis=-1, keepdims=True)
    var = jnp.mean(jnp.square(x - mu), axis=-1, keepdims=True)
    return (x - mu) * jax.lax.rsqrt(var + LN_EPS) * g + b


def _gelu(x):
    # tanh-approx GELU written with explicit muls (EUP tanh; no integer_pow).
    c = math.sqrt(2.0 / math.pi)
    return 0.5 * x * (1.0 + jnp.tanh(c * (x + 0.044715 * x * x * x)))


def _bf16(x):
    return x.astype(jnp.bfloat16)


# ----------------------------- fully fused BERT backbone kernel -------------------------
def _bert_fused_kernel(emb_ref, bias_ref, emb_g_ref, emb_b_ref,
                       wqkv_ref, bqkv_ref, wo_ref, bo_ref, ag_ref, ab_ref,
                       w1_ref, b1_ref, w2_ref, b2_ref, fg_ref, fb_ref,
                       pw_ref, pb_ref,
                       hidden_ref, pooled_ref,
                       *, num_layers, num_heads, head_pad, head_dim):
    """Embedding-LN -> N x (attention+LN, FFN+LN) -> pooler, all in VMEM."""
    B, T, H = emb_ref.shape
    M = B * T
    P = head_pad
    scale = 1.0 / math.sqrt(head_dim)

    # Embedding LayerNorm; flatten batch*seq so every matmul has M = B*T rows.
    x = _layernorm(emb_ref[...].reshape(M, H), emb_g_ref[...], emb_b_ref[...])   # (M, H) f32

    # Block-diagonal additive attention bias over all (query, key) row pairs:
    # cross-sequence entries and padded-key entries are -1e9.
    attn_bias = bias_ref[...]                                                     # (M, M) f32

    for l in range(num_layers):                      # static unroll over layers
        # ---------------- attention block: QKV -> MHA -> out-proj -> residual -> LN -----
        wqkv = wqkv_ref[l]                           # (H, 3*nh*P) bf16, VMEM resident
        qkv = jnp.dot(_bf16(x), wqkv, preferred_element_type=jnp.float32) + bqkv_ref[l]
        wo_l = wo_ref[l]                             # (nh*P, H) bf16

        attn = None
        for h in range(num_heads):                   # static unroll, 128-aligned slices
            q = qkv[:, h * P:(h + 1) * P]
            k = qkv[:, (num_heads + h) * P:(num_heads + h + 1) * P]
            v = qkv[:, (2 * num_heads + h) * P:(2 * num_heads + h + 1) * P]

            # scores over all (B*T) x (B*T) rows; block-diag mask keeps sequences separate.
            s = jax.lax.dot_general(_bf16(q), _bf16(k), (((1,), (1,)), ((), ())),
                                    preferred_element_type=jnp.float32) * scale
            s = s + attn_bias
            s = s - jnp.max(s, axis=-1, keepdims=True)
            p = jnp.exp(s)
            p = p * pl.reciprocal(jnp.sum(p, axis=-1, keepdims=True), approx=True)

            ctx = jnp.dot(_bf16(p), _bf16(v), preferred_element_type=jnp.float32)   # (M, P)
            proj = jnp.dot(_bf16(ctx), wo_l[h * P:(h + 1) * P, :],
                           preferred_element_type=jnp.float32)                      # (M, H)
            attn = proj if attn is None else attn + proj

        x = _layernorm(x + attn + bo_ref[l], ag_ref[l], ab_ref[l])

        # ---------------- FFN block: dense -> GELU -> dense -> residual -> LN -----------
        h1 = _gelu(jnp.dot(_bf16(x), w1_ref[l],
                           preferred_element_type=jnp.float32) + b1_ref[l])
        x = _layernorm(
            x + jnp.dot(_bf16(h1), w2_ref[l], preferred_element_type=jnp.float32) + b2_ref[l],
            fg_ref[l], fb_ref[l])

    # ---------------- outputs: last hidden state + pooler (tanh(dense(CLS))) ------------
    x3 = x.reshape(B, T, H)
    hidden_ref[...] = x3
    cls = x3[:, 0, :]                                                              # (B, H)
    pooled_ref[...] = jnp.tanh(
        jnp.dot(_bf16(cls), pw_ref[...], preferred_element_type=jnp.float32) + pb_ref[...])


def _const_spec(shape):
    ndim = len(shape)
    return pl.BlockSpec(shape, lambda i, _n=ndim: (0,) * _n)


def bert_fused_pallas(emb, attn_bias, kp):
    """One pallas_call for the whole backbone; all weights VMEM-resident."""
    B, T, H = emb.shape
    M = B * T
    L, _, QKVP = kp['wqkvp'].shape
    NHP = kp['wop'].shape[1]
    I = kp['w1'].shape[2]

    kernel = functools.partial(_bert_fused_kernel,
                               num_layers=L, num_heads=NUM_HEADS,
                               head_pad=HEAD_PAD, head_dim=HEAD_DIM)

    return pl.pallas_call(
        kernel,
        out_shape=(jax.ShapeDtypeStruct((B, T, H), jnp.float32),
                   jax.ShapeDtypeStruct((B, H), jnp.float32)),
        grid_spec=pltpu.PrefetchScalarGridSpec(
            num_scalar_prefetch=0,
            # Single fused launch: whole batch in one block maximizes matmul M.
            # TODO(synk): on v7x (2 TCs) split the batch axis into 2 "parallel" blocks.
            grid=(1,),
            in_specs=[
                _const_spec((B, T, H)),          # embeddings
                _const_spec((M, M)),             # block-diagonal additive attention bias
                _const_spec((1, H)), _const_spec((1, H)),        # emb LN gamma/beta
                _const_spec((L, H, QKVP)),       # Wqkv (padded heads, bf16)
                _const_spec((L, 1, QKVP)),       # bqkv
                _const_spec((L, NHP, H)),        # Wo   (padded heads, bf16)
                _const_spec((L, 1, H)),          # bo
                _const_spec((L, 1, H)), _const_spec((L, 1, H)),  # attn LN gamma/beta
                _const_spec((L, H, I)),          # W1 (bf16)
                _const_spec((L, 1, I)),          # b1
                _const_spec((L, I, H)),          # W2 (bf16)
                _const_spec((L, 1, H)),          # b2
                _const_spec((L, 1, H)), _const_spec((L, 1, H)),  # ffn LN gamma/beta
                _const_spec((H, H)),             # pooler W (bf16)
                _const_spec((1, H)),             # pooler b
            ],
            out_specs=(_const_spec((B, T, H)), _const_spec((B, H))),
        ),
        compiler_params=pltpu.CompilerParams(dimension_semantics=("arbitrary",)),
    )(emb, attn_bias, kp['emb_ln_g'], kp['emb_ln_b'],
      kp['wqkvp'], kp['bqkvp'], kp['wop'], kp['bo'], kp['attn_ln_g'], kp['attn_ln_b'],
      kp['w1'], kp['b1'], kp['w2'], kp['b2'], kp['ffn_ln_g'], kp['ffn_ln_b'],
      kp['pooler_w'], kp['pooler_b'])


# ----------------------------- backbone + module-level forward --------------------------
@jax.jit
def _bert_backbone(kp, word, mask):
    B, T = word.shape
    M = B * T
    # TODO(synk): embedding-table row gather kept in plain JAX (data-dependent gather);
    # the dense transformer stack + pooler run in one fused Pallas kernel.
    emb = (jnp.take(kp['word_emb'], word, axis=0)
           + kp['pos_emb'][None, :T, :]
           + kp['type_emb'][0][None, None, :])

    # Block-diagonal additive bias over flattened (B*T) rows: -1e9 for padded keys and for
    # cross-sequence (query, key) pairs, 0 otherwise.
    key_bias = ((1.0 - mask.astype(jnp.float32)) * -1e9).reshape(M)
    bid = jnp.repeat(jnp.arange(B), T)
    same_seq = bid[:, None] == bid[None, :]
    attn_bias = jnp.where(same_seq, key_bias[None, :], -1e9)                     # (M, M)

    return bert_fused_pallas(emb, attn_bias, kp)


def bert_sentence_encoder_forward(kp, inputs, cat_entity_rep=False, cat=True):
    """Mirrors BERTSentenceEncoder.forward."""
    last_hidden, pooled = _bert_backbone(kp, inputs['word'], inputs['mask'])
    if not cat_entity_rep:
        return pooled
    if cat:
        rng = jnp.arange(inputs['word'].shape[0])
        h_state = last_hidden[rng, inputs['pos1']]
        t_state = last_hidden[rng, inputs['pos2']]
        return h_state, t_state, last_hidden
    return pooled, last_hidden


# ----------------------------- parameter init + kernel-layout packing -------------------
def init_bert_params(key):
    def norm(k, shape):
        return 0.02 * jax.random.normal(k, shape, jnp.float32)

    keys = iter(jax.random.split(key, 8 + 8 * NUM_LAYERS))
    params = {
        'word_emb': norm(next(keys), (VOCAB_SIZE, HIDDEN)),
        'pos_emb': norm(next(keys), (MAX_POS, HIDDEN)),
        'type_emb': norm(next(keys), (TYPE_VOCAB, HIDDEN)),
        'emb_ln_g': jnp.ones((1, HIDDEN), jnp.float32),
        'emb_ln_b': jnp.zeros((1, HIDDEN), jnp.float32),
        'pooler_w': norm(next(keys), (HIDDEN, HIDDEN)),
        'pooler_b': jnp.zeros((1, HIDDEN), jnp.float32),
        'layers': [],
    }
    for _ in range(NUM_LAYERS):
        params['layers'].append({
            'wqkv': norm(next(keys), (HIDDEN, 3 * HIDDEN)),
            'bqkv': jnp.zeros((1, 3 * HIDDEN), jnp.float32),
            'wo': norm(next(keys), (HIDDEN, HIDDEN)),
            'bo': jnp.zeros((1, HIDDEN), jnp.float32),
            'attn_ln_g': jnp.ones((1, HIDDEN), jnp.float32),
            'attn_ln_b': jnp.zeros((1, HIDDEN), jnp.float32),
            'w1': norm(next(keys), (HIDDEN, INTERMEDIATE)),
            'b1': jnp.zeros((1, INTERMEDIATE), jnp.float32),
            'w2': norm(next(keys), (INTERMEDIATE, HIDDEN)),
            'b2': jnp.zeros((1, HIDDEN), jnp.float32),
            'ffn_ln_g': jnp.ones((1, HIDDEN), jnp.float32),
            'ffn_ln_b': jnp.zeros((1, HIDDEN), jnp.float32),
        })
    return params


def pack_kernel_params(params):
    """One-time host-side re-layout: per-head Q/K/V padded to 128-lane slots, weights
    stacked over layers, matmul weights cast to bf16 (LayerNorm/bias stay f32)."""
    H, nh, dh, P = HIDDEN, NUM_HEADS, HEAD_DIM, HEAD_PAD
    wqkvp, bqkvp, wop = [], [], []
    for L in params['layers']:
        wqkv, bqkv = L['wqkv'], L['bqkv'][0]
        wcols, bcols = [], []
        for part in range(3):                       # Q, K, V
            for h in range(nh):
                wc = jnp.zeros((H, P), jnp.float32)
                wc = wc.at[:, :dh].set(wqkv[:, part * H + h * dh: part * H + (h + 1) * dh])
                wcols.append(wc)
                bc = jnp.zeros((P,), jnp.float32)
                bc = bc.at[:dh].set(bqkv[part * H + h * dh: part * H + (h + 1) * dh])
                bcols.append(bc)
        wqkvp.append(jnp.concatenate(wcols, axis=1))            # (H, 3*nh*P)
        bqkvp.append(jnp.concatenate(bcols)[None, :])           # (1, 3*nh*P)
        wo_p = jnp.zeros((nh * P, H), jnp.float32)
        for h in range(nh):
            wo_p = wo_p.at[h * P:h * P + dh, :].set(L['wo'][h * dh:(h + 1) * dh, :])
        wop.append(wo_p)

    def stack(key):
        return jnp.stack([L[key] for L in params['layers']])

    return {
        'word_emb': params['word_emb'], 'pos_emb': params['pos_emb'],
        'type_emb': params['type_emb'],
        'emb_ln_g': params['emb_ln_g'], 'emb_ln_b': params['emb_ln_b'],
        'wqkvp': jnp.stack(wqkvp).astype(jnp.bfloat16),
        'bqkvp': jnp.stack(bqkvp),
        'wop': jnp.stack(wop).astype(jnp.bfloat16),
        'bo': stack('bo'),
        'attn_ln_g': stack('attn_ln_g'), 'attn_ln_b': stack('attn_ln_b'),
        'w1': stack('w1').astype(jnp.bfloat16), 'b1': stack('b1'),
        'w2': stack('w2').astype(jnp.bfloat16), 'b2': stack('b2'),
        'ffn_ln_g': stack('ffn_ln_g'), 'ffn_ln_b': stack('ffn_ln_b'),
        'pooler_w': params['pooler_w'].astype(jnp.bfloat16),
        'pooler_b': params['pooler_b'],
    }


# ----------------------------- pure-JAX reference for correctness -----------------------
def _ref_backbone(params, word, mask):
    B, T = word.shape
    H, nh, dh = HIDDEN, NUM_HEADS, HEAD_DIM
    x = (jnp.take(params['word_emb'], word, axis=0)
         + params['pos_emb'][None, :T, :]
         + params['type_emb'][0][None, None, :])
    x = _layernorm(x, params['emb_ln_g'], params['emb_ln_b'])
    am = (1.0 - mask.astype(jnp.float32)) * -1e9        # (B, T)
    for L in params['layers']:
        qkv = x @ L['wqkv'] + L['bqkv']
        q = qkv[..., :H].reshape(B, T, nh, dh)
        k = qkv[..., H:2 * H].reshape(B, T, nh, dh)
        v = qkv[..., 2 * H:].reshape(B, T, nh, dh)
        s = jnp.einsum('bqnd,bknd->bnqk', q, k) / math.sqrt(dh) + am[:, None, None, :]
        p = jax.nn.softmax(s, axis=-1)
        ctx = jnp.einsum('bnqk,bknd->bqnd', p, v).reshape(B, T, H)
        x = _layernorm(x + ctx @ L['wo'] + L['bo'], L['attn_ln_g'], L['attn_ln_b'])
        hmid = _gelu(x @ L['w1'] + L['b1'])
        x = _layernorm(x + hmid @ L['w2'] + L['b2'], L['ffn_ln_g'], L['ffn_ln_b'])
    pooled = jnp.tanh(x[:, 0, :] @ params['pooler_w'] + params['pooler_b'])
    return x, pooled


# ----------------------------- demo / self-test ------------------------------------------
if __name__ == "__main__":
    B, T = 2, 8

    key = jax.random.PRNGKey(0)
    k_param, k_word = jax.random.split(key)
    params = init_bert_params(k_param)
    kparams = pack_kernel_params(params)

    word = jax.random.randint(k_word, (B, T), 0, VOCAB_SIZE, dtype=jnp.int32)
    mask = jnp.ones((B, T), jnp.int32).at[1, 6:].set(0)    # pad last 2 tokens of row 1
    inputs = {
        'word': word,
        'mask': mask,
        'pos1': jnp.array([1, 2], jnp.int32),
        'pos2': jnp.array([3, 5], jnp.int32),
    }

    # Path 1: cat_entity_rep=True, cat=True -> (h_state, t_state, last_hidden_state)
    h_state, t_state, last_hidden = bert_sentence_encoder_forward(
        kparams, inputs, cat_entity_rep=True, cat=True)
    # Path 2: default -> pooler output
    pooled = bert_sentence_encoder_forward(kparams, inputs, cat_entity_rep=False)
    jax.block_until_ready((h_state, t_state, last_hidden, pooled))

    assert last_hidden.shape == (B, T, HIDDEN), last_hidden.shape
    assert h_state.shape == (B, HIDDEN) and t_state.shape == (B, HIDDEN)
    assert pooled.shape == (B, HIDDEN), pooled.shape

    # Correctness vs. a pure-JAX f32 reference (tolerance covers bf16 MXU operands).
    lh_ref, pooled_ref = _ref_backbone(params, word, mask)
    rng = jnp.arange(B)
    assert jnp.allclose(last_hidden, lh_ref, atol=5e-2, rtol=5e-2), "last_hidden mismatch"
    assert jnp.allclose(pooled, pooled_ref, atol=5e-2, rtol=5e-2), "pooler mismatch"
    assert jnp.allclose(h_state, lh_ref[rng, inputs['pos1']], atol=5e-2, rtol=5e-2), "h_state mismatch"
    assert jnp.allclose(t_state, lh_ref[rng, inputs['pos2']], atol=5e-2, rtol=5e-2), "t_state mismatch"

    print("KERNEL_OK")
</pallas_src>

<mosaic_0001>
module attributes {stable_mosaic.version = 11 : i64} {
  func.func @_bert_fused_kernel(%arg0: i32, %arg1: memref<2x8x128xf32, #tpu.memory_space<vmem>>, %arg2: memref<16x16xf32, #tpu.memory_space<vmem>>, %arg3: memref<1x128xf32, #tpu.memory_space<vmem>>, %arg4: memref<1x128xf32, #tpu.memory_space<vmem>>, %arg5: memref<2x128x768xbf16, #tpu.memory_space<vmem>>, %arg6: memref<2x1x768xf32, #tpu.memory_space<vmem>>, %arg7: memref<2x256x128xbf16, #tpu.memory_space<vmem>>, %arg8: memref<2x1x128xf32, #tpu.memory_space<vmem>>, %arg9: memref<2x1x128xf32, #tpu.memory_space<vmem>>, %arg10: memref<2x1x128xf32, #tpu.memory_space<vmem>>, %arg11: memref<2x128x512xbf16, #tpu.memory_space<vmem>>, %arg12: memref<2x1x512xf32, #tpu.memory_space<vmem>>, %arg13: memref<2x512x128xbf16, #tpu.memory_space<vmem>>, %arg14: memref<2x1x128xf32, #tpu.memory_space<vmem>>, %arg15: memref<2x1x128xf32, #tpu.memory_space<vmem>>, %arg16: memref<2x1x128xf32, #tpu.memory_space<vmem>>, %arg17: memref<128x128xbf16, #tpu.memory_space<vmem>>, %arg18: memref<1x128xf32, #tpu.memory_space<vmem>>, %arg19: memref<2x8x128xf32, #tpu.memory_space<vmem>>, %arg20: memref<2x128xf32, #tpu.memory_space<vmem>>) attributes {dimension_semantics = [#tpu.dimension_semantics<arbitrary>], iteration_bounds = array<i64: 1>, scalar_prefetch = 0 : i64, scratch_operands = 0 : i64, tpu.core_type = #tpu.core_type<tc>, window_params = [{pipeline_mode = #tpu.pipeline_mode<synchronous>, transform_indices = @transform_0, window_bounds = array<i64: 2, 8, 128>}, {pipeline_mode = #tpu.pipeline_mode<synchronous>, transform_indices = @transform_1, window_bounds = array<i64: 16, 16>}, {pipeline_mode = #tpu.pipeline_mode<synchronous>, transform_indices = @transform_2, window_bounds = array<i64: 1, 128>}, {pipeline_mode = #tpu.pipeline_mode<synchronous>, transform_indices = @transform_3, window_bounds = array<i64: 1, 128>}, {pipeline_mode = #tpu.pipeline_mode<synchronous>, transform_indices = @transform_4, window_bounds = array<i64: 2, 128, 768>}, {pipeline_mode = #tpu.pipeline_mode<synchronous>, transform_indices = @transform_5, window_bounds = array<i64: 2, 1, 768>}, {pipeline_mode = #tpu.pipeline_mode<synchronous>, transform_indices = @transform_6, window_bounds = array<i64: 2, 256, 128>}, {pipeline_mode = #tpu.pipeline_mode<synchronous>, transform_indices = @transform_7, window_bounds = array<i64: 2, 1, 128>}, {pipeline_mode = #tpu.pipeline_mode<synchronous>, transform_indices = @transform_8, window_bounds = array<i64: 2, 1, 128>}, {pipeline_mode = #tpu.pipeline_mode<synchronous>, transform_indices = @transform_9, window_bounds = array<i64: 2, 1, 128>}, {pipeline_mode = #tpu.pipeline_mode<synchronous>, transform_indices = @transform_10, window_bounds = array<i64: 2, 128, 512>}, {pipeline_mode = #tpu.pipeline_mode<synchronous>, transform_indices = @transform_11, window_bounds = array<i64: 2, 1, 512>}, {pipeline_mode = #tpu.pipeline_mode<synchronous>, transform_indices = @transform_12, window_bounds = array<i64: 2, 512, 128>}, {pipeline_mode = #tpu.pipeline_mode<synchronous>, transform_indices = @transform_13, window_bounds = array<i64: 2, 1, 128>}, {pipeline_mode = #tpu.pipeline_mode<synchronous>, transform_indices = @transform_14, window_bounds = array<i64: 2, 1, 128>}, {pipeline_mode = #tpu.pipeline_mode<synchronous>, transform_indices = @transform_15, window_bounds = array<i64: 2, 1, 128>}, {pipeline_mode = #tpu.pipeline_mode<synchronous>, transform_indices = @transform_16, window_bounds = array<i64: 128, 128>}, {pipeline_mode = #tpu.pipeline_mode<synchronous>, transform_indices = @transform_17, window_bounds = array<i64: 1, 128>}, {pipeline_mode = #tpu.pipeline_mode<synchronous>, transform_indices = @transform_18, window_bounds = array<i64: 2, 8, 128>}, {pipeline_mode = #tpu.pipeline_mode<synchronous>, transform_indices = @transform_19, window_bounds = array<i64: 2, 128>}]} {
    %c0 = arith.constant 0 : index
    %c0_0 = arith.constant 0 : index
    %c0_1 = arith.constant 0 : index
    %0 = vector.load %arg1[%c0, %c0_0, %c0_1] : memref<2x8x128xf32, #tpu.memory_space<vmem>>, vector<2x8x128xf32>
    %1 = vector.shape_cast %0 : vector<2x8x128xf32> to vector<16x128xf32>
    %c0_2 = arith.constant 0 : index
    %c0_3 = arith.constant 0 : index
    %2 = vector.load %arg3[%c0_2, %c0_3] : memref<1x128xf32, #tpu.memory_space<vmem>>, vector<1x128xf32>
    %c0_4 = arith.constant 0 : index
    %c0_5 = arith.constant 0 : index
    %3 = vector.load %arg4[%c0_4, %c0_5] : memref<1x128xf32, #tpu.memory_space<vmem>>, vector<1x128xf32>
    %cst = arith.constant dense<0.000000e+00> : vector<16xf32>
    %4 = vector.multi_reduction <add>, %1, %cst [1] : vector<16x128xf32> to vector<16xf32>
    %5 = vector.shape_cast %4 : vector<16xf32> to vector<16x1xf32>
    %cst_6 = arith.constant 1.280000e+02 : f32
    %6 = vector.broadcast %cst_6 : f32 to vector<16x1xf32>
    %7 = arith.divf %5, %6 : vector<16x1xf32>
    %8 = vector.broadcast %7 : vector<16x1xf32> to vector<16x128xf32>
    %9 = arith.subf %1, %8 : vector<16x128xf32>
    %10 = arith.mulf %9, %9 : vector<16x128xf32>
    %cst_7 = arith.constant dense<0.000000e+00> : vector<16xf32>
    %11 = vector.multi_reduction <add>, %10, %cst_7 [1] : vector<16x128xf32> to vector<16xf32>
    %12 = vector.shape_cast %11 : vector<16xf32> to vector<16x1xf32>
    %cst_8 = arith.constant 1.280000e+02 : f32
    %13 = vector.broadcast %cst_8 : f32 to vector<16x1xf32>
    %14 = arith.divf %12, %13 : vector<16x1xf32>
    %15 = vector.broadcast %7 : vector<16x1xf32> to vector<16x128xf32>
    %16 = arith.subf %1, %15 : vector<16x128xf32>
    %cst_9 = arith.constant 9.99999996E-13 : f32
    %17 = vector.broadcast %cst_9 : f32 to vector<16x1xf32>
    %18 = arith.addf %14, %17 : vector<16x1xf32>
    %19 = math.rsqrt %18 : vector<16x1xf32>
    %20 = vector.broadcast %19 : vector<16x1xf32> to vector<16x128xf32>
    %21 = arith.mulf %16, %20 : vector<16x128xf32>
    %22 = vector.broadcast %2 : vector<1x128xf32> to vector<16x128xf32>
    %23 = arith.mulf %21, %22 : vector<16x128xf32>
    %24 = vector.broadcast %3 : vector<1x128xf32> to vector<16x128xf32>
    %25 = arith.addf %23, %24 : vector<16x128xf32>
    %c0_10 = arith.constant 0 : index
    %c0_11 = arith.constant 0 : index
    %26 = vector.load %arg2[%c0_10, %c0_11] : memref<16x16xf32, #tpu.memory_space<vmem>>, vector<16x16xf32>
    %c0_12 = arith.constant 0 : index
    %c0_13 = arith.constant 0 : index
    %c0_14 = arith.constant 0 : index
    %27 = vector.load %arg5[%c0_12, %c0_13, %c0_14] : memref<2x128x768xbf16, #tpu.memory_space<vmem>>, vector<1x128x768xbf16>
    %28 = vector.shape_cast %27 : vector<1x128x768xbf16> to vector<128x768xbf16>
    %29 = arith.truncf %25 : vector<16x128xf32> to vector<16x128xbf16>
    %cst_15 = arith.constant dense<0.000000e+00> : vector<16x768xf32>
    %30 = tpu.matmul %29, %28, %cst_15 {dimension_numbers = #tpu.dot_dimension_numbers<[1], [0], [0], [1], [0, 0, 1, 1], [], []>} : vector<16x128xbf16>, vector<128x768xbf16>, vector<16x768xf32> -> vector<16x768xf32>
    %c0_16 = arith.constant 0 : index
    %c0_17 = arith.constant 0 : index
    %c0_18 = arith.constant 0 : index
    %31 = vector.load %arg6[%c0_16, %c0_17, %c0_18] : memref<2x1x768xf32, #tpu.memory_space<vmem>>, vector<1x1x768xf32>
    %32 = vector.shape_cast %31 : vector<1x1x768xf32> to vector<1x768xf32>
    %33 = vector.broadcast %32 : vector<1x768xf32> to vector<16x768xf32>
    %34 = arith.addf %30, %33 : vector<16x768xf32>
    %c0_19 = arith.constant 0 : index
    %c0_20 = arith.constant 0 : index
    %c0_21 = arith.constant 0 : index
    %35 = vector.load %arg7[%c0_19, %c0_20, %c0_21] : memref<2x256x128xbf16, #tpu.memory_space<vmem>>, vector<1x256x128xbf16>
    %36 = vector.shape_cast %35 : vector<1x256x128xbf16> to vector<256x128xbf16>
    %37 = vector.extract_strided_slice %34 {offsets = [0, 0], sizes = [16, 128], strides = [1, 1]} : vector<16x768xf32> to vector<16x128xf32>
    %38 = vector.extract_strided_slice %34 {offsets = [0, 256], sizes = [16, 128], strides = [1, 1]} : vector<16x768xf32> to vector<16x128xf32>
    %39 = vector.extract_strided_slice %34 {offsets = [0, 512], sizes = [16, 128], strides = [1, 1]} : vector<16x768xf32> to vector<16x128xf32>
    %40 = arith.truncf %37 : vector<16x128xf32> to vector<16x128xbf16>
    %41 = arith.truncf %38 : vector<16x128xf32> to vector<16x128xbf16>
    %cst_22 = arith.constant dense<0.000000e+00> : vector<16x16xf32>
    %42 = tpu.matmul %40, %41, %cst_22 {dimension_numbers = #tpu.dot_dimension_numbers<[1], [1], [0], [0], [0, 0, 1, 0], [], []>} : vector<16x128xbf16>, vector<16x128xbf16>, vector<16x16xf32> -> vector<16x16xf32>
    %cst_23 = arith.constant 1.250000e-01 : f32
    %43 = vector.broadcast %cst_23 : f32 to vector<16x16xf32>
    %44 = arith.mulf %42, %43 : vector<16x16xf32>
    %45 = arith.addf %44, %26 : vector<16x16xf32>
    %cst_24 = arith.constant dense<0xFF800000> : vector<16xf32>
    %46 = vector.multi_reduction <maximumf>, %45, %cst_24 [1] : vector<16x16xf32> to vector<16xf32>
    %47 = vector.shape_cast %46 : vector<16xf32> to vector<16x1xf32>
    %48 = vector.broadcast %47 : vector<16x1xf32> to vector<16x16xf32>
    %49 = arith.subf %45, %48 : vector<16x16xf32>
    %50 = math.exp %49 : vector<16x16xf32>
    %cst_25 = arith.constant dense<0.000000e+00> : vector<16xf32>
    %51 = vector.multi_reduction <add>, %50, %cst_25 [1] : vector<16x16xf32> to vector<16xf32>
    %52 = vector.shape_cast %51 : vector<16xf32> to vector<16x1xf32>
    %53 = tpu.reciprocal %52 {approx = true} : vector<16x1xf32> -> vector<16x1xf32>
    %54 = vector.broadcast %53 : vector<16x1xf32> to vector<16x16xf32>
    %55 = arith.mulf %50, %54 : vector<16x16xf32>
    %56 = arith.truncf %55 : vector<16x16xf32> to vector<16x16xbf16>
    %57 = arith.truncf %39 : vector<16x128xf32> to vector<16x128xbf16>
    %cst_26 = arith.constant dense<0.000000e+00> : vector<16x128xf32>
    %58 = tpu.matmul %56, %57, %cst_26 {dimension_numbers = #tpu.dot_dimension_numbers<[1], [0], [0], [1], [0, 0, 1, 1], [], []>} : vector<16x16xbf16>, vector<16x128xbf16>, vector<16x128xf32> -> vector<16x128xf32>
    %59 = arith.truncf %58 : vector<16x128xf32> to vector<16x128xbf16>
    %60 = vector.extract_strided_slice %36 {offsets = [0, 0], sizes = [128, 128], strides = [1, 1]} : vector<256x128xbf16> to vector<128x128xbf16>
    %cst_27 = arith.constant dense<0.000000e+00> : vector<16x128xf32>
    %61 = tpu.matmul %59, %60, %cst_27 {dimension_numbers = #tpu.dot_dimension_numbers<[1], [0], [0], [1], [0, 0, 1, 1], [], []>} : vector<16x128xbf16>, vector<128x128xbf16>, vector<16x128xf32> -> vector<16x128xf32>
    %62 = vector.extract_strided_slice %34 {offsets = [0, 128], sizes = [16, 128], strides = [1, 1]} : vector<16x768xf32> to vector<16x128xf32>
    %63 = vector.extract_strided_slice %34 {offsets = [0, 384], sizes = [16, 128], strides = [1, 1]} : vector<16x768xf32> to vector<16x128xf32>
    %64 = vector.extract_strided_slice %34 {offsets = [0, 640], sizes = [16, 128], strides = [1, 1]} : vector<16x768xf32> to vector<16x128xf32>
    %65 = arith.truncf %62 : vector<16x128xf32> to vector<16x128xbf16>
    %66 = arith.truncf %63 : vector<16x128xf32> to vector<16x128xbf16>
    %cst_28 = arith.constant dense<0.000000e+00> : vector<16x16xf32>
    %67 = tpu.matmul %65, %66, %cst_28 {dimension_numbers = #tpu.dot_dimension_numbers<[1], [1], [0], [0], [0, 0, 1, 0], [], []>} : vector<16x128xbf16>, vector<16x128xbf16>, vector<16x16xf32> -> vector<16x16xf32>
    %cst_29 = arith.constant 1.250000e-01 : f32
    %68 = vector.broadcast %cst_29 : f32 to vector<16x16xf32>
    %69 = arith.mulf %67, %68 : vector<16x16xf32>
    %70 = arith.addf %69, %26 : vector<16x16xf32>
    %cst_30 = arith.constant dense<0xFF800000> : vector<16xf32>
    %71 = vector.multi_reduction <maximumf>, %70, %cst_30 [1] : vector<16x16xf32> to vector<16xf32>
    %72 = vector.shape_cast %71 : vector<16xf32> to vector<16x1xf32>
    %73 = vector.broadcast %72 : vector<16x1xf32> to vector<16x16xf32>
    %74 = arith.subf %70, %73 : vector<16x16xf32>
    %75 = math.exp %74 : vector<16x16xf32>
    %cst_31 = arith.constant dense<0.000000e+00> : vector<16xf32>
    %76 = vector.multi_reduction <add>, %75, %cst_31 [1] : vector<16x16xf32> to vector<16xf32>
    %77 = vector.shape_cast %76 : vector<16xf32> to vector<16x1xf32>
    %78 = tpu.reciprocal %77 {approx = true} : vector<16x1xf32> -> vector<16x1xf32>
    %79 = vector.broadcast %78 : vector<16x1xf32> to vector<16x16xf32>
    %80 = arith.mulf %75, %79 : vector<16x16xf32>
    %81 = arith.truncf %80 : vector<16x16xf32> to vector<16x16xbf16>
    %82 = arith.truncf %64 : vector<16x128xf32> to vector<16x128xbf16>
    %cst_32 = arith.constant dense<0.000000e+00> : vector<16x128xf32>
    %83 = tpu.matmul %81, %82, %cst_32 {dimension_numbers = #tpu.dot_dimension_numbers<[1], [0], [0], [1], [0, 0, 1, 1], [], []>} : vector<16x16xbf16>, vector<16x128xbf16>, vector<16x128xf32> -> vector<16x128xf32>
    %84 = arith.truncf %83 : vector<16x128xf32> to vector<16x128xbf16>
    %85 = vector.extract_strided_slice %36 {offsets = [128, 0], sizes = [128, 128], strides = [1, 1]} : vector<256x128xbf16> to vector<128x128xbf16>
    %cst_33 = arith.constant dense<0.000000e+00> : vector<16x128xf32>
    %86 = tpu.matmul %84, %85, %cst_33 {dimension_numbers = #tpu.dot_dimension_numbers<[1], [0], [0], [1], [0, 0, 1, 1], [], []>} : vector<16x128xbf16>, vector<128x128xbf16>, vector<16x128xf32> -> vector<16x128xf32>
    %87 = arith.addf %61, %86 : vector<16x128xf32>
    %88 = arith.addf %25, %87 : vector<16x128xf32>
    %c0_34 = arith.constant 0 : index
    %c0_35 = arith.constant 0 : index
    %c0_36 = arith.constant 0 : index
    %89 = vector.load %arg8[%c0_34, %c0_35, %c0_36] : memref<2x1x128xf32, #tpu.memory_space<vmem>>, vector<1x1x128xf32>
    %90 = vector.shape_cast %89 : vector<1x1x128xf32> to vector<1x128xf32>
    %91 = vector.broadcast %90 : vector<1x128xf32> to vector<16x128xf32>
    %92 = arith.addf %88, %91 : vector<16x128xf32>
    %c0_37 = arith.constant 0 : index
    %c0_38 = arith.constant 0 : index
    %c0_39 = arith.constant 0 : index
    %93 = vector.load %arg9[%c0_37, %c0_38, %c0_39] : memref<2x1x128xf32, #tpu.memory_space<vmem>>, vector<1x1x128xf32>
    %94 = vector.shape_cast %93 : vector<1x1x128xf32> to vector<1x128xf32>
    %c0_40 = arith.constant 0 : index
    %c0_41 = arith.constant 0 : index
    %c0_42 = arith.constant 0 : index
    %95 = vector.load %arg10[%c0_40, %c0_41, %c0_42] : memref<2x1x128xf32, #tpu.memory_space<vmem>>, vector<1x1x128xf32>
    %96 = vector.shape_cast %95 : vector<1x1x128xf32> to vector<1x128xf32>
    %cst_43 = arith.constant dense<0.000000e+00> : vector<16xf32>
    %97 = vector.multi_reduction <add>, %92, %cst_43 [1] : vector<16x128xf32> to vector<16xf32>
    %98 = vector.shape_cast %97 : vector<16xf32> to vector<16x1xf32>
    %cst_44 = arith.constant 1.280000e+02 : f32
    %99 = vector.broadcast %cst_44 : f32 to vector<16x1xf32>
    %100 = arith.divf %98, %99 : vector<16x1xf32>
    %101 = vector.broadcast %100 : vector<16x1xf32> to vector<16x128xf32>
    %102 = arith.subf %92, %101 : vector<16x128xf32>
    %103 = arith.mulf %102, %102 : vector<16x128xf32>
    %cst_45 = arith.constant dense<0.000000e+00> : vector<16xf32>
    %104 = vector.multi_reduction <add>, %103, %cst_45 [1] : vector<16x128xf32> to vector<16xf32>
    %105 = vector.shape_cast %104 : vector<16xf32> to vector<16x1xf32>
    %cst_46 = arith.constant 1.280000e+02 : f32
    %106 = vector.broadcast %cst_46 : f32 to vector<16x1xf32>
    %107 = arith.divf %105, %106 : vector<16x1xf32>
    %108 = vector.broadcast %100 : vector<16x1xf32> to vector<16x128xf32>
    %109 = arith.subf %92, %108 : vector<16x128xf32>
    %cst_47 = arith.constant 9.99999996E-13 : f32
    %110 = vector.broadcast %cst_47 : f32 to vector<16x1xf32>
    %111 = arith.addf %107, %110 : vector<16x1xf32>
    %112 = math.rsqrt %111 : vector<16x1xf32>
    %113 = vector.broadcast %112 : vector<16x1xf32> to vector<16x128xf32>
    %114 = arith.mulf %109, %113 : vector<16x128xf32>
    %115 = vector.broadcast %94 : vector<1x128xf32> to vector<16x128xf32>
    %116 = arith.mulf %114, %115 : vector<16x128xf32>
    %117 = vector.broadcast %96 : vector<1x128xf32> to vector<16x128xf32>
    %118 = arith.addf %116, %117 : vector<16x128xf32>
    %119 = arith.truncf %118 : vector<16x128xf32> to vector<16x128xbf16>
    %c0_48 = arith.constant 0 : index
    %c0_49 = arith.constant 0 : index
    %c0_50 = arith.constant 0 : index
    %120 = vector.load %arg11[%c0_48, %c0_49, %c0_50] : memref<2x128x512xbf16, #tpu.memory_space<vmem>>, vector<1x128x512xbf16>
    %121 = vector.shape_cast %120 : vector<1x128x512xbf16> to vector<128x512xbf16>
    %cst_51 = arith.constant dense<0.000000e+00> : vector<16x512xf32>
    %122 = tpu.matmul %119, %121, %cst_51 {dimension_numbers = #tpu.dot_dimension_numbers<[1], [0], [0], [1], [0, 0, 1, 1], [], []>} : vector<16x128xbf16>, vector<128x512xbf16>, vector<16x512xf32> -> vector<16x512xf32>
    %c0_52 = arith.constant 0 : index
    %c0_53 = arith.constant 0 : index
    %c0_54 = arith.constant 0 : index
    %123 = vector.load %arg12[%c0_52, %c0_53, %c0_54] : memref<2x1x512xf32, #tpu.memory_space<vmem>>, vector<1x1x512xf32>
    %124 = vector.shape_cast %123 : vector<1x1x512xf32> to vector<1x512xf32>
    %125 = vector.broadcast %124 : vector<1x512xf32> to vector<16x512xf32>
    %126 = arith.addf %122, %125 : vector<16x512xf32>
    %cst_55 = arith.constant 5.000000e-01 : f32
    %127 = vector.broadcast %cst_55 : f32 to vector<16x512xf32>
    %128 = arith.mulf %127, %126 : vector<16x512xf32>
    %cst_56 = arith.constant 4.471500e-02 : f32
    %129 = vector.broadcast %cst_56 : f32 to vector<16x512xf32>
    %130 = arith.mulf %129, %126 : vector<16x512xf32>
    %131 = arith.mulf %130, %126 : vector<16x512xf32>
    %132 = arith.mulf %131, %126 : vector<16x512xf32>
    %133 = arith.addf %126, %132 : vector<16x512xf32>
    %cst_57 = arith.constant 0.797884583 : f32
    %134 = vector.broadcast %cst_57 : f32 to vector<16x512xf32>
    %135 = arith.mulf %134, %133 : vector<16x512xf32>
    %136 = math.tanh %135 : vector<16x512xf32>
    %cst_58 = arith.constant 1.000000e+00 : f32
    %137 = vector.broadcast %cst_58 : f32 to vector<16x512xf32>
    %138 = arith.addf %137, %136 : vector<16x512xf32>
    %139 = arith.mulf %128, %138 : vector<16x512xf32>
    %140 = arith.truncf %139 : vector<16x512xf32> to vector<16x512xbf16>
    %c0_59 = arith.constant 0 : index
    %c0_60 = arith.constant 0 : index
    %c0_61 = arith.constant 0 : index
    %141 = vector.load %arg13[%c0_59, %c0_60, %c0_61] : memref<2x512x128xbf16, #tpu.memory_space<vmem>>, vector<1x512x128xbf16>
    %142 = vector.shape_cast %141 : vector<1x512x128xbf16> to vector<512x128xbf16>
    %cst_62 = arith.constant dense<0.000000e+00> : vector<16x128xf32>
    %143 = tpu.matmul %140, %142, %cst_62 {dimension_numbers = #tpu.dot_dimension_numbers<[1], [0], [0], [1], [0, 0, 1, 1], [], []>} : vector<16x512xbf16>, vector<512x128xbf16>, vector<16x128xf32> -> vector<16x128xf32>
    %144 = arith.addf %118, %143 : vector<16x128xf32>
    %c0_63 = arith.constant 0 : index
    %c0_64 = arith.constant 0 : index
    %c0_65 = arith.constant 0 : index
    %145 = vector.load %arg14[%c0_63, %c0_64, %c0_65] : memref<2x1x128xf32, #tpu.memory_space<vmem>>, vector<1x1x128xf32>
    %146 = vector.shape_cast %145 : vector<1x1x128xf32> to vector<1x128xf32>
    %147 = vector.broadcast %146 : vector<1x128xf32> to vector<16x128xf32>
    %148 = arith.addf %144, %147 : vector<16x128xf32>
    %c0_66 = arith.constant 0 : index
    %c0_67 = arith.constant 0 : index
    %c0_68 = arith.constant 0 : index
    %149 = vector.load %arg15[%c0_66, %c0_67, %c0_68] : memref<2x1x128xf32, #tpu.memory_space<vmem>>, vector<1x1x128xf32>
    %150 = vector.shape_cast %149 : vector<1x1x128xf32> to vector<1x128xf32>
    %c0_69 = arith.constant 0 : index
    %c0_70 = arith.constant 0 : index
    %c0_71 = arith.constant 0 : index
    %151 = vector.load %arg16[%c0_69, %c0_70, %c0_71] : memref<2x1x128xf32, #tpu.memory_space<vmem>>, vector<1x1x128xf32>
    %152 = vector.shape_cast %151 : vector<1x1x128xf32> to vector<1x128xf32>
    %cst_72 = arith.constant dense<0.000000e+00> : vector<16xf32>
    %153 = vector.multi_reduction <add>, %148, %cst_72 [1] : vector<16x128xf32> to vector<16xf32>
    %154 = vector.shape_cast %153 : vector<16xf32> to vector<16x1xf32>
    %cst_73 = arith.constant 1.280000e+02 : f32
    %155 = vector.broadcast %cst_73 : f32 to vector<16x1xf32>
    %156 = arith.divf %154, %155 : vector<16x1xf32>
    %157 = vector.broadcast %156 : vector<16x1xf32> to vector<16x128xf32>
    %158 = arith.subf %148, %157 : vector<16x128xf32>
    %159 = arith.mulf %158, %158 : vector<16x128xf32>
    %cst_74 = arith.constant dense<0.000000e+00> : vector<16xf32>
    %160 = vector.multi_reduction <add>, %159, %cst_74 [1] : vector<16x128xf32> to vector<16xf32>
    %161 = vector.shape_cast %160 : vector<16xf32> to vector<16x1xf32>
    %cst_75 = arith.constant 1.280000e+02 : f32
    %162 = vector.broadcast %cst_75 : f32 to vector<16x1xf32>
    %163 = arith.divf %161, %162 : vector<16x1xf32>
    %164 = vector.broadcast %156 : vector<16x1xf32> to vector<16x128xf32>
    %165 = arith.subf %148, %164 : vector<16x128xf32>
    %cst_76 = arith.constant 9.99999996E-13 : f32
    %166 = vector.broadcast %cst_76 : f32 to vector<16x1xf32>
    %167 = arith.addf %163, %166 : vector<16x1xf32>
    %168 = math.rsqrt %167 : vector<16x1xf32>
    %169 = vector.broadcast %168 : vector<16x1xf32> to vector<16x128xf32>
    %170 = arith.mulf %165, %169 : vector<16x128xf32>
    %171 = vector.broadcast %150 : vector<1x128xf32> to vector<16x128xf32>
    %172 = arith.mulf %170, %171 : vector<16x128xf32>
    %173 = vector.broadcast %152 : vector<1x128xf32> to vector<16x128xf32>
    %174 = arith.addf %172, %173 : vector<16x128xf32>
    %c1 = arith.constant 1 : index
    %c0_77 = arith.constant 0 : index
    %c0_78 = arith.constant 0 : index
    %175 = vector.load %arg5[%c1, %c0_77, %c0_78] : memref<2x128x768xbf16, #tpu.memory_space<vmem>>, vector<1x128x768xbf16>
    %176 = vector.shape_cast %175 : vector<1x128x768xbf16> to vector<128x768xbf16>
    %177 = arith.truncf %174 : vector<16x128xf32> to vector<16x128xbf16>
    %cst_79 = arith.constant dense<0.000000e+00> : vector<16x768xf32>
    %178 = tpu.matmul %177, %176, %cst_79 {dimension_numbers = #tpu.dot_dimension_numbers<[1], [0], [0], [1], [0, 0, 1, 1], [], []>} : vector<16x128xbf16>, vector<128x768xbf16>, vector<16x768xf32> -> vector<16x768xf32>
    %c1_80 = arith.constant 1 : index
    %c0_81 = arith.constant 0 : index
    %c0_82 = arith.constant 0 : index
    %179 = vector.load %arg6[%c1_80, %c0_81, %c0_82] : memref<2x1x768xf32, #tpu.memory_space<vmem>>, vector<1x1x768xf32>
    %180 = vector.shape_cast %179 : vector<1x1x768xf32> to vector<1x768xf32>
    %181 = vector.broadcast %180 : vector<1x768xf32> to vector<16x768xf32>
    %182 = arith.addf %178, %181 : vector<16x768xf32>
    %c1_83 = arith.constant 1 : index
    %c0_84 = arith.constant 0 : index
    %c0_85 = arith.constant 0 : index
    %183 = vector.load %arg7[%c1_83, %c0_84, %c0_85] : memref<2x256x128xbf16, #tpu.memory_space<vmem>>, vector<1x256x128xbf16>
    %184 = vector.shape_cast %183 : vector<1x256x128xbf16> to vector<256x128xbf16>
    %185 = vector.extract_strided_slice %182 {offsets = [0, 0], sizes = [16, 128], strides = [1, 1]} : vector<16x768xf32> to vector<16x128xf32>
    %186 = vector.extract_strided_slice %182 {offsets = [0, 256], sizes = [16, 128], strides = [1, 1]} : vector<16x768xf32> to vector<16x128xf32>
    %187 = vector.extract_strided_slice %182 {offsets = [0, 512], sizes = [16, 128], strides = [1, 1]} : vector<16x768xf32> to vector<16x128xf32>
    %188 = arith.truncf %185 : vector<16x128xf32> to vector<16x128xbf16>
    %189 = arith.truncf %186 : vector<16x128xf32> to vector<16x128xbf16>
    %cst_86 = arith.constant dense<0.000000e+00> : vector<16x16xf32>
    %190 = tpu.matmul %188, %189, %cst_86 {dimension_numbers = #tpu.dot_dimension_numbers<[1], [1], [0], [0], [0, 0, 1, 0], [], []>} : vector<16x128xbf16>, vector<16x128xbf16>, vector<16x16xf32> -> vector<16x16xf32>
    %cst_87 = arith.constant 1.250000e-01 : f32
    %191 = vector.broadcast %cst_87 : f32 to vector<16x16xf32>
    %192 = arith.mulf %190, %191 : vector<16x16xf32>
    %193 = arith.addf %192, %26 : vector<16x16xf32>
    %cst_88 = arith.constant dense<0xFF800000> : vector<16xf32>
    %194 = vector.multi_reduction <maximumf>, %193, %cst_88 [1] : vector<16x16xf32> to vector<16xf32>
    %195 = vector.shape_cast %194 : vector<16xf32> to vector<16x1xf32>
    %196 = vector.broadcast %195 : vector<16x1xf32> to vector<16x16xf32>
    %197 = arith.subf %193, %196 : vector<16x16xf32>
    %198 = math.exp %197 : vector<16x16xf32>
    %cst_89 = arith.constant dense<0.000000e+00> : vector<16xf32>
    %199 = vector.multi_reduction <add>, %198, %cst_89 [1] : vector<16x16xf32> to vector<16xf32>
    %200 = vector.shape_cast %199 : vector<16xf32> to vector<16x1xf32>
    %201 = tpu.reciprocal %200 {approx = true} : vector<16x1xf32> -> vector<16x1xf32>
    %202 = vector.broadcast %201 : vector<16x1xf32> to vector<16x16xf32>
    %203 = arith.mulf %198, %202 : vector<16x16xf32>
    %204 = arith.truncf %203 : vector<16x16xf32> to vector<16x16xbf16>
    %205 = arith.truncf %187 : vector<16x128xf32> to vector<16x128xbf16>
    %cst_90 = arith.constant dense<0.000000e+00> : vector<16x128xf32>
    %206 = tpu.matmul %204, %205, %cst_90 {dimension_numbers = #tpu.dot_dimension_numbers<[1], [0], [0], [1], [0, 0, 1, 1], [], []>} : vector<16x16xbf16>, vector<16x128xbf16>, vector<16x128xf32> -> vector<16x128xf32>
    %207 = arith.truncf %206 : vector<16x128xf32> to vector<16x128xbf16>
    %208 = vector.extract_strided_slice %184 {offsets = [0, 0], sizes = [128, 128], strides = [1, 1]} : vector<256x128xbf16> to vector<128x128xbf16>
    %cst_91 = arith.constant dense<0.000000e+00> : vector<16x128xf32>
    %209 = tpu.matmul %207, %208, %cst_91 {dimension_numbers = #tpu.dot_dimension_numbers<[1], [0], [0], [1], [0, 0, 1, 1], [], []>} : vector<16x128xbf16>, vector<128x128xbf16>, vector<16x128xf32> -> vector<16x128xf32>
    %210 = vector.extract_strided_slice %182 {offsets = [0, 128], sizes = [16, 128], strides = [1, 1]} : vector<16x768xf32> to vector<16x128xf32>
    %211 = vector.extract_strided_slice %182 {offsets = [0, 384], sizes = [16, 128], strides = [1, 1]} : vector<16x768xf32> to vector<16x128xf32>
    %212 = vector.extract_strided_slice %182 {offsets = [0, 640], sizes = [16, 128], strides = [1, 1]} : vector<16x768xf32> to vector<16x128xf32>
    %213 = arith.truncf %210 : vector<16x128xf32> to vector<16x128xbf16>
    %214 = arith.truncf %211 : vector<16x128xf32> to vector<16x128xbf16>
    %cst_92 = arith.constant dense<0.000000e+00> : vector<16x16xf32>
    %215 = tpu.matmul %213, %214, %cst_92 {dimension_numbers = #tpu.dot_dimension_numbers<[1], [1], [0], [0], [0, 0, 1, 0], [], []>} : vector<16x128xbf16>, vector<16x128xbf16>, vector<16x16xf32> -> vector<16x16xf32>
    %cst_93 = arith.constant 1.250000e-01 : f32
    %216 = vector.broadcast %cst_93 : f32 to vector<16x16xf32>
    %217 = arith.mulf %215, %216 : vector<16x16xf32>
    %218 = arith.addf %217, %26 : vector<16x16xf32>
    %cst_94 = arith.constant dense<0xFF800000> : vector<16xf32>
    %219 = vector.multi_reduction <maximumf>, %218, %cst_94 [1] : vector<16x16xf32> to vector<16xf32>
    %220 = vector.shape_cast %219 : vector<16xf32> to vector<16x1xf32>
    %221 = vector.broadcast %220 : vector<16x1xf32> to vector<16x16xf32>
    %222 = arith.subf %218, %221 : vector<16x16xf32>
    %223 = math.exp %222 : vector<16x16xf32>
    %cst_95 = arith.constant dense<0.000000e+00> : vector<16xf32>
    %224 = vector.multi_reduction <add>, %223, %cst_95 [1] : vector<16x16xf32> to vector<16xf32>
    %225 = vector.shape_cast %224 : vector<16xf32> to vector<16x1xf32>
    %226 = tpu.reciprocal %225 {approx = true} : vector<16x1xf32> -> vector<16x1xf32>
    %227 = vector.broadcast %226 : vector<16x1xf32> to vector<16x16xf32>
    %228 = arith.mulf %223, %227 : vector<16x16xf32>
    %229 = arith.truncf %228 : vector<16x16xf32> to vector<16x16xbf16>
    %230 = arith.truncf %212 : vector<16x128xf32> to vector<16x128xbf16>
    %cst_96 = arith.constant dense<0.000000e+00> : vector<16x128xf32>
    %231 = tpu.matmul %229, %230, %cst_96 {dimension_numbers = #tpu.dot_dimension_numbers<[1], [0], [0], [1], [0, 0, 1, 1], [], []>} : vector<16x16xbf16>, vector<16x128xbf16>, vector<16x128xf32> -> vector<16x128xf32>
    %232 = arith.truncf %231 : vector<16x128xf32> to vector<16x128xbf16>
    %233 = vector.extract_strided_slice %184 {offsets = [128, 0], sizes = [128, 128], strides = [1, 1]} : vector<256x128xbf16> to vector<128x128xbf16>
    %cst_97 = arith.constant dense<0.000000e+00> : vector<16x128xf32>
    %234 = tpu.matmul %232, %233, %cst_97 {dimension_numbers = #tpu.dot_dimension_numbers<[1], [0], [0], [1], [0, 0, 1, 1], [], []>} : vector<16x128xbf16>, vector<128x128xbf16>, vector<16x128xf32> -> vector<16x128xf32>
    %235 = arith.addf %209, %234 : vector<16x128xf32>
    %236 = arith.addf %174, %235 : vector<16x128xf32>
    %c1_98 = arith.constant 1 : index
    %c0_99 = arith.constant 0 : index
    %c0_100 = arith.constant 0 : index
    %237 = vector.load %arg8[%c1_98, %c0_99, %c0_100] : memref<2x1x128xf32, #tpu.memory_space<vmem>>, vector<1x1x128xf32>
    %238 = vector.shape_cast %237 : vector<1x1x128xf32> to vector<1x128xf32>
    %239 = vector.broadcast %238 : vector<1x128xf32> to vector<16x128xf32>
    %240 = arith.addf %236, %239 : vector<16x128xf32>
    %c1_101 = arith.constant 1 : index
    %c0_102 = arith.constant 0 : index
    %c0_103 = arith.constant 0 : index
    %241 = vector.load %arg9[%c1_101, %c0_102, %c0_103] : memref<2x1x128xf32, #tpu.memory_space<vmem>>, vector<1x1x128xf32>
    %242 = vector.shape_cast %241 : vector<1x1x128xf32> to vector<1x128xf32>
    %c1_104 = arith.constant 1 : index
    %c0_105 = arith.constant 0 : index
    %c0_106 = arith.constant 0 : index
    %243 = vector.load %arg10[%c1_104, %c0_105, %c0_106] : memref<2x1x128xf32, #tpu.memory_space<vmem>>, vector<1x1x128xf32>
    %244 = vector.shape_cast %243 : vector<1x1x128xf32> to vector<1x128xf32>
    %cst_107 = arith.constant dense<0.000000e+00> : vector<16xf32>
    %245 = vector.multi_reduction <add>, %240, %cst_107 [1] : vector<16x128xf32> to vector<16xf32>
    %246 = vector.shape_cast %245 : vector<16xf32> to vector<16x1xf32>
    %cst_108 = arith.constant 1.280000e+02 : f32
    %247 = vector.broadcast %cst_108 : f32 to vector<16x1xf32>
    %248 = arith.divf %246, %247 : vector<16x1xf32>
    %249 = vector.broadcast %248 : vector<16x1xf32> to vector<16x128xf32>
    %250 = arith.subf %240, %249 : vector<16x128xf32>
    %251 = arith.mulf %250, %250 : vector<16x128xf32>
    %cst_109 = arith.constant dense<0.000000e+00> : vector<16xf32>
    %252 = vector.multi_reduction <add>, %251, %cst_109 [1] : vector<16x128xf32> to vector<16xf32>
    %253 = vector.shape_cast %252 : vector<16xf32> to vector<16x1xf32>
    %cst_110 = arith.constant 1.280000e+02 : f32
    %254 = vector.broadcast %cst_110 : f32 to vector<16x1xf32>
    %255 = arith.divf %253, %254 : vector<16x1xf32>
    %256 = vector.broadcast %248 : vector<16x1xf32> to vector<16x128xf32>
    %257 = arith.subf %240, %256 : vector<16x128xf32>
    %cst_111 = arith.constant 9.99999996E-13 : f32
    %258 = vector.broadcast %cst_111 : f32 to vector<16x1xf32>
    %259 = arith.addf %255, %258 : vector<16x1xf32>
    %260 = math.rsqrt %259 : vector<16x1xf32>
    %261 = vector.broadcast %260 : vector<16x1xf32> to vector<16x128xf32>
    %262 = arith.mulf %257, %261 : vector<16x128xf32>
    %263 = vector.broadcast %242 : vector<1x128xf32> to vector<16x128xf32>
    %264 = arith.mulf %262, %263 : vector<16x128xf32>
    %265 = vector.broadcast %244 : vector<1x128xf32> to vector<16x128xf32>
    %266 = arith.addf %264, %265 : vector<16x128xf32>
    %267 = arith.truncf %266 : vector<16x128xf32> to vector<16x128xbf16>
    %c1_112 = arith.constant 1 : index
    %c0_113 = arith.constant 0 : index
    %c0_114 = arith.constant 0 : index
    %268 = vector.load %arg11[%c1_112, %c0_113, %c0_114] : memref<2x128x512xbf16, #tpu.memory_space<vmem>>, vector<1x128x512xbf16>
    %269 = vector.shape_cast %268 : vector<1x128x512xbf16> to vector<128x512xbf16>
    %cst_115 = arith.constant dense<0.000000e+00> : vector<16x512xf32>
    %270 = tpu.matmul %267, %269, %cst_115 {dimension_numbers = #tpu.dot_dimension_numbers<[1], [0], [0], [1], [0, 0, 1, 1], [], []>} : vector<16x128xbf16>, vector<128x512xbf16>, vector<16x512xf32> -> vector<16x512xf32>
    %c1_116 = arith.constant 1 : index
    %c0_117 = arith.constant 0 : index
    %c0_118 = arith.constant 0 : index
    %271 = vector.load %arg12[%c1_116, %c0_117, %c0_118] : memref<2x1x512xf32, #tpu.memory_space<vmem>>, vector<1x1x512xf32>
    %272 = vector.shape_cast %271 : vector<1x1x512xf32> to vector<1x512xf32>
    %273 = vector.broadcast %272 : vector<1x512xf32> to vector<16x512xf32>
    %274 = arith.addf %270, %273 : vector<16x512xf32>
    %cst_119 = arith.constant 5.000000e-01 : f32
    %275 = vector.broadcast %cst_119 : f32 to vector<16x512xf32>
    %276 = arith.mulf %275, %274 : vector<16x512xf32>
    %cst_120 = arith.constant 4.471500e-02 : f32
    %277 = vector.broadcast %cst_120 : f32 to vector<16x512xf32>
    %278 = arith.mulf %277, %274 : vector<16x512xf32>
    %279 = arith.mulf %278, %274 : vector<16x512xf32>
    %280 = arith.mulf %279, %274 : vector<16x512xf32>
    %281 = arith.addf %274, %280 : vector<16x512xf32>
    %cst_121 = arith.constant 0.797884583 : f32
    %282 = vector.broadcast %cst_121 : f32 to vector<16x512xf32>
    %283 = arith.mulf %282, %281 : vector<16x512xf32>
    %284 = math.tanh %283 : vector<16x512xf32>
    %cst_122 = arith.constant 1.000000e+00 : f32
    %285 = vector.broadcast %cst_122 : f32 to vector<16x512xf32>
    %286 = arith.addf %285, %284 : vector<16x512xf32>
    %287 = arith.mulf %276, %286 : vector<16x512xf32>
    %288 = arith.truncf %287 : vector<16x512xf32> to vector<16x512xbf16>
    %c1_123 = arith.constant 1 : index
    %c0_124 = arith.constant 0 : index
    %c0_125 = arith.constant 0 : index
    %289 = vector.load %arg13[%c1_123, %c0_124, %c0_125] : memref<2x512x128xbf16, #tpu.memory_space<vmem>>, vector<1x512x128xbf16>
    %290 = vector.shape_cast %289 : vector<1x512x128xbf16> to vector<512x128xbf16>
    %cst_126 = arith.constant dense<0.000000e+00> : vector<16x128xf32>
    %291 = tpu.matmul %288, %290, %cst_126 {dimension_numbers = #tpu.dot_dimension_numbers<[1], [0], [0], [1], [0, 0, 1, 1], [], []>} : vector<16x512xbf16>, vector<512x128xbf16>, vector<16x128xf32> -> vector<16x128xf32>
    %292 = arith.addf %266, %291 : vector<16x128xf32>
    %c1_127 = arith.constant 1 : index
    %c0_128 = arith.constant 0 : index
    %c0_129 = arith.constant 0 : index
    %293 = vector.load %arg14[%c1_127, %c0_128, %c0_129] : memref<2x1x128xf32, #tpu.memory_space<vmem>>, vector<1x1x128xf32>
    %294 = vector.shape_cast %293 : vector<1x1x128xf32> to vector<1x128xf32>
    %295 = vector.broadcast %294 : vector<1x128xf32> to vector<16x128xf32>
    %296 = arith.addf %292, %295 : vector<16x128xf32>
    %c1_130 = arith.constant 1 : index
    %c0_131 = arith.constant 0 : index
    %c0_132 = arith.constant 0 : index
    %297 = vector.load %arg15[%c1_130, %c0_131, %c0_132] : memref<2x1x128xf32, #tpu.memory_space<vmem>>, vector<1x1x128xf32>
    %298 = vector.shape_cast %297 : vector<1x1x128xf32> to vector<1x128xf32>
    %c1_133 = arith.constant 1 : index
    %c0_134 = arith.constant 0 : index
    %c0_135 = arith.constant 0 : index
    %299 = vector.load %arg16[%c1_133, %c0_134, %c0_135] : memref<2x1x128xf32, #tpu.memory_space<vmem>>, vector<1x1x128xf32>
    %300 = vector.shape_cast %299 : vector<1x1x128xf32> to vector<1x128xf32>
    %cst_136 = arith.constant dense<0.000000e+00> : vector<16xf32>
    %301 = vector.multi_reduction <add>, %296, %cst_136 [1] : vector<16x128xf32> to vector<16xf32>
    %302 = vector.shape_cast %301 : vector<16xf32> to vector<16x1xf32>
    %cst_137 = arith.constant 1.280000e+02 : f32
    %303 = vector.broadcast %cst_137 : f32 to vector<16x1xf32>
    %304 = arith.divf %302, %303 : vector<16x1xf32>
    %305 = vector.broadcast %304 : vector<16x1xf32> to vector<16x128xf32>
    %306 = arith.subf %296, %305 : vector<16x128xf32>
    %307 = arith.mulf %306, %306 : vector<16x128xf32>
    %cst_138 = arith.constant dense<0.000000e+00> : vector<16xf32>
    %308 = vector.multi_reduction <add>, %307, %cst_138 [1] : vector<16x128xf32> to vector<16xf32>
    %309 = vector.shape_cast %308 : vector<16xf32> to vector<16x1xf32>
    %cst_139 = arith.constant 1.280000e+02 : f32
    %310 = vector.broadcast %cst_139 : f32 to vector<16x1xf32>
    %311 = arith.divf %309, %310 : vector<16x1xf32>
    %312 = vector.broadcast %304 : vector<16x1xf32> to vector<16x128xf32>
    %313 = arith.subf %296, %312 : vector<16x128xf32>
    %cst_140 = arith.constant 9.99999996E-13 : f32
    %314 = vector.broadcast %cst_140 : f32 to vector<16x1xf32>
    %315 = arith.addf %311, %314 : vector<16x1xf32>
    %316 = math.rsqrt %315 : vector<16x1xf32>
    %317 = vector.broadcast %316 : vector<16x1xf32> to vector<16x128xf32>
    %318 = arith.mulf %313, %317 : vector<16x128xf32>
    %319 = vector.broadcast %298 : vector<1x128xf32> to vector<16x128xf32>
    %320 = arith.mulf %318, %319 : vector<16x128xf32>
    %321 = vector.broadcast %300 : vector<1x128xf32> to vector<16x128xf32>
    %322 = arith.addf %320, %321 : vector<16x128xf32>
    %323 = vector.shape_cast %322 : vector<16x128xf32> to vector<2x8x128xf32>
    %c0_141 = arith.constant 0 : index
    %c0_142 = arith.constant 0 : index
    %c0_143 = arith.constant 0 : index
    %324 = vector.load %arg19[%c0_141, %c0_142, %c0_143] : memref<2x8x128xf32, #tpu.memory_space<vmem>>, vector<2x8x128xf32>
    tpu.vector_store %arg19[%c0_141, %c0_142, %c0_143], %323 {strides = array<i32>} : memref<2x8x128xf32, #tpu.memory_space<vmem>>, vector<2x8x128xf32>,
    %325 = vector.extract_strided_slice %323 {offsets = [0, 0, 0], sizes = [2, 1, 128], strides = [1, 1, 1]} : vector<2x8x128xf32> to vector<2x1x128xf32>
    %326 = vector.shape_cast %325 : vector<2x1x128xf32> to vector<2x128xf32>
    %327 = arith.truncf %326 : vector<2x128xf32> to vector<2x128xbf16>
    %c0_144 = arith.constant 0 : index
    %c0_145 = arith.constant 0 : index
    %328 = vector.load %arg17[%c0_144, %c0_145] : memref<128x128xbf16, #tpu.memory_space<vmem>>, vector<128x128xbf16>
    %cst_146 = arith.constant dense<0.000000e+00> : vector<2x128xf32>
    %329 = tpu.matmul %327, %328, %cst_146 {dimension_numbers = #tpu.dot_dimension_numbers<[1], [0], [0], [1], [0, 0, 1, 1], [], []>} : vector<2x128xbf16>, vector<128x128xbf16>, vector<2x128xf32> -> vector<2x128xf32>
    %c0_147 = arith.constant 0 : index
    %c0_148 = arith.constant 0 : index
    %330 = vector.load %arg18[%c0_147, %c0_148] : memref<1x128xf32, #tpu.memory_space<vmem>>, vector<1x128xf32>
    %331 = vector.broadcast %330 : vector<1x128xf32> to vector<2x128xf32>
    %332 = arith.addf %329, %331 : vector<2x128xf32>
    %333 = math.tanh %332 : vector<2x128xf32>
    %c0_149 = arith.constant 0 : index
    %c0_150 = arith.constant 0 : index
    %334 = vector.load %arg20[%c0_149, %c0_150] : memref<2x128xf32, #tpu.memory_space<vmem>>, vector<2x128xf32>
    tpu.vector_store %arg20[%c0_149, %c0_150], %333 {strides = array<i32>} : memref<2x128xf32, #tpu.memory_space<vmem>>, vector<2x128xf32>,
    return
  }
  func.func @transform_0(%arg0: i32) -> (i32, i32, i32) {
    %c0_i32 = arith.constant 0 : i32
    %c0_i32_0 = arith.constant 0 : i32
    %c0_i32_1 = arith.constant 0 : i32
    %c0_i32_2 = arith.constant 0 : i32
    return %c0_i32, %c0_i32_0, %c0_i32_1 : i32, i32, i32
  }
  func.func @transform_1(%arg0: i32) -> (i32, i32) {
    %c0_i32 = arith.constant 0 : i32
    %c0_i32_0 = arith.constant 0 : i32
    %c0_i32_1 = arith.constant 0 : i32
    return %c0_i32, %c0_i32_0 : i32, i32
  }
  func.func @transform_2(%arg0: i32) -> (i32, i32) {
    %c0_i32 = arith.constant 0 : i32
    %c0_i32_0 = arith.constant 0 : i32
    %c0_i32_1 = arith.constant 0 : i32
    return %c0_i32, %c0_i32_0 : i32, i32
  }
  func.func @transform_3(%arg0: i32) -> (i32, i32) {
    %c0_i32 = arith.constant 0 : i32
    %c0_i32_0 = arith.constant 0 : i32
    %c0_i32_1 = arith.constant 0 : i32
    return %c0_i32, %c0_i32_0 : i32, i32
  }
  func.func @transform_4(%arg0: i32) -> (i32, i32, i32) {
    %c0_i32 = arith.constant 0 : i32
    %c0_i32_0 = arith.constant 0 : i32
    %c0_i32_1 = arith.constant 0 : i32
    %c0_i32_2 = arith.constant 0 : i32
    return %c0_i32, %c0_i32_0, %c0_i32_1 : i32, i32, i32
  }
  func.func @transform_5(%arg0: i32) -> (i32, i32, i32) {
    %c0_i32 = arith.constant 0 : i32
    %c0_i32_0 = arith.constant 0 : i32
    %c0_i32_1 = arith.constant 0 : i32
    %c0_i32_2 = arith.constant 0 : i32
    return %c0_i32, %c0_i32_0, %c0_i32_1 : i32, i32, i32
  }
  func.func @transform_6(%arg0: i32) -> (i32, i32, i32) {
    %c0_i32 = arith.constant 0 : i32
    %c0_i32_0 = arith.constant 0 : i32
    %c0_i32_1 = arith.constant 0 : i32
    %c0_i32_2 = arith.constant 0 : i32
    return %c0_i32, %c0_i32_0, %c0_i32_1 : i32, i32, i32
  }
  func.func @transform_7(%arg0: i32) -> (i32, i32, i32) {
    %c0_i32 = arith.constant 0 : i32
    %c0_i32_0 = arith.constant 0 : i32
    %c0_i32_1 = arith.constant 0 : i32
    %c0_i32_2 = arith.constant 0 : i32
    return %c0_i32, %c0_i32_0, %c0_i32_1 : i32, i32, i32
  }
  func.func @transform_8(%arg0: i32) -> (i32, i32, i32) {
    %c0_i32 = arith.constant 0 : i32
    %c0_i32_0 = arith.constant 0 : i32
    %c0_i32_1 = arith.constant 0 : i32
    %c0_i32_2 = arith.constant 0 : i32
    return %c0_i32, %c0_i32_0, %c0_i32_1 : i32, i32, i32
  }
  func.func @transform_9(%arg0: i32) -> (i32, i32, i32) {
    %c0_i32 = arith.constant 0 : i32
    %c0_i32_0 = arith.constant 0 : i32
    %c0_i32_1 = arith.constant 0 : i32
    %c0_i32_2 = arith.constant 0 : i32
    return %c0_i32, %c0_i32_0, %c0_i32_1 : i32, i32, i32
  }
  func.func @transform_10(%arg0: i32) -> (i32, i32, i32) {
    %c0_i32 = arith.constant 0 : i32
    %c0_i32_0 = arith.constant 0 : i32
    %c0_i32_1 = arith.constant 0 : i32
    %c0_i32_2 = arith.constant 0 : i32
    return %c0_i32, %c0_i32_0, %c0_i32_1 : i32, i32, i32
  }
  func.func @transform_11(%arg0: i32) -> (i32, i32, i32) {
    %c0_i32 = arith.constant 0 : i32
    %c0_i32_0 = arith.constant 0 : i32
    %c0_i32_1 = arith.constant 0 : i32
    %c0_i32_2 = arith.constant 0 : i32
    return %c0_i32, %c0_i32_0, %c0_i32_1 : i32, i32, i32
  }
  func.func @transform_12(%arg0: i32) -> (i32, i32, i32) {
    %c0_i32 = arith.constant 0 : i32
    %c0_i32_0 = arith.constant 0 : i32
    %c0_i32_1 = arith.constant 0 : i32
    %c0_i32_2 = arith.constant 0 : i32
    return %c0_i32, %c0_i32_0, %c0_i32_1 : i32, i32, i32
  }
  func.func @transform_13(%arg0: i32) -> (i32, i32, i32) {
    %c0_i32 = arith.constant 0 : i32
    %c0_i32_0 = arith.constant 0 : i32
    %c0_i32_1 = arith.constant 0 : i32
    %c0_i32_2 = arith.constant 0 : i32
    return %c0_i32, %c0_i32_0, %c0_i32_1 : i32, i32, i32
  }
  func.func @transform_14(%arg0: i32) -> (i32, i32, i32) {
    %c0_i32 = arith.constant 0 : i32
    %c0_i32_0 = arith.constant 0 : i32
    %c0_i32_1 = arith.constant 0 : i32
    %c0_i32_2 = arith.constant 0 : i32
    return %c0_i32, %c0_i32_0, %c0_i32_1 : i32, i32, i32
  }
  func.func @transform_15(%arg0: i32) -> (i32, i32, i32) {
    %c0_i32 = arith.constant 0 : i32
    %c0_i32_0 = arith.constant 0 : i32
    %c0_i32_1 = arith.constant 0 : i32
    %c0_i32_2 = arith.constant 0 : i32
    return %c0_i32, %c0_i32_0, %c0_i32_1 : i32, i32, i32
  }
  func.func @transform_16(%arg0: i32) -> (i32, i32) {
    %c0_i32 = arith.constant 0 : i32
    %c0_i32_0 = arith.constant 0 : i32
    %c0_i32_1 = arith.constant 0 : i32
    return %c0_i32, %c0_i32_0 : i32, i32
  }
  func.func @transform_17(%arg0: i32) -> (i32, i32) {
    %c0_i32 = arith.constant 0 : i32
    %c0_i32_0 = arith.constant 0 : i32
    %c0_i32_1 = arith.constant 0 : i32
    return %c0_i32, %c0_i32_0 : i32, i32
  }
  func.func @transform_18(%arg0: i32) -> (i32, i32, i32) {
    %c0_i32 = arith.constant 0 : i32
    %c0_i32_0 = arith.constant 0 : i32
    %c0_i32_1 = arith.constant 0 : i32
    %c0_i32_2 = arith.constant 0 : i32
    return %c0_i32, %c0_i32_0, %c0_i32_1 : i32, i32, i32
  }
  func.func @transform_19(%arg0: i32) -> (i32, i32) {
    %c0_i32 = arith.constant 0 : i32
    %c0_i32_0 = arith.constant 0 : i32
    %c0_i32_1 = arith.constant 0 : i32
    return %c0_i32, %c0_i32_0 : i32, i32
  }
}

</mosaic_0001>

<llo_original>
// kernel: _bert_backbone.1
$region0: #{_bert_backbone.1}
  #allocation0 [shape = 'u32[]', space=smem, size = 0x4, offset = 0x4, fixed_abs, tag = 'smem constant byte address 0x4 - core index']
  #allocation1 [shape = 'u32[144,128]{1,0:T(1,128)}', space=vmem, size = 0x12000, scoped, tag = 'internal scratch']
  %s0 = inlined_call_operand.vmem [shape: f32[2,8,128], index: 0, kind: input, shape index: {}]
  %s1 = inlined_call_operand.vmem [shape: f32[16,16], index: 1, kind: input, shape index: {}]
  %s2 = inlined_call_operand.vmem [shape: f32[1,128], index: 2, kind: input, shape index: {}]
  %s3 = inlined_call_operand.hbm [shape: f32[1,128], index: 3, kind: input, shape index: {}]
  %s4 = inlined_call_operand.hbm [shape: bf16[2,128,768], index: 4, kind: input, shape index: {}]
  %s5 = inlined_call_operand.hbm [shape: f32[2,1,768], index: 5, kind: input, shape index: {}]
  %s6 = inlined_call_operand.vmem [shape: bf16[2,256,128], index: 6, kind: input, shape index: {}]
  %s7 = inlined_call_operand.vmem [shape: f32[2,1,128], index: 7, kind: input, shape index: {}]
  %s8 = inlined_call_operand.hbm [shape: f32[2,1,128], index: 8, kind: input, shape index: {}]
  %s9 = inlined_call_operand.hbm [shape: f32[2,1,128], index: 9, kind: input, shape index: {}]
  %s10 = inlined_call_operand.hbm [shape: bf16[2,128,512], index: 10, kind: input, shape index: {}]
  %s11 = inlined_call_operand.hbm [shape: f32[2,1,512], index: 11, kind: input, shape index: {}]
  %s12 = inlined_call_operand.hbm [shape: bf16[2,512,128], index: 12, kind: input, shape index: {}]
  %s13 = inlined_call_operand.hbm [shape: f32[2,1,128], index: 13, kind: input, shape index: {}]
  %s14 = inlined_call_operand.hbm [shape: f32[2,1,128], index: 14, kind: input, shape index: {}]
  %s15 = inlined_call_operand.hbm [shape: f32[2,1,128], index: 15, kind: input, shape index: {}]
  %s16 = inlined_call_operand.vmem [shape: bf16[128,128], index: 16, kind: input, shape index: {}]
  %s17 = inlined_call_operand.hbm [shape: f32[1,128], index: 17, kind: input, shape index: {}]
  %s18 = inlined_call_operand.hbm [shape: f32[2,8,128], index: 18, kind: output, shape index: {0}]
  %s19 = inlined_call_operand.hbm [shape: f32[2,128], index: 19, kind: output, shape index: {1}]
  %20 = xla_tuple %s18, %s19
  %s21 = sld [smem:[#allocation0]]
  $region138: #{_bert_backbone.1} parent=0
    _
  %s23 = ssub.s32 1, %s21
  %s24 = scalar_select 0, %s23, %s21
  $region1: #{_bert_backbone.1} parent=0
    #allocation2 [shape = 'u8[512]{0}', space=vmem, size = 0x400, scoped, tag = 'input window, operand 3, single buffered']
    #allocation3 [shape = 's32[1]{0}', space=sflag, size = 0x4, scoped, tag = 'scoped memory for _bert_backbone.1']
    #allocation4 [shape = 's32[1]{0}', space=sflag, size = 0x4, scoped, tag = 'scoped memory for _bert_backbone.1']
    #allocation5 [shape = 'u8[393216]{0}', space=vmem, size = 0x60000, scoped, tag = 'input window, operand 4, single buffered']
    #allocation6 [shape = 's32[1]{0}', space=sflag, size = 0x4, scoped, tag = 'scoped memory for _bert_backbone.1']
    #allocation7 [shape = 'u8[6144]{0}', space=vmem, size = 0x1800, scoped, tag = 'input window, operand 5, single buffered']
    #allocation8 [shape = 'u8[1024]{0}', space=vmem, size = 0x400, scoped, tag = 'input window, operand 8, single buffered']
    #allocation9 [shape = 's32[1]{0}', space=sflag, size = 0x4, scoped, tag = 'scoped memory for _bert_backbone.1']
    #allocation10 [shape = 'u8[1024]{0}', space=vmem, size = 0x400, scoped, tag = 'input window, operand 9, single buffered']
    #allocation11 [shape = 'u8[262144]{0}', space=vmem, size = 0x40000, scoped, tag = 'input window, operand 10, single buffered']
    #allocation12 [shape = 's32[1]{0}', space=sflag, size = 0x4, scoped, tag = 'scoped memory for _bert_backbone.1']
    #allocation13 [shape = 'u8[4096]{0}', space=vmem, size = 0x1000, scoped, tag = 'input window, operand 11, single buffered']
    #allocation14 [shape = 'u8[262144]{0}', space=vmem, size = 0x40000, scoped, tag = 'input window, operand 12, single buffered']
    #allocation15 [shape = 's32[1]{0}', space=sflag, size = 0x4, scoped, tag = 'scoped memory for _bert_backbone.1']
    #allocation16 [shape = 'u8[1024]{0}', space=vmem, size = 0x400, scoped, tag = 'input window, operand 13, single buffered']
    #allocation17 [shape = 'u8[1024]{0}', space=vmem, size = 0x400, scoped, tag = 'input window, operand 14, single buffered']
    #allocation18 [shape = 's32[1]{0}', space=sflag, size = 0x4, scoped, tag = 'scoped memory for _bert_backbone.1']
    #allocation19 [shape = 'u8[1024]{0}', space=vmem, size = 0x400, scoped, tag = 'input window, operand 15, single buffered']
    #allocation20 [shape = 'u8[512]{0}', space=vmem, size = 0x400, scoped, tag = 'input window, operand 17, single buffered']
    #allocation21 [shape = 's32[1]{0}', space=sflag, size = 0x4, scoped, tag = 'scoped memory for _bert_backbone.1']
    #allocation22 [shape = 'u8[8192]{0}', space=vmem, size = 0x2000, scoped, tag = 'output window, operand 0, single buffered']
    #allocation23 [shape = 'u8[1024]{0}', space=vmem, size = 0x400, scoped, tag = 'output window, operand 1, single buffered']
    #allocation24 [shape = 's32[1]{0}', space=sflag, size = 0x4, scoped, tag = 'scoped memory for _bert_backbone.1']
    %25 = vsyncpa [#allocation3], 0
    %26 = vsyncpa [#allocation6], 0
    %27 = vsyncpa [#allocation9], 0
    %28 = vsyncpa [#allocation12], 0
    %29 = vsyncpa [#allocation15], 0
    %30 = vsyncpa [#allocation18], 0
    %31 = vsyncpa [#allocation21], 0
    %32 = vsyncpa [#allocation4], 0
    %33 = vsyncpa [#allocation24], 0
    // Predicated region
    $region2: #{_bert_backbone.1} parent=1 // pred_check
      _
    $region3: #{_bert_backbone.1} parent=1 // pred_check_branch
      %35 = sbr.rel (0) target = $region5
    $region4: #{_bert_backbone.1} parent=1 // pred_region
      _
    $region5: #{_bert_backbone.1} parent=1 // pred_fallthru
      _
    // Predicated region
    $region6: #{_bert_backbone.1} parent=1 // pred_check
      _
    $region7: #{_bert_backbone.1} parent=1 // pred_check_branch
      %37 = sbr.rel (0) target = $region9
    $region8: #{_bert_backbone.1} parent=1 // pred_region
      _
    $region9: #{_bert_backbone.1} parent=1 // pred_fallthru
      _
    // Predicated region
    $region10: #{_bert_backbone.1} parent=1 // pred_check
      _
    $region11: #{_bert_backbone.1} parent=1 // pred_check_branch
      %39 = sbr.rel (0) target = $region13
    $region12: #{_bert_backbone.1} parent=1 // pred_region
      _
    $region13: #{_bert_backbone.1} parent=1 // pred_fallthru
      _
    // Predicated region
    $region14: #{_bert_backbone.1} parent=1 // pred_check
      _
    $region15: #{_bert_backbone.1} parent=1 // pred_check_branch
      %41 = sbr.rel (0) target = $region17
    $region16: #{_bert_backbone.1} parent=1 // pred_region
      %s43 = ssub.s32 16, 16
      %44 = vsyncadd [#allocation3], %s43
      %s46 = sshll.u32 [#allocation2], 4
      %s47 = int_to_ptr.vmem [resolvable:$true] %s46
      %49 = dma.hbm_to_vmem [thread:$0]  %s3, 16, %s47, [#allocation3]
    $region17: #{_bert_backbone.1} parent=1 // pred_fallthru
      _
    // Predicated region
    $region18: #{_bert_backbone.1} parent=1 // pred_check
      _
    $region19: #{_bert_backbone.1} parent=1 // pred_check_branch
      %51 = sbr.rel (0) target = $region21
    $region20: #{_bert_backbone.1} parent=1 // pred_region
      %s53 = ssub.s32 12288, 12288
      %54 = vsyncadd [#allocation6], %s53
      %s55 = sshll.u32 [#allocation5], 4
      %s56 = int_to_ptr.vmem [resolvable:$true] %s55
      %61 = dma.hbm_to_vmem [thread:$0]  %s4, 12288, %s56, [#allocation6], 384, 384, 24
    $region21: #{_bert_backbone.1} parent=1 // pred_fallthru
      _
    // Predicated region
    $region22: #{_bert_backbone.1} parent=1 // pred_check
      _
    $region23: #{_bert_backbone.1} parent=1 // pred_check_branch
      %63 = sbr.rel (0) target = $region25
    $region24: #{_bert_backbone.1} parent=1 // pred_region
      %s65 = ssub.s32 192, 192
      %66 = vsyncadd [#allocation6], %s65
      %s67 = sshll.u32 [#allocation7], 4
      %s68 = int_to_ptr.vmem [resolvable:$true] %s67
      %73 = dma.hbm_to_vmem [thread:$0]  %s5, 192, %s68, [#allocation6], 96, 96, 6
    $region25: #{_bert_backbone.1} parent=1 // pred_fallthru
      _
    // Predicated region
    $region26: #{_bert_backbone.1} parent=1 // pred_check
      _
    $region27: #{_bert_backbone.1} parent=1 // pred_check_branch
      %75 = sbr.rel (0) target = $region29
    $region28: #{_bert_backbone.1} parent=1 // pred_region
      _
    $region29: #{_bert_backbone.1} parent=1 // pred_fallthru
      _
    // Predicated region
    $region30: #{_bert_backbone.1} parent=1 // pred_check
      _
    $region31: #{_bert_backbone.1} parent=1 // pred_check_branch
      %77 = sbr.rel (0) target = $region33
    $region32: #{_bert_backbone.1} parent=1 // pred_region
      _
    $region33: #{_bert_backbone.1} parent=1 // pred_fallthru
      _
    // Predicated region
    $region34: #{_bert_backbone.1} parent=1 // pred_check
      _
    $region35: #{_bert_backbone.1} parent=1 // pred_check_branch
      %79 = sbr.rel (0) target = $region37
    $region36: #{_bert_backbone.1} parent=1 // pred_region
      %s81 = ssub.s32 32, 32
      %82 = vsyncadd [#allocation9], %s81
      %s83 = sshll.u32 [#allocation8], 4
      %s84 = int_to_ptr.vmem [resolvable:$true] %s83
      %89 = dma.hbm_to_vmem [thread:$0]  %s8, 32, %s84, [#allocation9], 16, 16, 1
    $region37: #{_bert_backbone.1} parent=1 // pred_fallthru
      _
    // Predicated region
    $region38: #{_bert_backbone.1} parent=1 // pred_check
      _
    $region39: #{_bert_backbone.1} parent=1 // pred_check_branch
      %91 = sbr.rel (0) target = $region41
    $region40: #{_bert_backbone.1} parent=1 // pred_region
      %s93 = ssub.s32 32, 32
      %94 = vsyncadd [#allocation9], %s93
      %s95 = sshll.u32 [#allocation10], 4
      %s96 = int_to_ptr.vmem [resolvable:$true] %s95
      %101 = dma.hbm_to_vmem [thread:$0]  %s9, 32, %s96, [#allocation9], 16, 16, 1
    $region41: #{_bert_backbone.1} parent=1 // pred_fallthru
      _
    // Predicated region
    $region42: #{_bert_backbone.1} parent=1 // pred_check
      _
    $region43: #{_bert_backbone.1} parent=1 // pred_check_branch
      %103 = sbr.rel (0) target = $region45
    $region44: #{_bert_backbone.1} parent=1 // pred_region
      %s105 = ssub.s32 8192, 8192
      %106 = vsyncadd [#allocation12], %s105
      %s107 = sshll.u32 [#allocation11], 4
      %s108 = int_to_ptr.vmem [resolvable:$true] %s107
      %113 = dma.hbm_to_vmem [thread:$0]  %s10, 8192, %s108, [#allocation12], 256, 256, 16
    $region45: #{_bert_backbone.1} parent=1 // pred_fallthru
      _
    // Predicated region
    $region46: #{_bert_backbone.1} parent=1 // pred_check
      _
    $region47: #{_bert_backbone.1} parent=1 // pred_check_branch
      %115 = sbr.rel (0) target = $region49
    $region48: #{_bert_backbone.1} parent=1 // pred_region
      %s117 = ssub.s32 128, 128
      %118 = vsyncadd [#allocation12], %s117
      %s119 = sshll.u32 [#allocation13], 4
      %s120 = int_to_ptr.vmem [resolvable:$true] %s119
      %125 = dma.hbm_to_vmem [thread:$0]  %s11, 128, %s120, [#allocation12], 64, 64, 4
    $region49: #{_bert_backbone.1} parent=1 // pred_fallthru
      _
    // Predicated region
    $region50: #{_bert_backbone.1} parent=1 // pred_check
      _
    $region51: #{_bert_backbone.1} parent=1 // pred_check_branch
      %127 = sbr.rel (0) target = $region53
    $region52: #{_bert_backbone.1} parent=1 // pred_region
      %s129 = ssub.s32 8192, 8192
      %130 = vsyncadd [#allocation15], %s129
      %s131 = sshll.u32 [#allocation14], 4
      %s132 = int_to_ptr.vmem [resolvable:$true] %s131
      %137 = dma.hbm_to_vmem [thread:$0]  %s12, 8192, %s132, [#allocation15], 64, 64, 4
    $region53: #{_bert_backbone.1} parent=1 // pred_fallthru
      _
    // Predicated region
    $region54: #{_bert_backbone.1} parent=1 // pred_check
      _
    $region55: #{_bert_backbone.1} parent=1 // pred_check_branch
      %139 = sbr.rel (0) target = $region57
    $region56: #{_bert_backbone.1} parent=1 // pred_region
      %s141 = ssub.s32 32, 32
      %142 = vsyncadd [#allocation15], %s141
      %s143 = sshll.u32 [#allocation16], 4
      %s144 = int_to_ptr.vmem [resolvable:$true] %s143
      %149 = dma.hbm_to_vmem [thread:$0]  %s13, 32, %s144, [#allocation15], 16, 16, 1
    $region57: #{_bert_backbone.1} parent=1 // pred_fallthru
      _
    // Predicated region
    $region58: #{_bert_backbone.1} parent=1 // pred_check
      _
    $region59: #{_bert_backbone.1} parent=1 // pred_check_branch
      %151 = sbr.rel (0) target = $region61
    $region60: #{_bert_backbone.1} parent=1 // pred_region
      %s153 = ssub.s32 32, 32
      %154 = vsyncadd [#allocation18], %s153
      %s155 = sshll.u32 [#allocation17], 4
      %s156 = int_to_ptr.vmem [resolvable:$true] %s155
      %161 = dma.hbm_to_vmem [thread:$0]  %s14, 32, %s156, [#allocation18], 16, 16, 1
    $region61: #{_bert_backbone.1} parent=1 // pred_fallthru
      _
    // Predicated region
    $region62: #{_bert_backbone.1} parent=1 // pred_check
      _
    $region63: #{_bert_backbone.1} parent=1 // pred_check_branch
      %163 = sbr.rel (0) target = $region65
    $region64: #{_bert_backbone.1} parent=1 // pred_region
      %s165 = ssub.s32 32, 32
      %166 = vsyncadd [#allocation18], %s165
      %s167 = sshll.u32 [#allocation19], 4
      %s168 = int_to_ptr.vmem [resolvable:$true] %s167
      %173 = dma.hbm_to_vmem [thread:$0]  %s15, 32, %s168, [#allocation18], 16, 16, 1
    $region65: #{_bert_backbone.1} parent=1 // pred_fallthru
      _
    // Predicated region
    $region66: #{_bert_backbone.1} parent=1 // pred_check
      _
    $region67: #{_bert_backbone.1} parent=1 // pred_check_branch
      %175 = sbr.rel (0) target = $region69
    $region68: #{_bert_backbone.1} parent=1 // pred_region
      _
    $region69: #{_bert_backbone.1} parent=1 // pred_fallthru
      _
    // Predicated region
    $region70: #{_bert_backbone.1} parent=1 // pred_check
      _
    $region71: #{_bert_backbone.1} parent=1 // pred_check_branch
      %177 = sbr.rel (0) target = $region73
    $region72: #{_bert_backbone.1} parent=1 // pred_region
      %s179 = ssub.s32 16, 16
      %180 = vsyncadd [#allocation21], %s179
      %s182 = sshll.u32 [#allocation20], 4
      %s183 = int_to_ptr.vmem [resolvable:$true] %s182
      %185 = dma.hbm_to_vmem [thread:$0]  %s17, 16, %s183, [#allocation21]
    $region73: #{_bert_backbone.1} parent=1 // pred_fallthru
      _
    // Predicated region
    $region74: #{_bert_backbone.1} parent=1 // pred_check
      _
    $region75: #{_bert_backbone.1} parent=1 // pred_check_branch
      %187 = sbr.rel (0) target = $region77
    $region76: #{_bert_backbone.1} parent=1 // pred_region
      %188 = dma.done [#allocation3], 16
    $region77: #{_bert_backbone.1} parent=1 // pred_fallthru
      _
    // Predicated region
    $region78: #{_bert_backbone.1} parent=1 // pred_check
      _
    $region79: #{_bert_backbone.1} parent=1 // pred_check_branch
      %190 = sbr.rel (0) target = $region81
    $region80: #{_bert_backbone.1} parent=1 // pred_region
      %191 = dma.done [#allocation6], 12288
    $region81: #{_bert_backbone.1} parent=1 // pred_fallthru
      _
    // Predicated region
    $region82: #{_bert_backbone.1} parent=1 // pred_check
      _
    $region83: #{_bert_backbone.1} parent=1 // pred_check_branch
      %193 = sbr.rel (0) target = $region85
    $region84: #{_bert_backbone.1} parent=1 // pred_region
      %194 = dma.done [#allocation6], 192
    $region85: #{_bert_backbone.1} parent=1 // pred_fallthru
      _
    // Predicated region
    $region86: #{_bert_backbone.1} parent=1 // pred_check
      _
    $region87: #{_bert_backbone.1} parent=1 // pred_check_branch
      %196 = sbr.rel (0) target = $region89
    $region88: #{_bert_backbone.1} parent=1 // pred_region
      %197 = dma.done [#allocation9], 32
    $region89: #{_bert_backbone.1} parent=1 // pred_fallthru
      _
    // Predicated region
    $region90: #{_bert_backbone.1} parent=1 // pred_check
      _
    $region91: #{_bert_backbone.1} parent=1 // pred_check_branch
      %199 = sbr.rel (0) target = $region93
    $region92: #{_bert_backbone.1} parent=1 // pred_region
      %200 = dma.done [#allocation9], 32
    $region93: #{_bert_backbone.1} parent=1 // pred_fallthru
      _
    // Predicated region
    $region94: #{_bert_backbone.1} parent=1 // pred_check
      _
    $region95: #{_bert_backbone.1} parent=1 // pred_check_branch
      %202 = sbr.rel (0) target = $region97
    $region96: #{_bert_backbone.1} parent=1 // pred_region
      %203 = dma.done [#allocation12], 8192
    $region97: #{_bert_backbone.1} parent=1 // pred_fallthru
      _
    // Predicated region
    $region98: #{_bert_backbone.1} parent=1 // pred_check
      _
    $region99: #{_bert_backbone.1} parent=1 // pred_check_branch
      %205 = sbr.rel (0) target = $region101
    $region100: #{_bert_backbone.1} parent=1 // pred_region
      %206 = dma.done [#allocation12], 128
    $region101: #{_bert_backbone.1} parent=1 // pred_fallthru
      _
    // Predicated region
    $region102: #{_bert_backbone.1} parent=1 // pred_check
      _
    $region103: #{_bert_backbone.1} parent=1 // pred_check_branch
      %208 = sbr.rel (0) target = $region105
    $region104: #{_bert_backbone.1} parent=1 // pred_region
      %209 = dma.done [#allocation15], 8192
    $region105: #{_bert_backbone.1} parent=1 // pred_fallthru
      _
    // Predicated region
    $region106: #{_bert_backbone.1} parent=1 // pred_check
      _
    $region107: #{_bert_backbone.1} parent=1 // pred_check_branch
      %211 = sbr.rel (0) target = $region109
    $region108: #{_bert_backbone.1} parent=1 // pred_region
      %212 = dma.done [#allocation15], 32
    $region109: #{_bert_backbone.1} parent=1 // pred_fallthru
      _
    // Predicated region
    $region110: #{_bert_backbone.1} parent=1 // pred_check
      _
    $region111: #{_bert_backbone.1} parent=1 // pred_check_branch
      %214 = sbr.rel (0) target = $region113
    $region112: #{_bert_backbone.1} parent=1 // pred_region
      %215 = dma.done [#allocation18], 32
    $region113: #{_bert_backbone.1} parent=1 // pred_fallthru
      _
    // Predicated region
    $region114: #{_bert_backbone.1} parent=1 // pred_check
      _
    $region115: #{_bert_backbone.1} parent=1 // pred_check_branch
      %217 = sbr.rel (0) target = $region117
    $region116: #{_bert_backbone.1} parent=1 // pred_region
      %218 = dma.done [#allocation18], 32
    $region117: #{_bert_backbone.1} parent=1 // pred_fallthru
      _
    // Predicated region
    $region118: #{_bert_backbone.1} parent=1 // pred_check
      _
    $region119: #{_bert_backbone.1} parent=1 // pred_check_branch
      %220 = sbr.rel (0) target = $region121
    $region120: #{_bert_backbone.1} parent=1 // pred_region
      %221 = dma.done [#allocation21], 16
    $region121: #{_bert_backbone.1} parent=1 // pred_fallthru
      _
    %v223 = vld [vmem:[%s0] sm:$0xff]
    %v224 = vld [vmem:[%s0 + $0x8] sm:$0xff]
    %v225 = vld [vmem:[%s2] sm:$0x1]
    %v226 = vld [vmem:[#allocation2] sm:$0x1]
    %227 = vadd.xlane.f32.xlu0 %v223
    %v228 = vpop.xlane.xlu0 %227
    %229 = vadd.xlane.f32.xlu0 %v224
    %v230 = vpop.xlane.xlu0 %229
    %v231 = vrcp.pop 128.0
    %v232 = vmul.f32 %v228, %v231
    %v233 = vmul.f32 %v230, %v231
    %v234 = vsub.f32 %v223, %v232
    %v235 = vsub.f32 %v224, %v233
    %v236 = vmul.f32 %v234, %v234
    %v237 = vmul.f32 %v235, %v235
    %238 = vadd.xlane.f32.xlu0 %v236
    %v239 = vpop.xlane.xlu0 %238
    %240 = vadd.xlane.f32.xlu0 %v237
    %v241 = vpop.xlane.xlu0 %240
    %v242 = vmul.f32 %v239, %v231
    %v243 = vmul.f32 %v241, %v231
    %v244 = vadd.f32 %v242, 1e-12
    %v245 = vadd.f32 %v243, 1e-12
    %v246 = vrsqrt.pop %v244
    %v247 = vrsqrt.pop %v245
    %v248 = vmul.f32 %v234, %v246
    %v249 = vmul.f32 %v235, %v247
    %v251 = vlaneseq
    %v252 = vshrl.u32 %v251, 7
    %v253 = vsub.s32 0, %v252
    %v254 = vrot.slane %v225, %v253
    %v256 = vmul.f32 %v248, %v254
    %v257 = vmul.f32 %v249, %v254
    %v259 = vlaneseq
    %v260 = vshrl.u32 %v259, 7
    %v261 = vsub.s32 0, %v260
    %v262 = vrot.slane %v226, %v261
    %v264 = vadd.f32 %v256, %v262
    %v265 = vadd.f32 %v257, %v262
    %v266 = vld [vmem:[%s1] sm:$0xff]
    %v267 = vld [vmem:[%s1 + $0x8] sm:$0xff]
    %v268 = vld [vmem:[#allocation5] sm:$0xff]
    %v269 = vld [vmem:[#allocation5 + $0x8] sm:$0xff]
    %v270 = vld [vmem:[#allocation5 + $0x10] sm:$0xff]
    %v271 = vld [vmem:[#allocation5 + $0x18] sm:$0xff]
    %v272 = vld [vmem:[#allocation5 + $0x20] sm:$0xff]
    %v273 = vld [vmem:[#allocation5 + $0x28] sm:$0xff]
    %v274 = vld [vmem:[#allocation5 + $0x30] sm:$0xff]
    %v275 = vld [vmem:[#allocation5 + $0x38] sm:$0xff]
    %v276 = vld [vmem:[#allocation5 + $0x40] sm:$0xff]
    %v277 = vld [vmem:[#allocation5 + $0x48] sm:$0xff]
    %v278 = vld [vmem:[#allocation5 + $0x50] sm:$0xff]
    %v279 = vld [vmem:[#allocation5 + $0x58] sm:$0xff]
    %v280 = vld [vmem:[#allocation5 + $0x60] sm:$0xff]
    %v281 = vld [vmem:[#allocation5 + $0x68] sm:$0xff]
    %v282 = vld [vmem:[#allocation5 + $0x70] sm:$0xff]
    %v283 = vld [vmem:[#allocation5 + $0x78] sm:$0xff]
    %v284 = vld [vmem:[#allocation5 + $0x80] sm:$0xff]
    %v285 = vld [vmem:[#allocation5 + $0x88] sm:$0xff]
    %v286 = vld [vmem:[#allocation5 + $0x90] sm:$0xff]
    %v287 = vld [vmem:[#allocation5 + $0x98] sm:$0xff]
    %v288 = vld [vmem:[#allocation5 + $0xa0] sm:$0xff]
    %v289 = vld [vmem:[#allocation5 + $0xa8] sm:$0xff]
    %v290 = vld [vmem:[#allocation5 + $0xb0] sm:$0xff]
    %v291 = vld [vmem:[#allocation5 + $0xb8] sm:$0xff]
    %v292 = vld [vmem:[#allocation5 + $0xc0] sm:$0xff]
    %v293 = vld [vmem:[#allocation5 + $0xc8] sm:$0xff]
    %v294 = vld [vmem:[#allocation5 + $0xd0] sm:$0xff]
    %v295 = vld [vmem:[#allocation5 + $0xd8] sm:$0xff]
    %v296 = vld [vmem:[#allocation5 + $0xe0] sm:$0xff]
    %v297 = vld [vmem:[#allocation5 + $0xe8] sm:$0xff]
    %v298 = vld [vmem:[#allocation5 + $0xf0] sm:$0xff]
    %v299 = vld [vmem:[#allocation5 + $0xf8] sm:$0xff]
    %v300 = vld [vmem:[#allocation5 + $0x100] sm:$0xff]
    %v301 = vld [vmem:[#allocation5 + $0x108] sm:$0xff]
    %v302 = vld [vmem:[#allocation5 + $0x110] sm:$0xff]
    %v303 = vld [vmem:[#allocation5 + $0x118] sm:$0xff]
    %v304 = vld [vmem:[#allocation5 + $0x120] sm:$0xff]
    %v305 = vld [vmem:[#allocation5 + $0x128] sm:$0xff]
    %v306 = vld [vmem:[#allocation5 + $0x130] sm:$0xff]
    %v307 = vld [vmem:[#allocation5 + $0x138] sm:$0xff]
    %v308 = vld [vmem:[#allocation5 + $0x140] sm:$0xff]
    %v309 = vld [vmem:[#allocation5 + $0x148] sm:$0xff]
    %v310 = vld [vmem:[#allocation5 + $0x150] sm:$0xff]
    %v311 = vld [vmem:[#allocation5 + $0x158] sm:$0xff]
    %v312 = vld [vmem:[#allocation5 + $0x160] sm:$0xff]
    %v313 = vld [vmem:[#allocation5 + $0x168] sm:$0xff]
    %v314 = vld [vmem:[#allocation5 + $0x170] sm:$0xff]
    %v315 = vld [vmem:[#allocation5 + $0x178] sm:$0xff]
    %v316 = vpack.c.bf16 %v265, %v264
    %v317 = vld [vmem:[#allocation7] sm:$0x3f]
    %v319 = vlaneseq
    %v320 = vshrl.u32 %v319, 7
    %v321 = vsub.s32 0, %v320
    %v322 = vrot.slane %v317, %v321
    %v323 = vlaneseq
    %v324 = vshrl.u32 %v323, 7
    %v325 = vsub.s32 1, %v324
    %v326 = vrot.slane %v317, %v325
    %v327 = vlaneseq
    %v328 = vshrl.u32 %v327, 7
    %v329 = vsub.s32 2, %v328
    %v330 = vrot.slane %v317, %v329
    %v331 = vlaneseq
    %v332 = vshrl.u32 %v331, 7
    %v333 = vsub.s32 3, %v332
    %v334 = vrot.slane %v317, %v333
    %v335 = vlaneseq
    %v336 = vshrl.u32 %v335, 7
    %v337 = vsub.s32 4, %v336
    %v338 = vrot.slane %v317, %v337
    %v339 = vlaneseq
    %v340 = vshrl.u32 %v339, 7
    %v341 = vsub.s32 5, %v340
    %v342 = vrot.slane %v317, %v341
    %v397 = vunpack.c.l.b16 %v268
    %v398 = vunpack.c.h.b16 %v268
    %v399 = vunpack.c.l.b16 %v269
    %v400 = vunpack.c.h.b16 %v269
    %v401 = vunpack.c.l.b16 %v270
    %v402 = vunpack.c.h.b16 %v270
    %v403 = vunpack.c.l.b16 %v271
    %v404 = vunpack.c.h.b16 %v271
    %v405 = vunpack.c.l.b16 %v272
    %v406 = vunpack.c.h.b16 %v272
    %v407 = vunpack.c.l.b16 %v273
    %v408 = vunpack.c.h.b16 %v273
    %v409 = vunpack.c.l.b16 %v274
    %v410 = vunpack.c.h.b16 %v274
    %v411 = vunpack.c.l.b16 %v275
    %v412 = vunpack.c.h.b16 %v275
    %v413 = vunpack.c.l.b16 %v276
    %v414 = vunpack.c.h.b16 %v276
    %v415 = vunpack.c.l.b16 %v277
    %v416 = vunpack.c.h.b16 %v277
    %v417 = vunpack.c.l.b16 %v278
    %v418 = vunpack.c.h.b16 %v278
    %v419 = vunpack.c.l.b16 %v279
    %v420 = vunpack.c.h.b16 %v279
    %v421 = vunpack.c.l.b16 %v280
    %v422 = vunpack.c.h.b16 %v280
    %v423 = vunpack.c.l.b16 %v281
    %v424 = vunpack.c.h.b16 %v281
    %v425 = vunpack.c.l.b16 %v282
    %v426 = vunpack.c.h.b16 %v282
    %v427 = vunpack.c.l.b16 %v283
    %v428 = vunpack.c.h.b16 %v283
    %v429 = vunpack.c.l.b16 %v284
    %v430 = vunpack.c.h.b16 %v284
    %v431 = vunpack.c.l.b16 %v285
    %v432 = vunpack.c.h.b16 %v285
    %v433 = vunpack.c.l.b16 %v286
    %v434 = vunpack.c.h.b16 %v286
    %v435 = vunpack.c.l.b16 %v287
    %v436 = vunpack.c.h.b16 %v287
    %v437 = vunpack.c.l.b16 %v288
    %v438 = vunpack.c.h.b16 %v288
    %v439 = vunpack.c.l.b16 %v289
    %v440 = vunpack.c.h.b16 %v289
    %v441 = vunpack.c.l.b16 %v290
    %v442 = vunpack.c.h.b16 %v290
    %v443 = vunpack.c.l.b16 %v291
    %v444 = vunpack.c.h.b16 %v291
    %v445 = vunpack.c.l.b16 %v292
    %v446 = vunpack.c.h.b16 %v292
    %v447 = vunpack.c.l.b16 %v293
    %v448 = vunpack.c.h.b16 %v293
    %v449 = vunpack.c.l.b16 %v294
    %v450 = vunpack.c.h.b16 %v294
    %v451 = vunpack.c.l.b16 %v295
    %v452 = vunpack.c.h.b16 %v295
    %v453 = vunpack.c.l.b16 %v296
    %v454 = vunpack.c.h.b16 %v296
    %v455 = vunpack.c.l.b16 %v297
    %v456 = vunpack.c.h.b16 %v297
    %v457 = vunpack.c.l.b16 %v298
    %v458 = vunpack.c.h.b16 %v298
    %v459 = vunpack.c.l.b16 %v299
    %v460 = vunpack.c.h.b16 %v299
    %v461 = vunpack.c.l.b16 %v300
    %v462 = vunpack.c.h.b16 %v300
    %v463 = vunpack.c.l.b16 %v301
    %v464 = vunpack.c.h.b16 %v301
    %v465 = vunpack.c.l.b16 %v302
    %v466 = vunpack.c.h.b16 %v302
    %v467 = vunpack.c.l.b16 %v303
    %v468 = vunpack.c.h.b16 %v303
    %v469 = vunpack.c.l.b16 %v304
    %v470 = vunpack.c.h.b16 %v304
    %v471 = vunpack.c.l.b16 %v305
    %v472 = vunpack.c.h.b16 %v305
    %v473 = vunpack.c.l.b16 %v306
    %v474 = vunpack.c.h.b16 %v306
    %v475 = vunpack.c.l.b16 %v307
    %v476 = vunpack.c.h.b16 %v307
    %v477 = vunpack.c.l.b16 %v308
    %v478 = vunpack.c.h.b16 %v308
    %v479 = vunpack.c.l.b16 %v309
    %v480 = vunpack.c.h.b16 %v309
    %v481 = vunpack.c.l.b16 %v310
    %v482 = vunpack.c.h.b16 %v310
    %v483 = vunpack.c.l.b16 %v311
    %v484 = vunpack.c.h.b16 %v311
    %v485 = vunpack.c.l.b16 %v312
    %v486 = vunpack.c.h.b16 %v312
    %v487 = vunpack.c.l.b16 %v313
    %v488 = vunpack.c.h.b16 %v313
    %v489 = vunpack.c.l.b16 %v314
    %v490 = vunpack.c.h.b16 %v314
    %v491 = vunpack.c.l.b16 %v315
    %v492 = vunpack.c.h.b16 %v315
    %v493 = vpack.c.b16 %v403, %v397
    %v494 = vpack.c.b16 %v404, %v398
    %v495 = vpack.c.b16 %v405, %v399
    %v496 = vpack.c.b16 %v406, %v400
    %v497 = vpack.c.b16 %v407, %v401
    %v498 = vpack.c.b16 %v408, %v402
    %v499 = vpack.c.b16 %v415, %v409
    %v500 = vpack.c.b16 %v416, %v410
    %v501 = vpack.c.b16 %v417, %v411
    %v502 = vpack.c.b16 %v418, %v412
    %v503 = vpack.c.b16 %v419, %v413
    %v504 = vpack.c.b16 %v420, %v414
    %v505 = vpack.c.b16 %v427, %v421
    %v506 = vpack.c.b16 %v428, %v422
    %v507 = vpack.c.b16 %v429, %v423
    %v508 = vpack.c.b16 %v430, %v424
    %v509 = vpack.c.b16 %v431, %v425
    %v510 = vpack.c.b16 %v432, %v426
    %v511 = vpack.c.b16 %v439, %v433
    %v512 = vpack.c.b16 %v440, %v434
    %v513 = vpack.c.b16 %v441, %v435
    %v514 = vpack.c.b16 %v442, %v436
    %v515 = vpack.c.b16 %v443, %v437
    %v516 = vpack.c.b16 %v444, %v438
    %v517 = vpack.c.b16 %v451, %v445
    %v518 = vpack.c.b16 %v452, %v446
    %v519 = vpack.c.b16 %v453, %v447
    %v520 = vpack.c.b16 %v454, %v448
    %v521 = vpack.c.b16 %v455, %v449
    %v522 = vpack.c.b16 %v456, %v450
    %v523 = vpack.c.b16 %v463, %v457
    %v524 = vpack.c.b16 %v464, %v458
    %v525 = vpack.c.b16 %v465, %v459
    %v526 = vpack.c.b16 %v466, %v460
    %v527 = vpack.c.b16 %v467, %v461
    %v528 = vpack.c.b16 %v468, %v462
    %v529 = vpack.c.b16 %v475, %v469
    %v530 = vpack.c.b16 %v476, %v470
    %v531 = vpack.c.b16 %v477, %v471
    %v532 = vpack.c.b16 %v478, %v472
    %v533 = vpack.c.b16 %v479, %v473
    %v534 = vpack.c.b16 %v480, %v474
    %v535 = vpack.c.b16 %v487, %v481
    %v536 = vpack.c.b16 %v488, %v482
    %v537 = vpack.c.b16 %v489, %v483
    %v538 = vpack.c.b16 %v490, %v484
    %v539 = vpack.c.b16 %v491, %v485
    %v540 = vpack.c.b16 %v492, %v486
    %589 = vmatprep.subr.bf16.mxu0 %v494
    %590 = vmatpush1.bf16.msra.mxu0 %v493
    %591 = vmatprep.subr.bf16.mxu0 %v500
    %592 = vmatpush1.bf16.msra.mxu0 %v499
    %593 = vmatprep.subr.bf16.mxu0 %v506
    %594 = vmatpush1.bf16.msra.mxu0 %v505
    %595 = vmatprep.subr.bf16.mxu0 %v512
    %596 = vmatpush1.bf16.msra.mxu0 %v511
    %597 = vmatprep.subr.bf16.mxu0 %v518
    %598 = vmatpush1.bf16.msra.mxu0 %v517
    %599 = vmatprep.subr.bf16.mxu0 %v524
    %600 = vmatpush1.bf16.msra.mxu0 %v523
    %601 = vmatprep.subr.bf16.mxu0 %v530
    %602 = vmatpush1.bf16.msra.mxu0 %v529
    %603 = vmatprep.subr.bf16.mxu0 %v536
    %604 = vmatpush1.bf16.msra.mxu0 %v535
    %605 = vmatprep.subr.bf16.mxu0 0
    %606 = vmatpush1.bf16.msra.mxu0 0
    %607 = vmatprep.subr.bf16.mxu0 0
    %608 = vmatpush1.bf16.msra.mxu0 0
    %609 = vmatprep.subr.bf16.mxu0 0
    %610 = vmatpush1.bf16.msra.mxu0 0
    %611 = vmatprep.subr.bf16.mxu0 0
    %612 = vmatpush1.bf16.msra.mxu0 0
    %613 = vmatprep.subr.bf16.mxu0 0
    %614 = vmatpush1.bf16.msra.mxu0 0
    %615 = vmatprep.subr.bf16.mxu0 0
    %616 = vmatpush1.bf16.msra.mxu0 0
    %617 = vmatprep.subr.bf16.mxu0 0
    %618 = vmatpush1.bf16.msra.mxu0 0
    %619 = vmatprep.subr.bf16.mxu0 0
    %620 = vmatpush1.bf16.msra.mxu0 0
    %621 = vmatprep.mubr.bf16.mxu0 0
    %622 = vmatmul.mubr.bf16.gmra.mrb[0].mxu0 %v316
    %v623 = vpop.f32.mrb[0].mxu0
    %v624 = vadd.f32 %v322, %v623
    %v625 = vpop.f32.mrb[0].mxu0
    %v626 = vadd.f32 %v326, %v625
    %v627 = vpop.f32.mrb[0].mxu0
    %v628 = vadd.f32 %v322, %v627
    %v629 = vpop.f32.mrb[0].mxu0
    %v630 = vadd.f32 %v326, %v629
    %631 = vdwg.mxu0
    %632 = vmatprep.subr.bf16.mxu0 %v496
    %633 = vmatpush1.bf16.msra.mxu0 %v495
    %634 = vmatprep.subr.bf16.mxu0 %v502
    %635 = vmatpush1.bf16.msra.mxu0 %v501
    %636 = vmatprep.subr.bf16.mxu0 %v508
    %637 = vmatpush1.bf16.msra.mxu0 %v507
    %638 = vmatprep.subr.bf16.mxu0 %v514
    %639 = vmatpush1.bf16.msra.mxu0 %v513
    %640 = vmatprep.subr.bf16.mxu0 %v520
    %641 = vmatpush1.bf16.msra.mxu0 %v519
    %642 = vmatprep.subr.bf16.mxu0 %v526
    %643 = vmatpush1.bf16.msra.mxu0 %v525
    %644 = vmatprep.subr.bf16.mxu0 %v532
    %645 = vmatpush1.bf16.msra.mxu0 %v531
    %646 = vmatprep.subr.bf16.mxu0 %v538
    %647 = vmatpush1.bf16.msra.mxu0 %v537
    %648 = vmatprep.subr.bf16.mxu0 0
    %649 = vmatpush1.bf16.msra.mxu0 0
    %650 = vmatprep.subr.bf16.mxu0 0
    %651 = vmatpush1.bf16.msra.mxu0 0
    %652 = vmatprep.subr.bf16.mxu0 0
    %653 = vmatpush1.bf16.msra.mxu0 0
    %654 = vmatprep.subr.bf16.mxu0 0
    %655 = vmatpush1.bf16.msra.mxu0 0
    %656 = vmatprep.subr.bf16.mxu0 0
    %657 = vmatpush1.bf16.msra.mxu0 0
    %658 = vmatprep.subr.bf16.mxu0 0
    %659 = vmatpush1.bf16.msra.mxu0 0
    %660 = vmatprep.subr.bf16.mxu0 0
    %661 = vmatpush1.bf16.msra.mxu0 0
    %662 = vmatprep.subr.bf16.mxu0 0
    %663 = vmatpush1.bf16.msra.mxu0 0
    %664 = vmatprep.mubr.bf16.mxu0 0
    %665 = vmatmul.mubr.bf16.gmra.mrb[0].mxu0 %v316
    %v666 = vpop.f32.mrb[0].mxu0
    %v667 = vadd.f32 %v330, %v666
    %v668 = vpop.f32.mrb[0].mxu0
    %v669 = vadd.f32 %v334, %v668
    %v670 = vpop.f32.mrb[0].mxu0
    %v671 = vadd.f32 %v330, %v670
    %v672 = vpop.f32.mrb[0].mxu0
    %v673 = vadd.f32 %v334, %v672
    %674 = vdwg.mxu0
    %675 = vmatprep.subr.bf16.mxu0 %v498
    %676 = vmatpush1.bf16.msra.mxu0 %v497
    %677 = vmatprep.subr.bf16.mxu0 %v504
    %678 = vmatpush1.bf16.msra.mxu0 %v503
    %679 = vmatprep.subr.bf16.mxu0 %v510
    %680 = vmatpush1.bf16.msra.mxu0 %v509
    %681 = vmatprep.subr.bf16.mxu0 %v516
    %682 = vmatpush1.bf16.msra.mxu0 %v515
    %683 = vmatprep.subr.bf16.mxu0 %v522
    %684 = vmatpush1.bf16.msra.mxu0 %v521
    %685 = vmatprep.subr.bf16.mxu0 %v528
    %686 = vmatpush1.bf16.msra.mxu0 %v527
    %687 = vmatprep.subr.bf16.mxu0 %v534
    %688 = vmatpush1.bf16.msra.mxu0 %v533
    %689 = vmatprep.subr.bf16.mxu0 %v540
    %690 = vmatpush1.bf16.msra.mxu0 %v539
    %691 = vmatprep.subr.bf16.mxu0 0
    %692 = vmatpush1.bf16.msra.mxu0 0
    %693 = vmatprep.subr.bf16.mxu0 0
    %694 = vmatpush1.bf16.msra.mxu0 0
    %695 = vmatprep.subr.bf16.mxu0 0
    %696 = vmatpush1.bf16.msra.mxu0 0
    %697 = vmatprep.subr.bf16.mxu0 0
    %698 = vmatpush1.bf16.msra.mxu0 0
    %699 = vmatprep.subr.bf16.mxu0 0
    %700 = vmatpush1.bf16.msra.mxu0 0
    %701 = vmatprep.subr.bf16.mxu0 0
    %702 = vmatpush1.bf16.msra.mxu0 0
    %703 = vmatprep.subr.bf16.mxu0 0
    %704 = vmatpush1.bf16.msra.mxu0 0
    %705 = vmatprep.subr.bf16.mxu0 0
    %706 = vmatpush1.bf16.msra.mxu0 0
    %707 = vmatprep.mubr.bf16.mxu0 0
    %708 = vmatmul.mubr.bf16.gmra.mrb[0].mxu0 %v316
    %v709 = vpop.f32.mrb[0].mxu0
    %v710 = vadd.f32 %v338, %v709
    %v711 = vpop.f32.mrb[0].mxu0
    %v712 = vadd.f32 %v342, %v711
    %v713 = vpop.f32.mrb[0].mxu0
    %v714 = vadd.f32 %v338, %v713
    %v715 = vpop.f32.mrb[0].mxu0
    %v716 = vadd.f32 %v342, %v715
    %717 = vdwg.mxu0
    %v718 = vld [vmem:[%s6] sm:$0xf]
    %v719 = vld [vmem:[%s6 + $0x4] sm:$0xf]
    %v720 = vld [vmem:[%s6 + $0x8] sm:$0xf]
    %v721 = vld [vmem:[%s6 + $0xc] sm:$0xf]
    %v722 = vld [vmem:[%s6 + $0x10] sm:$0xf]
    %v723 = vld [vmem:[%s6 + $0x14] sm:$0xf]
    %v724 = vld [vmem:[%s6 + $0x18] sm:$0xf]
    %v725 = vld [vmem:[%s6 + $0x1c] sm:$0xf]
    %v726 = vld [vmem:[%s6 + $0x20] sm:$0xf]
    %v727 = vld [vmem:[%s6 + $0x24] sm:$0xf]
    %v728 = vld [vmem:[%s6 + $0x28] sm:$0xf]
    %v729 = vld [vmem:[%s6 + $0x2c] sm:$0xf]
    %v730 = vld [vmem:[%s6 + $0x30] sm:$0xf]
    %v731 = vld [vmem:[%s6 + $0x34] sm:$0xf]
    %v732 = vld [vmem:[%s6 + $0x38] sm:$0xf]
    %v733 = vld [vmem:[%s6 + $0x3c] sm:$0xf]
    %v734 = vld [vmem:[%s6 + $0x40] sm:$0xf]
    %v735 = vld [vmem:[%s6 + $0x44] sm:$0xf]
    %v736 = vld [vmem:[%s6 + $0x48] sm:$0xf]
    %v737 = vld [vmem:[%s6 + $0x4c] sm:$0xf]
    %v738 = vld [vmem:[%s6 + $0x50] sm:$0xf]
    %v739 = vld [vmem:[%s6 + $0x54] sm:$0xf]
    %v740 = vld [vmem:[%s6 + $0x58] sm:$0xf]
    %v741 = vld [vmem:[%s6 + $0x5c] sm:$0xf]
    %v742 = vld [vmem:[%s6 + $0x60] sm:$0xf]
    %v743 = vld [vmem:[%s6 + $0x64] sm:$0xf]
    %v744 = vld [vmem:[%s6 + $0x68] sm:$0xf]
    %v745 = vld [vmem:[%s6 + $0x6c] sm:$0xf]
    %v746 = vld [vmem:[%s6 + $0x70] sm:$0xf]
    %v747 = vld [vmem:[%s6 + $0x74] sm:$0xf]
    %v748 = vld [vmem:[%s6 + $0x78] sm:$0xf]
    %v749 = vld [vmem:[%s6 + $0x7c] sm:$0xf]
    %v750 = vpack.c.bf16 %v628, %v624
    %v751 = vpack.c.bf16 %v671, %v667
    %752 = vmatprep.subr.bf16.mxu0 0
    %753 = vmatpush1.bf16.xpose.msra.mxu0 %v751
    %754 = vmatprep.subr.bf16.mxu0 0
    %755 = vmatpush1.bf16.xpose.msra.mxu0 0
    %756 = vmatprep.subr.bf16.mxu0 0
    %757 = vmatpush1.bf16.xpose.msra.mxu0 0
    %758 = vmatprep.subr.bf16.mxu0 0
    %759 = vmatpush1.bf16.xpose.msra.mxu0 0
    %760 = vmatprep.subr.bf16.mxu0 0
    %761 = vmatpush1.bf16.xpose.msra.mxu0 0
    %762 = vmatprep.subr.bf16.mxu0 0
    %763 = vmatpush1.bf16.xpose.msra.mxu0 0
    %764 = vmatprep.subr.bf16.mxu0 0
    %765 = vmatpush1.bf16.xpose.msra.mxu0 0
    %766 = vmatprep.subr.bf16.mxu0 0
    %767 = vmatpush1.bf16.xpose.msra.mxu0 0
    %768 = vmatprep.subr.bf16.mxu0 0
    %769 = vmatpush1.bf16.xpose.msra.mxu0 0
    %770 = vmatprep.subr.bf16.mxu0 0
    %771 = vmatpush1.bf16.xpose.msra.mxu0 0
    %772 = vmatprep.subr.bf16.mxu0 0
    %773 = vmatpush1.bf16.xpose.msra.mxu0 0
    %774 = vmatprep.subr.bf16.mxu0 0
    %775 = vmatpush1.bf16.xpose.msra.mxu0 0
    %776 = vmatprep.subr.bf16.mxu0 0
    %777 = vmatpush1.bf16.xpose.msra.mxu0 0
    %778 = vmatprep.subr.bf16.mxu0 0
    %779 = vmatpush1.bf16.xpose.msra.mxu0 0
    %780 = vmatprep.subr.bf16.mxu0 0
    %781 = vmatpush1.bf16.xpose.msra.mxu0 0
    %782 = vmatprep.subr.bf16.mxu0 0
    %783 = vmatpush1.bf16.xpose.msra.mxu0 0
    %784 = vmatprep.mubr.bf16.mxu0 0
    %785 = vmatmul.mubr.bf16.gmra.mrb[0].mxu0 %v750
    %v786 = vpop.f32.mrb[0].mxu0
    %v787 = vadd.f32 0.0, %v786
    %v788 = vpop.f32.mrb[0].mxu0
    %v789 = vpop.f32.mrb[0].mxu0
    %v790 = vadd.f32 0.0, %v789
    %v791 = vpop.f32.mrb[0].mxu0
    %792 = vdwg.mxu0
    %v793 = vmul.f32 %v787, 0.125
    %v794 = vmul.f32 %v790, 0.125
    %v795 = vadd.f32 %v793, %v266
    %v796 = vadd.f32 %v794, %v267
    %vm797 = vcmask 130048
    %v798 = vsel %vm797, %v795, -inf
    %799 = vmax.xlane.f32.xlu0 %v798
    %v800 = vpop.xlane.xlu0 %799
    %v801 = vsel %vm797, %v796, -inf
    %802 = vmax.xlane.f32.xlu0 %v801
    %v803 = vpop.xlane.xlu0 %802
    %v804 = vsub.f32 %v795, %v800
    %v805 = vsub.f32 %v796, %v803
    %v806 = vmul.f32 %v804, 1.442695
    %v807 = vpow.pop %v806
    %v808 = vmul.f32 %v805, 1.442695
    %v809 = vpow.pop %v808
    %v810 = vsel %vm797, %v807, 0.0
    %811 = vadd.xlane.f32.xlu0 %v810
    %v812 = vpop.xlane.xlu0 %811
    %v813 = vsel %vm797, %v809, 0.0
    %814 = vadd.xlane.f32.xlu0 %v813
    %v815 = vpop.xlane.xlu0 %814
    %v816 = vrcp.pop %v812
    %v817 = vrcp.pop %v815
    %v818 = vmul.f32 %v807, %v816
    %v819 = vmul.f32 %v809, %v817
    %v820 = vpack.c.bf16 %v819, %v818
    %v821 = vpack.c.bf16 %v714, %v710
    %v823 = vsel %vm797, %v820, 0
    %825 = vmatprep.subr.bf16.mxu0 0
    %826 = vmatpush1.bf16.msra.mxu0 %v821
    %827 = vmatprep.subr.bf16.mxu0 0
    %828 = vmatpush1.bf16.msra.mxu0 0
    %829 = vmatprep.subr.bf16.mxu0 0
    %830 = vmatpush1.bf16.msra.mxu0 0
    %831 = vmatprep.subr.bf16.mxu0 0
    %832 = vmatpush1.bf16.msra.mxu0 0
    %833 = vmatprep.subr.bf16.mxu0 0
    %834 = vmatpush1.bf16.msra.mxu0 0
    %835 = vmatprep.subr.bf16.mxu0 0
    %836 = vmatpush1.bf16.msra.mxu0 0
    %837 = vmatprep.subr.bf16.mxu0 0
    %838 = vmatpush1.bf16.msra.mxu0 0
    %839 = vmatprep.subr.bf16.mxu0 0
    %840 = vmatpush1.bf16.msra.mxu0 0
    %841 = vmatprep.subr.bf16.mxu0 0
    %842 = vmatpush1.bf16.msra.mxu0 0
    %843 = vmatprep.subr.bf16.mxu0 0
    %844 = vmatpush1.bf16.msra.mxu0 0
    %845 = vmatprep.subr.bf16.mxu0 0
    %846 = vmatpush1.bf16.msra.mxu0 0
    %847 = vmatprep.subr.bf16.mxu0 0
    %848 = vmatpush1.bf16.msra.mxu0 0
    %849 = vmatprep.subr.bf16.mxu0 0
    %850 = vmatpush1.bf16.msra.mxu0 0
    %851 = vmatprep.subr.bf16.mxu0 0
    %852 = vmatpush1.bf16.msra.mxu0 0
    %853 = vmatprep.subr.bf16.mxu0 0
    %854 = vmatpush1.bf16.msra.mxu0 0
    %855 = vmatprep.subr.bf16.mxu0 0
    %856 = vmatpush1.bf16.msra.mxu0 0
    %857 = vmatprep.mubr.bf16.mxu0 0
    %858 = vmatmul.mubr.bf16.gmra.mrb[0].mxu0 %v823
    %v859 = vpop.f32.mrb[0].mxu0
    %v860 = vadd.f32 0.0, %v859
    %v861 = vpop.f32.mrb[0].mxu0
    %v862 = vpop.f32.mrb[0].mxu0
    %v863 = vadd.f32 0.0, %v862
    %v864 = vpop.f32.mrb[0].mxu0
    %865 = vdwg.mxu0
    %v866 = vpack.c.bf16 %v863, %v860
    %v867 = vpack.c.bf16 %v630, %v626
    %v868 = vpack.c.bf16 %v673, %v669
    %869 = vmatprep.subr.bf16.mxu0 0
    %870 = vmatpush1.bf16.xpose.msra.mxu0 %v868
    %871 = vmatprep.subr.bf16.mxu0 0
    %872 = vmatpush1.bf16.xpose.msra.mxu0 0
    %873 = vmatprep.subr.bf16.mxu0 0
    %874 = vmatpush1.bf16.xpose.msra.mxu0 0
    %875 = vmatprep.subr.bf16.mxu0 0
    %876 = vmatpush1.bf16.xpose.msra.mxu0 0
    %877 = vmatprep.subr.bf16.mxu0 0
    %878 = vmatpush1.bf16.xpose.msra.mxu0 0
    %879 = vmatprep.subr.bf16.mxu0 0
    %880 = vmatpush1.bf16.xpose.msra.mxu0 0
    %881 = vmatprep.subr.bf16.mxu0 0
    %882 = vmatpush1.bf16.xpose.msra.mxu0 0
    %883 = vmatprep.subr.bf16.mxu0 0
    %884 = vmatpush1.bf16.xpose.msra.mxu0 0
    %885 = vmatprep.subr.bf16.mxu0 0
    %886 = vmatpush1.bf16.xpose.msra.mxu0 0
    %887 = vmatprep.subr.bf16.mxu0 0
    %888 = vmatpush1.bf16.xpose.msra.mxu0 0
    %889 = vmatprep.subr.bf16.mxu0 0
    %890 = vmatpush1.bf16.xpose.msra.mxu0 0
    %891 = vmatprep.subr.bf16.mxu0 0
    %892 = vmatpush1.bf16.xpose.msra.mxu0 0
    %893 = vmatprep.subr.bf16.mxu0 0
    %894 = vmatpush1.bf16.xpose.msra.mxu0 0
    %895 = vmatprep.subr.bf16.mxu0 0
    %896 = vmatpush1.bf16.xpose.msra.mxu0 0
    %897 = vmatprep.subr.bf16.mxu0 0
    %898 = vmatpush1.bf16.xpose.msra.mxu0 0
    %899 = vmatprep.subr.bf16.mxu0 0
    %900 = vmatpush1.bf16.xpose.msra.mxu0 0
    %901 = vmatprep.mubr.bf16.mxu0 0
    %902 = vmatmul.mubr.bf16.gmra.mrb[0].mxu0 %v867
    %v903 = vpop.f32.mrb[0].mxu0
    %v904 = vadd.f32 0.0, %v903
    %v905 = vpop.f32.mrb[0].mxu0
    %v906 = vpop.f32.mrb[0].mxu0
    %v907 = vadd.f32 0.0, %v906
    %v908 = vpop.f32.mrb[0].mxu0
    %909 = vdwg.mxu0
    %v910 = vmul.f32 %v904, 0.125
    %v911 = vmul.f32 %v907, 0.125
    %v912 = vadd.f32 %v910, %v266
    %v913 = vadd.f32 %v911, %v267
    %v914 = vsel %vm797, %v912, -inf
    %915 = vmax.xlane.f32.xlu0 %v914
    %v916 = vpop.xlane.xlu0 %915
    %v917 = vsel %vm797, %v913, -inf
    %918 = vmax.xlane.f32.xlu0 %v917
    %v919 = vpop.xlane.xlu0 %918
    %v920 = vsub.f32 %v912, %v916
    %v921 = vsub.f32 %v913, %v919
    %v922 = vmul.f32 %v920, 1.442695
    %v923 = vpow.pop %v922
    %v924 = vmul.f32 %v921, 1.442695
    %v925 = vpow.pop %v924
    %v926 = vsel %vm797, %v923, 0.0
    %927 = vadd.xlane.f32.xlu0 %v926
    %v928 = vpop.xlane.xlu0 %927
    %v929 = vsel %vm797, %v925, 0.0
    %930 = vadd.xlane.f32.xlu0 %v929
    %v931 = vpop.xlane.xlu0 %930
    %v932 = vrcp.pop %v928
    %v933 = vrcp.pop %v931
    %v934 = vmul.f32 %v923, %v932
    %v935 = vmul.f32 %v925, %v933
    %v936 = vpack.c.bf16 %v935, %v934
    %v937 = vpack.c.bf16 %v716, %v712
    %v939 = vsel %vm797, %v936, 0
    %941 = vmatprep.subr.bf16.mxu0 0
    %942 = vmatpush1.bf16.msra.mxu0 %v937
    %943 = vmatprep.subr.bf16.mxu0 0
    %944 = vmatpush1.bf16.msra.mxu0 0
    %945 = vmatprep.subr.bf16.mxu0 0
    %946 = vmatpush1.bf16.msra.mxu0 0
    %947 = vmatprep.subr.bf16.mxu0 0
    %948 = vmatpush1.bf16.msra.mxu0 0
    %949 = vmatprep.subr.bf16.mxu0 0
    %950 = vmatpush1.bf16.msra.mxu0 0
    %951 = vmatprep.subr.bf16.mxu0 0
    %952 = vmatpush1.bf16.msra.mxu0 0
    %953 = vmatprep.subr.bf16.mxu0 0
    %954 = vmatpush1.bf16.msra.mxu0 0
    %955 = vmatprep.subr.bf16.mxu0 0
    %956 = vmatpush1.bf16.msra.mxu0 0
    %957 = vmatprep.subr.bf16.mxu0 0
    %958 = vmatpush1.bf16.msra.mxu0 0
    %959 = vmatprep.subr.bf16.mxu0 0
    %960 = vmatpush1.bf16.msra.mxu0 0
    %961 = vmatprep.subr.bf16.mxu0 0
    %962 = vmatpush1.bf16.msra.mxu0 0
    %963 = vmatprep.subr.bf16.mxu0 0
    %964 = vmatpush1.bf16.msra.mxu0 0
    %965 = vmatprep.subr.bf16.mxu0 0
    %966 = vmatpush1.bf16.msra.mxu0 0
    %967 = vmatprep.subr.bf16.mxu0 0
    %968 = vmatpush1.bf16.msra.mxu0 0
    %969 = vmatprep.subr.bf16.mxu0 0
    %970 = vmatpush1.bf16.msra.mxu0 0
    %971 = vmatprep.subr.bf16.mxu0 0
    %972 = vmatpush1.bf16.msra.mxu0 0
    %973 = vmatprep.mubr.bf16.mxu0 0
    %974 = vmatmul.mubr.bf16.gmra.mrb[0].mxu0 %v939
    %v975 = vpop.f32.mrb[0].mxu0
    %v976 = vadd.f32 0.0, %v975
    %v977 = vpop.f32.mrb[0].mxu0
    %v978 = vpop.f32.mrb[0].mxu0
    %v979 = vadd.f32 0.0, %v978
    %v980 = vpop.f32.mrb[0].mxu0
    %981 = vdwg.mxu0
    %v982 = vpack.c.bf16 %v979, %v976
    %v999 = vunpack.c.l.b16 %v734
    %v1000 = vunpack.c.l.b16 %v735
    %v1001 = vunpack.c.l.b16 %v736
    %v1002 = vunpack.c.l.b16 %v737
    %v1003 = vunpack.c.l.b16 %v738
    %v1004 = vunpack.c.l.b16 %v739
    %v1005 = vunpack.c.l.b16 %v740
    %v1006 = vunpack.c.l.b16 %v741
    %v1007 = vunpack.c.l.b16 %v742
    %v1008 = vunpack.c.l.b16 %v743
    %v1009 = vunpack.c.l.b16 %v744
    %v1010 = vunpack.c.l.b16 %v745
    %v1011 = vunpack.c.l.b16 %v746
    %v1012 = vunpack.c.l.b16 %v747
    %v1013 = vunpack.c.l.b16 %v748
    %v1014 = vunpack.c.l.b16 %v749
    %v1015 = vpack.c.b16 %v1000, %v999
    %v1016 = vpack.c.b16 %v1002, %v1001
    %v1017 = vpack.c.b16 %v1004, %v1003
    %v1018 = vpack.c.b16 %v1006, %v1005
    %v1019 = vpack.c.b16 %v1008, %v1007
    %v1020 = vpack.c.b16 %v1010, %v1009
    %v1021 = vpack.c.b16 %v1012, %v1011
    %v1022 = vpack.c.b16 %v1014, %v1013
    %1031 = vmatprep.subr.bf16.mxu0 0
    %1032 = vmatpush1.bf16.msra.mxu0 %v1015
    %1033 = vmatprep.subr.bf16.mxu0 0
    %1034 = vmatpush1.bf16.msra.mxu0 %v1016
    %1035 = vmatprep.subr.bf16.mxu0 0
    %1036 = vmatpush1.bf16.msra.mxu0 %v1017
    %1037 = vmatprep.subr.bf16.mxu0 0
    %1038 = vmatpush1.bf16.msra.mxu0 %v1018
    %1039 = vmatprep.subr.bf16.mxu0 0
    %1040 = vmatpush1.bf16.msra.mxu0 %v1019
    %1041 = vmatprep.subr.bf16.mxu0 0
    %1042 = vmatpush1.bf16.msra.mxu0 %v1020
    %1043 = vmatprep.subr.bf16.mxu0 0
    %1044 = vmatpush1.bf16.msra.mxu0 %v1021
    %1045 = vmatprep.subr.bf16.mxu0 0
    %1046 = vmatpush1.bf16.msra.mxu0 %v1022
    %1047 = vmatprep.subr.bf16.mxu0 0
    %1048 = vmatpush1.bf16.msra.mxu0 0
    %1049 = vmatprep.subr.bf16.mxu0 0
    %1050 = vmatpush1.bf16.msra.mxu0 0
    %1051 = vmatprep.subr.bf16.mxu0 0
    %1052 = vmatpush1.bf16.msra.mxu0 0
    %1053 = vmatprep.subr.bf16.mxu0 0
    %1054 = vmatpush1.bf16.msra.mxu0 0
    %1055 = vmatprep.subr.bf16.mxu0 0
    %1056 = vmatpush1.bf16.msra.mxu0 0
    %1057 = vmatprep.subr.bf16.mxu0 0
    %1058 = vmatpush1.bf16.msra.mxu0 0
    %1059 = vmatprep.subr.bf16.mxu0 0
    %1060 = vmatpush1.bf16.msra.mxu0 0
    %1061 = vmatprep.subr.bf16.mxu0 0
    %1062 = vmatpush1.bf16.msra.mxu0 0
    %1063 = vmatprep.mubr.bf16.mxu0 0
    %1064 = vmatmul.mubr.bf16.gmra.mrb[0].mxu0 %v982
    %v1065 = vpop.f32.mrb[0].mxu0
    %v1066 = vadd.f32 0.0, %v1065
    %v1067 = vpop.f32.mrb[0].mxu0
    %v1068 = vpop.f32.mrb[0].mxu0
    %v1069 = vadd.f32 0.0, %v1068
    %v1070 = vpop.f32.mrb[0].mxu0
    %1071 = vdwg.mxu0
    %v1088 = vunpack.c.l.b16 %v718
    %v1089 = vunpack.c.l.b16 %v719
    %v1090 = vunpack.c.l.b16 %v720
    %v1091 = vunpack.c.l.b16 %v721
    %v1092 = vunpack.c.l.b16 %v722
    %v1093 = vunpack.c.l.b16 %v723
    %v1094 = vunpack.c.l.b16 %v724
    %v1095 = vunpack.c.l.b16 %v725
    %v1096 = vunpack.c.l.b16 %v726
    %v1097 = vunpack.c.l.b16 %v727
    %v1098 = vunpack.c.l.b16 %v728
    %v1099 = vunpack.c.l.b16 %v729
    %v1100 = vunpack.c.l.b16 %v730
    %v1101 = vunpack.c.l.b16 %v731
    %v1102 = vunpack.c.l.b16 %v732
    %v1103 = vunpack.c.l.b16 %v733
    %v1104 = vpack.c.b16 %v1089, %v1088
    %v1105 = vpack.c.b16 %v1091, %v1090
    %v1106 = vpack.c.b16 %v1093, %v1092
    %v1107 = vpack.c.b16 %v1095, %v1094
    %v1108 = vpack.c.b16 %v1097, %v1096
    %v1109 = vpack.c.b16 %v1099, %v1098
    %v1110 = vpack.c.b16 %v1101, %v1100
    %v1111 = vpack.c.b16 %v1103, %v1102
    %1120 = vmatprep.subr.bf16.mxu0 0
    %1121 = vmatpush1.bf16.msra.mxu0 %v1104
    %1122 = vmatprep.subr.bf16.mxu0 0
    %1123 = vmatpush1.bf16.msra.mxu0 %v1105
    %1124 = vmatprep.subr.bf16.mxu0 0
    %1125 = vmatpush1.bf16.msra.mxu0 %v1106
    %1126 = vmatprep.subr.bf16.mxu0 0
    %1127 = vmatpush1.bf16.msra.mxu0 %v1107
    %1128 = vmatprep.subr.bf16.mxu0 0
    %1129 = vmatpush1.bf16.msra.mxu0 %v1108
    %1130 = vmatprep.subr.bf16.mxu0 0
    %1131 = vmatpush1.bf16.msra.mxu0 %v1109
    %1132 = vmatprep.subr.bf16.mxu0 0
    %1133 = vmatpush1.bf16.msra.mxu0 %v1110
    %1134 = vmatprep.subr.bf16.mxu0 0
    %1135 = vmatpush1.bf16.msra.mxu0 %v1111
    %1136 = vmatprep.subr.bf16.mxu0 0
    %1137 = vmatpush1.bf16.msra.mxu0 0
    %1138 = vmatprep.subr.bf16.mxu0 0
    %1139 = vmatpush1.bf16.msra.mxu0 0
    %1140 = vmatprep.subr.bf16.mxu0 0
    %1141 = vmatpush1.bf16.msra.mxu0 0
    %1142 = vmatprep.subr.bf16.mxu0 0
    %1143 = vmatpush1.bf16.msra.mxu0 0
    %1144 = vmatprep.subr.bf16.mxu0 0
    %1145 = vmatpush1.bf16.msra.mxu0 0
    %1146 = vmatprep.subr.bf16.mxu0 0
    %1147 = vmatpush1.bf16.msra.mxu0 0
    %1148 = vmatprep.subr.bf16.mxu0 0
    %1149 = vmatpush1.bf16.msra.mxu0 0
    %1150 = vmatprep.subr.bf16.mxu0 0
    %1151 = vmatpush1.bf16.msra.mxu0 0
    %1152 = vmatprep.mubr.bf16.mxu0 0
    %1153 = vmatmul.mubr.bf16.gmra.mrb[0].mxu0 %v866
    %v1154 = vpop.f32.mrb[0].mxu0
    %v1155 = vadd.f32 %v1066, %v1154
    %v1156 = vpop.f32.mrb[0].mxu0
    %v1157 = vpop.f32.mrb[0].mxu0
    %v1158 = vadd.f32 %v1069, %v1157
    %v1159 = vpop.f32.mrb[0].mxu0
    %1160 = vdwg.mxu0
    %v1161 = vadd.f32 %v264, %v1155
    %v1162 = vadd.f32 %v265, %v1158
    %v1163 = vld [vmem:[%s7] sm:$0x1]
    %v1165 = vlaneseq
    %v1166 = vshrl.u32 %v1165, 7
    %v1167 = vsub.s32 0, %v1166
    %v1168 = vrot.slane %v1163, %v1167
    %v1170 = vadd.f32 %v1161, %v1168
    %v1171 = vadd.f32 %v1162, %v1168
    %v1172 = vld [vmem:[#allocation8] sm:$0x1]
    %v1173 = vld [vmem:[#allocation10] sm:$0x1]
    %1174 = vadd.xlane.f32.xlu0 %v1170
    %v1175 = vpop.xlane.xlu0 %1174
    %1176 = vadd.xlane.f32.xlu0 %v1171
    %v1177 = vpop.xlane.xlu0 %1176
    %v1178 = vmul.f32 %v1175, %v231
    %v1179 = vmul.f32 %v1177, %v231
    %v1180 = vsub.f32 %v1170, %v1178
    %v1181 = vsub.f32 %v1171, %v1179
    %v1182 = vmul.f32 %v1180, %v1180
    %v1183 = vmul.f32 %v1181, %v1181
    %1184 = vadd.xlane.f32.xlu0 %v1182
    %v1185 = vpop.xlane.xlu0 %1184
    %1186 = vadd.xlane.f32.xlu0 %v1183
    %v1187 = vpop.xlane.xlu0 %1186
    %v1188 = vmul.f32 %v1185, %v231
    %v1189 = vmul.f32 %v1187, %v231
    %v1190 = vadd.f32 %v1188, 1e-12
    %v1191 = vadd.f32 %v1189, 1e-12
    %v1192 = vrsqrt.pop %v1190
    %v1193 = vrsqrt.pop %v1191
    %v1194 = vmul.f32 %v1180, %v1192
    %v1195 = vmul.f32 %v1181, %v1193
    %v1197 = vlaneseq
    %v1198 = vshrl.u32 %v1197, 7
    %v1199 = vsub.s32 0, %v1198
    %v1200 = vrot.slane %v1172, %v1199
    %v1202 = vmul.f32 %v1194, %v1200
    %v1203 = vmul.f32 %v1195, %v1200
    %v1205 = vlaneseq
    %v1206 = vshrl.u32 %v1205, 7
    %v1207 = vsub.s32 0, %v1206
    %v1208 = vrot.slane %v1173, %v1207
    %v1210 = vadd.f32 %v1202, %v1208
    %v1211 = vadd.f32 %v1203, %v1208
    %v1212 = vpack.c.bf16 %v1211, %v1210
    %v1213 = vld [vmem:[#allocation11] sm:$0xff]
    %v1214 = vld [vmem:[#allocation11 + $0x8] sm:$0xff]
    %v1215 = vld [vmem:[#allocation11 + $0x10] sm:$0xff]
    %v1216 = vld [vmem:[#allocation11 + $0x18] sm:$0xff]
    %v1217 = vld [vmem:[#allocation11 + $0x20] sm:$0xff]
    %v1218 = vld [vmem:[#allocation11 + $0x28] sm:$0xff]
    %v1219 = vld [vmem:[#allocation11 + $0x30] sm:$0xff]
    %v1220 = vld [vmem:[#allocation11 + $0x38] sm:$0xff]
    %v1221 = vld [vmem:[#allocation11 + $0x40] sm:$0xff]
    %v1222 = vld [vmem:[#allocation11 + $0x48] sm:$0xff]
    %v1223 = vld [vmem:[#allocation11 + $0x50] sm:$0xff]
    %v1224 = vld [vmem:[#allocation11 + $0x58] sm:$0xff]
    %v1225 = vld [vmem:[#allocation11 + $0x60] sm:$0xff]
    %v1226 = vld [vmem:[#allocation11 + $0x68] sm:$0xff]
    %v1227 = vld [vmem:[#allocation11 + $0x70] sm:$0xff]
    %v1228 = vld [vmem:[#allocation11 + $0x78] sm:$0xff]
    %v1229 = vld [vmem:[#allocation11 + $0x80] sm:$0xff]
    %v1230 = vld [vmem:[#allocation11 + $0x88] sm:$0xff]
    %v1231 = vld [vmem:[#allocation11 + $0x90] sm:$0xff]
    %v1232 = vld [vmem:[#allocation11 + $0x98] sm:$0xff]
    %v1233 = vld [vmem:[#allocation11 + $0xa0] sm:$0xff]
    %v1234 = vld [vmem:[#allocation11 + $0xa8] sm:$0xff]
    %v1235 = vld [vmem:[#allocation11 + $0xb0] sm:$0xff]
    %v1236 = vld [vmem:[#allocation11 + $0xb8] sm:$0xff]
    %v1237 = vld [vmem:[#allocation11 + $0xc0] sm:$0xff]
    %v1238 = vld [vmem:[#allocation11 + $0xc8] sm:$0xff]
    %v1239 = vld [vmem:[#allocation11 + $0xd0] sm:$0xff]
    %v1240 = vld [vmem:[#allocation11 + $0xd8] sm:$0xff]
    %v1241 = vld [vmem:[#allocation11 + $0xe0] sm:$0xff]
    %v1242 = vld [vmem:[#allocation11 + $0xe8] sm:$0xff]
    %v1243 = vld [vmem:[#allocation11 + $0xf0] sm:$0xff]
    %v1244 = vld [vmem:[#allocation11 + $0xf8] sm:$0xff]
    %v1245 = vld [vmem:[#allocation13] sm:$0xf]
    %v1247 = vlaneseq
    %v1248 = vshrl.u32 %v1247, 7
    %v1249 = vsub.s32 0, %v1248
    %v1250 = vrot.slane %v1245, %v1249
    %v1251 = vlaneseq
    %v1252 = vshrl.u32 %v1251, 7
    %v1253 = vsub.s32 1, %v1252
    %v1254 = vrot.slane %v1245, %v1253
    %v1255 = vlaneseq
    %v1256 = vshrl.u32 %v1255, 7
    %v1257 = vsub.s32 2, %v1256
    %v1258 = vrot.slane %v1245, %v1257
    %v1259 = vlaneseq
    %v1260 = vshrl.u32 %v1259, 7
    %v1261 = vsub.s32 3, %v1260
    %v1262 = vrot.slane %v1245, %v1261
    %v1299 = vunpack.c.l.b16 %v1213
    %v1300 = vunpack.c.h.b16 %v1213
    %v1301 = vunpack.c.l.b16 %v1214
    %v1302 = vunpack.c.h.b16 %v1214
    %v1303 = vunpack.c.l.b16 %v1215
    %v1304 = vunpack.c.h.b16 %v1215
    %v1305 = vunpack.c.l.b16 %v1216
    %v1306 = vunpack.c.h.b16 %v1216
    %v1307 = vunpack.c.l.b16 %v1217
    %v1308 = vunpack.c.h.b16 %v1217
    %v1309 = vunpack.c.l.b16 %v1218
    %v1310 = vunpack.c.h.b16 %v1218
    %v1311 = vunpack.c.l.b16 %v1219
    %v1312 = vunpack.c.h.b16 %v1219
    %v1313 = vunpack.c.l.b16 %v1220
    %v1314 = vunpack.c.h.b16 %v1220
    %v1315 = vunpack.c.l.b16 %v1221
    %v1316 = vunpack.c.h.b16 %v1221
    %v1317 = vunpack.c.l.b16 %v1222
    %v1318 = vunpack.c.h.b16 %v1222
    %v1319 = vunpack.c.l.b16 %v1223
    %v1320 = vunpack.c.h.b16 %v1223
    %v1321 = vunpack.c.l.b16 %v1224
    %v1322 = vunpack.c.h.b16 %v1224
    %v1323 = vunpack.c.l.b16 %v1225
    %v1324 = vunpack.c.h.b16 %v1225
    %v1325 = vunpack.c.l.b16 %v1226
    %v1326 = vunpack.c.h.b16 %v1226
    %v1327 = vunpack.c.l.b16 %v1227
    %v1328 = vunpack.c.h.b16 %v1227
    %v1329 = vunpack.c.l.b16 %v1228
    %v1330 = vunpack.c.h.b16 %v1228
    %v1331 = vunpack.c.l.b16 %v1229
    %v1332 = vunpack.c.h.b16 %v1229
    %v1333 = vunpack.c.l.b16 %v1230
    %v1334 = vunpack.c.h.b16 %v1230
    %v1335 = vunpack.c.l.b16 %v1231
    %v1336 = vunpack.c.h.b16 %v1231
    %v1337 = vunpack.c.l.b16 %v1232
    %v1338 = vunpack.c.h.b16 %v1232
    %v1339 = vunpack.c.l.b16 %v1233
    %v1340 = vunpack.c.h.b16 %v1233
    %v1341 = vunpack.c.l.b16 %v1234
    %v1342 = vunpack.c.h.b16 %v1234
    %v1343 = vunpack.c.l.b16 %v1235
    %v1344 = vunpack.c.h.b16 %v1235
    %v1345 = vunpack.c.l.b16 %v1236
    %v1346 = vunpack.c.h.b16 %v1236
    %v1347 = vunpack.c.l.b16 %v1237
    %v1348 = vunpack.c.h.b16 %v1237
    %v1349 = vunpack.c.l.b16 %v1238
    %v1350 = vunpack.c.h.b16 %v1238
    %v1351 = vunpack.c.l.b16 %v1239
    %v1352 = vunpack.c.h.b16 %v1239
    %v1353 = vunpack.c.l.b16 %v1240
    %v1354 = vunpack.c.h.b16 %v1240
    %v1355 = vunpack.c.l.b16 %v1241
    %v1356 = vunpack.c.h.b16 %v1241
    %v1357 = vunpack.c.l.b16 %v1242
    %v1358 = vunpack.c.h.b16 %v1242
    %v1359 = vunpack.c.l.b16 %v1243
    %v1360 = vunpack.c.h.b16 %v1243
    %v1361 = vunpack.c.l.b16 %v1244
    %v1362 = vunpack.c.h.b16 %v1244
    %v1363 = vpack.c.b16 %v1303, %v1299
    %v1364 = vpack.c.b16 %v1304, %v1300
    %v1365 = vpack.c.b16 %v1305, %v1301
    %v1366 = vpack.c.b16 %v1306, %v1302
    %v1367 = vpack.c.b16 %v1311, %v1307
    %v1368 = vpack.c.b16 %v1312, %v1308
    %v1369 = vpack.c.b16 %v1313, %v1309
    %v1370 = vpack.c.b16 %v1314, %v1310
    %v1371 = vpack.c.b16 %v1319, %v1315
    %v1372 = vpack.c.b16 %v1320, %v1316
    %v1373 = vpack.c.b16 %v1321, %v1317
    %v1374 = vpack.c.b16 %v1322, %v1318
    %v1375 = vpack.c.b16 %v1327, %v1323
    %v1376 = vpack.c.b16 %v1328, %v1324
    %v1377 = vpack.c.b16 %v1329, %v1325
    %v1378 = vpack.c.b16 %v1330, %v1326
    %v1379 = vpack.c.b16 %v1335, %v1331
    %v1380 = vpack.c.b16 %v1336, %v1332
    %v1381 = vpack.c.b16 %v1337, %v1333
    %v1382 = vpack.c.b16 %v1338, %v1334
    %v1383 = vpack.c.b16 %v1343, %v1339
    %v1384 = vpack.c.b16 %v1344, %v1340
    %v1385 = vpack.c.b16 %v1345, %v1341
    %v1386 = vpack.c.b16 %v1346, %v1342
    %v1387 = vpack.c.b16 %v1351, %v1347
    %v1388 = vpack.c.b16 %v1352, %v1348
    %v1389 = vpack.c.b16 %v1353, %v1349
    %v1390 = vpack.c.b16 %v1354, %v1350
    %v1391 = vpack.c.b16 %v1359, %v1355
    %v1392 = vpack.c.b16 %v1360, %v1356
    %v1393 = vpack.c.b16 %v1361, %v1357
    %v1394 = vpack.c.b16 %v1362, %v1358
    %1427 = vmatprep.subr.bf16.mxu0 %v1364
    %1428 = vmatpush1.bf16.msra.mxu0 %v1363
    %1429 = vmatprep.subr.bf16.mxu0 %v1368
    %1430 = vmatpush1.bf16.msra.mxu0 %v1367
    %1431 = vmatprep.subr.bf16.mxu0 %v1372
    %1432 = vmatpush1.bf16.msra.mxu0 %v1371
    %1433 = vmatprep.subr.bf16.mxu0 %v1376
    %1434 = vmatpush1.bf16.msra.mxu0 %v1375
    %1435 = vmatprep.subr.bf16.mxu0 %v1380
    %1436 = vmatpush1.bf16.msra.mxu0 %v1379
    %1437 = vmatprep.subr.bf16.mxu0 %v1384
    %1438 = vmatpush1.bf16.msra.mxu0 %v1383
    %1439 = vmatprep.subr.bf16.mxu0 %v1388
    %1440 = vmatpush1.bf16.msra.mxu0 %v1387
    %1441 = vmatprep.subr.bf16.mxu0 %v1392
    %1442 = vmatpush1.bf16.msra.mxu0 %v1391
    %1443 = vmatprep.subr.bf16.mxu0 0
    %1444 = vmatpush1.bf16.msra.mxu0 0
    %1445 = vmatprep.subr.bf16.mxu0 0
    %1446 = vmatpush1.bf16.msra.mxu0 0
    %1447 = vmatprep.subr.bf16.mxu0 0
    %1448 = vmatpush1.bf16.msra.mxu0 0
    %1449 = vmatprep.subr.bf16.mxu0 0
    %1450 = vmatpush1.bf16.msra.mxu0 0
    %1451 = vmatprep.subr.bf16.mxu0 0
    %1452 = vmatpush1.bf16.msra.mxu0 0
    %1453 = vmatprep.subr.bf16.mxu0 0
    %1454 = vmatpush1.bf16.msra.mxu0 0
    %1455 = vmatprep.subr.bf16.mxu0 0
    %1456 = vmatpush1.bf16.msra.mxu0 0
    %1457 = vmatprep.subr.bf16.mxu0 0
    %1458 = vmatpush1.bf16.msra.mxu0 0
    %1459 = vmatprep.mubr.bf16.mxu0 0
    %1460 = vmatmul.mubr.bf16.gmra.mrb[0].mxu0 %v1212
    %v1461 = vpop.f32.mrb[0].mxu0
    %v1462 = vadd.f32 %v1250, %v1461
    %v1463 = vpop.f32.mrb[0].mxu0
    %v1464 = vadd.f32 %v1254, %v1463
    %v1465 = vpop.f32.mrb[0].mxu0
    %v1466 = vadd.f32 %v1250, %v1465
    %v1467 = vpop.f32.mrb[0].mxu0
    %v1468 = vadd.f32 %v1254, %v1467
    %1469 = vdwg.mxu0
    %1470 = vmatprep.subr.bf16.mxu0 %v1366
    %1471 = vmatpush1.bf16.msra.mxu0 %v1365
    %1472 = vmatprep.subr.bf16.mxu0 %v1370
    %1473 = vmatpush1.bf16.msra.mxu0 %v1369
    %1474 = vmatprep.subr.bf16.mxu0 %v1374
    %1475 = vmatpush1.bf16.msra.mxu0 %v1373
    %1476 = vmatprep.subr.bf16.mxu0 %v1378
    %1477 = vmatpush1.bf16.msra.mxu0 %v1377
    %1478 = vmatprep.subr.bf16.mxu0 %v1382
    %1479 = vmatpush1.bf16.msra.mxu0 %v1381
    %1480 = vmatprep.subr.bf16.mxu0 %v1386
    %1481 = vmatpush1.bf16.msra.mxu0 %v1385
    %1482 = vmatprep.subr.bf16.mxu0 %v1390
    %1483 = vmatpush1.bf16.msra.mxu0 %v1389
    %1484 = vmatprep.subr.bf16.mxu0 %v1394
    %1485 = vmatpush1.bf16.msra.mxu0 %v1393
    %1486 = vmatprep.subr.bf16.mxu0 0
    %1487 = vmatpush1.bf16.msra.mxu0 0
    %1488 = vmatprep.subr.bf16.mxu0 0
    %1489 = vmatpush1.bf16.msra.mxu0 0
    %1490 = vmatprep.subr.bf16.mxu0 0
    %1491 = vmatpush1.bf16.msra.mxu0 0
    %1492 = vmatprep.subr.bf16.mxu0 0
    %1493 = vmatpush1.bf16.msra.mxu0 0
    %1494 = vmatprep.subr.bf16.mxu0 0
    %1495 = vmatpush1.bf16.msra.mxu0 0
    %1496 = vmatprep.subr.bf16.mxu0 0
    %1497 = vmatpush1.bf16.msra.mxu0 0
    %1498 = vmatprep.subr.bf16.mxu0 0
    %1499 = vmatpush1.bf16.msra.mxu0 0
    %1500 = vmatprep.subr.bf16.mxu0 0
    %1501 = vmatpush1.bf16.msra.mxu0 0
    %1502 = vmatprep.mubr.bf16.mxu0 0
    %1503 = vmatmul.mubr.bf16.gmra.mrb[0].mxu0 %v1212
    %v1504 = vpop.f32.mrb[0].mxu0
    %v1505 = vadd.f32 %v1258, %v1504
    %v1506 = vpop.f32.mrb[0].mxu0
    %v1507 = vadd.f32 %v1262, %v1506
    %v1508 = vpop.f32.mrb[0].mxu0
    %v1509 = vadd.f32 %v1258, %v1508
    %v1510 = vpop.f32.mrb[0].mxu0
    %v1511 = vadd.f32 %v1262, %v1510
    %1512 = vdwg.mxu0
    %v1513 = vmul.f32 %v1462, 0.5
    %v1514 = vmul.f32 %v1464, 0.5
    %v1515 = vmul.f32 %v1505, 0.5
    %v1516 = vmul.f32 %v1507, 0.5
    %v1517 = vmul.f32 %v1466, 0.5
    %v1518 = vmul.f32 %v1468, 0.5
    %v1519 = vmul.f32 %v1509, 0.5
    %v1520 = vmul.f32 %v1511, 0.5
    %v1521 = vmul.f32 %v1462, 0.044715
    %v1522 = vmul.f32 %v1464, 0.044715
    %v1523 = vmul.f32 %v1505, 0.044715
    %v1524 = vmul.f32 %v1507, 0.044715
    %v1525 = vmul.f32 %v1466, 0.044715
    %v1526 = vmul.f32 %v1468, 0.044715
    %v1527 = vmul.f32 %v1509, 0.044715
    %v1528 = vmul.f32 %v1511, 0.044715
    %v1529 = vmul.f32 %v1521, %v1462
    %v1530 = vmul.f32 %v1522, %v1464
    %v1531 = vmul.f32 %v1523, %v1505
    %v1532 = vmul.f32 %v1524, %v1507
    %v1533 = vmul.f32 %v1525, %v1466
    %v1534 = vmul.f32 %v1526, %v1468
    %v1535 = vmul.f32 %v1527, %v1509
    %v1536 = vmul.f32 %v1528, %v1511
    %v1537 = vmul.f32 %v1529, %v1462
    %v1538 = vmul.f32 %v1530, %v1464
    %v1539 = vmul.f32 %v1531, %v1505
    %v1540 = vmul.f32 %v1532, %v1507
    %v1541 = vmul.f32 %v1533, %v1466
    %v1542 = vmul.f32 %v1534, %v1468
    %v1543 = vmul.f32 %v1535, %v1509
    %v1544 = vmul.f32 %v1536, %v1511
    %v1545 = vadd.f32 %v1462, %v1537
    %v1546 = vadd.f32 %v1464, %v1538
    %v1547 = vadd.f32 %v1505, %v1539
    %v1548 = vadd.f32 %v1507, %v1540
    %v1549 = vadd.f32 %v1466, %v1541
    %v1550 = vadd.f32 %v1468, %v1542
    %v1551 = vadd.f32 %v1509, %v1543
    %v1552 = vadd.f32 %v1511, %v1544
    %v1553 = vmul.f32 %v1545, 0.7978846
    %v1554 = vmul.f32 %v1546, 0.7978846
    %v1555 = vmul.f32 %v1547, 0.7978846
    %v1556 = vmul.f32 %v1548, 0.7978846
    %v1557 = vmul.f32 %v1549, 0.7978846
    %v1558 = vmul.f32 %v1550, 0.7978846
    %v1559 = vmul.f32 %v1551, 0.7978846
    %v1560 = vmul.f32 %v1552, 0.7978846
    %v1561 = vtanh.pop %v1553
    %v1562 = vtanh.pop %v1554
    %v1563 = vtanh.pop %v1555
    %v1564 = vtanh.pop %v1556
    %v1565 = vtanh.pop %v1557
    %v1566 = vtanh.pop %v1558
    %v1567 = vtanh.pop %v1559
    %v1568 = vtanh.pop %v1560
    %v1569 = vadd.f32 %v1561, 1.0
    %v1570 = vadd.f32 %v1562, 1.0
    %v1571 = vadd.f32 %v1563, 1.0
    %v1572 = vadd.f32 %v1564, 1.0
    %v1573 = vadd.f32 %v1565, 1.0
    %v1574 = vadd.f32 %v1566, 1.0
    %v1575 = vadd.f32 %v1567, 1.0
    %v1576 = vadd.f32 %v1568, 1.0
    %v1577 = vmul.f32 %v1513, %v1569
    %v1578 = vmul.f32 %v1514, %v1570
    %v1579 = vmul.f32 %v1515, %v1571
    %v1580 = vmul.f32 %v1516, %v1572
    %v1581 = vmul.f32 %v1517, %v1573
    %v1582 = vmul.f32 %v1518, %v1574
    %v1583 = vmul.f32 %v1519, %v1575
    %v1584 = vmul.f32 %v1520, %v1576
    %v1585 = vpack.c.bf16 %v1581, %v1577
    %v1586 = vpack.c.bf16 %v1582, %v1578
    %v1587 = vpack.c.bf16 %v1583, %v1579
    %v1588 = vpack.c.bf16 %v1584, %v1580
    %v1589 = vld [vmem:[#allocation14] sm:$0xf]
    %v1590 = vld [vmem:[#allocation14 + $0x4] sm:$0xf]
    %v1591 = vld [vmem:[#allocation14 + $0x8] sm:$0xf]
    %v1592 = vld [vmem:[#allocation14 + $0xc] sm:$0xf]
    %v1593 = vld [vmem:[#allocation14 + $0x10] sm:$0xf]
    %v1594 = vld [vmem:[#allocation14 + $0x14] sm:$0xf]
    %v1595 = vld [vmem:[#allocation14 + $0x18] sm:$0xf]
    %v1596 = vld [vmem:[#allocation14 + $0x1c] sm:$0xf]
    %v1597 = vld [vmem:[#allocation14 + $0x20] sm:$0xf]
    %v1598 = vld [vmem:[#allocation14 + $0x24] sm:$0xf]
    %v1599 = vld [vmem:[#allocation14 + $0x28] sm:$0xf]
    %v1600 = vld [vmem:[#allocation14 + $0x2c] sm:$0xf]
    %v1601 = vld [vmem:[#allocation14 + $0x30] sm:$0xf]
    %v1602 = vld [vmem:[#allocation14 + $0x34] sm:$0xf]
    %v1603 = vld [vmem:[#allocation14 + $0x38] sm:$0xf]
    %v1604 = vld [vmem:[#allocation14 + $0x3c] sm:$0xf]
    %v1605 = vld [vmem:[#allocation14 + $0x40] sm:$0xf]
    %v1606 = vld [vmem:[#allocation14 + $0x44] sm:$0xf]
    %v1607 = vld [vmem:[#allocation14 + $0x48] sm:$0xf]
    %v1608 = vld [vmem:[#allocation14 + $0x4c] sm:$0xf]
    %v1609 = vld [vmem:[#allocation14 + $0x50] sm:$0xf]
    %v1610 = vld [vmem:[#allocation14 + $0x54] sm:$0xf]
    %v1611 = vld [vmem:[#allocation14 + $0x58] sm:$0xf]
    %v1612 = vld [vmem:[#allocation14 + $0x5c] sm:$0xf]
    %v1613 = vld [vmem:[#allocation14 + $0x60] sm:$0xf]
    %v1614 = vld [vmem:[#allocation14 + $0x64] sm:$0xf]
    %v1615 = vld [vmem:[#allocation14 + $0x68] sm:$0xf]
    %v1616 = vld [vmem:[#allocation14 + $0x6c] sm:$0xf]
    %v1617 = vld [vmem:[#allocation14 + $0x70] sm:$0xf]
    %v1618 = vld [vmem:[#allocation14 + $0x74] sm:$0xf]
    %v1619 = vld [vmem:[#allocation14 + $0x78] sm:$0xf]
    %v1620 = vld [vmem:[#allocation14 + $0x7c] sm:$0xf]
    %v1621 = vld [vmem:[#allocation14 + $0x80] sm:$0xf]
    %v1622 = vld [vmem:[#allocation14 + $0x84] sm:$0xf]
    %v1623 = vld [vmem:[#allocation14 + $0x88] sm:$0xf]
    %v1624 = vld [vmem:[#allocation14 + $0x8c] sm:$0xf]
    %v1625 = vld [vmem:[#allocation14 + $0x90] sm:$0xf]
    %v1626 = vld [vmem:[#allocation14 + $0x94] sm:$0xf]
    %v1627 = vld [vmem:[#allocation14 + $0x98] sm:$0xf]
    %v1628 = vld [vmem:[#allocation14 + $0x9c] sm:$0xf]
    %v1629 = vld [vmem:[#allocation14 + $0xa0] sm:$0xf]
    %v1630 = vld [vmem:[#allocation14 + $0xa4] sm:$0xf]
    %v1631 = vld [vmem:[#allocation14 + $0xa8] sm:$0xf]
    %v1632 = vld [vmem:[#allocation14 + $0xac] sm:$0xf]
    %v1633 = vld [vmem:[#allocation14 + $0xb0] sm:$0xf]
    %v1634 = vld [vmem:[#allocation14 + $0xb4] sm:$0xf]
    %v1635 = vld [vmem:[#allocation14 + $0xb8] sm:$0xf]
    %v1636 = vld [vmem:[#allocation14 + $0xbc] sm:$0xf]
    %v1637 = vld [vmem:[#allocation14 + $0xc0] sm:$0xf]
    %v1638 = vld [vmem:[#allocation14 + $0xc4] sm:$0xf]
    %v1639 = vld [vmem:[#allocation14 + $0xc8] sm:$0xf]
    %v1640 = vld [vmem:[#allocation14 + $0xcc] sm:$0xf]
    %v1641 = vld [vmem:[#allocation14 + $0xd0] sm:$0xf]
    %v1642 = vld [vmem:[#allocation14 + $0xd4] sm:$0xf]
    %v1643 = vld [vmem:[#allocation14 + $0xd8] sm:$0xf]
    %v1644 = vld [vmem:[#allocation14 + $0xdc] sm:$0xf]
    %v1645 = vld [vmem:[#allocation14 + $0xe0] sm:$0xf]
    %v1646 = vld [vmem:[#allocation14 + $0xe4] sm:$0xf]
    %v1647 = vld [vmem:[#allocation14 + $0xe8] sm:$0xf]
    %v1648 = vld [vmem:[#allocation14 + $0xec] sm:$0xf]
    %v1649 = vld [vmem:[#allocation14 + $0xf0] sm:$0xf]
    %v1650 = vld [vmem:[#allocation14 + $0xf4] sm:$0xf]
    %v1651 = vld [vmem:[#allocation14 + $0xf8] sm:$0xf]
    %v1652 = vld [vmem:[#allocation14 + $0xfc] sm:$0xf]
    %v1717 = vunpack.c.l.b16 %v1589
    %v1718 = vunpack.c.l.b16 %v1590
    %v1719 = vunpack.c.l.b16 %v1591
    %v1720 = vunpack.c.l.b16 %v1592
    %v1721 = vunpack.c.l.b16 %v1593
    %v1722 = vunpack.c.l.b16 %v1594
    %v1723 = vunpack.c.l.b16 %v1595
    %v1724 = vunpack.c.l.b16 %v1596
    %v1725 = vunpack.c.l.b16 %v1597
    %v1726 = vunpack.c.l.b16 %v1598
    %v1727 = vunpack.c.l.b16 %v1599
    %v1728 = vunpack.c.l.b16 %v1600
    %v1729 = vunpack.c.l.b16 %v1601
    %v1730 = vunpack.c.l.b16 %v1602
    %v1731 = vunpack.c.l.b16 %v1603
    %v1732 = vunpack.c.l.b16 %v1604
    %v1733 = vunpack.c.l.b16 %v1605
    %v1734 = vunpack.c.l.b16 %v1606
    %v1735 = vunpack.c.l.b16 %v1607
    %v1736 = vunpack.c.l.b16 %v1608
    %v1737 = vunpack.c.l.b16 %v1609
    %v1738 = vunpack.c.l.b16 %v1610
    %v1739 = vunpack.c.l.b16 %v1611
    %v1740 = vunpack.c.l.b16 %v1612
    %v1741 = vunpack.c.l.b16 %v1613
    %v1742 = vunpack.c.l.b16 %v1614
    %v1743 = vunpack.c.l.b16 %v1615
    %v1744 = vunpack.c.l.b16 %v1616
    %v1745 = vunpack.c.l.b16 %v1617
    %v1746 = vunpack.c.l.b16 %v1618
    %v1747 = vunpack.c.l.b16 %v1619
    %v1748 = vunpack.c.l.b16 %v1620
    %v1749 = vunpack.c.l.b16 %v1621
    %v1750 = vunpack.c.l.b16 %v1622
    %v1751 = vunpack.c.l.b16 %v1623
    %v1752 = vunpack.c.l.b16 %v1624
    %v1753 = vunpack.c.l.b16 %v1625
    %v1754 = vunpack.c.l.b16 %v1626
    %v1755 = vunpack.c.l.b16 %v1627
    %v1756 = vunpack.c.l.b16 %v1628
    %v1757 = vunpack.c.l.b16 %v1629
    %v1758 = vunpack.c.l.b16 %v1630
    %v1759 = vunpack.c.l.b16 %v1631
    %v1760 = vunpack.c.l.b16 %v1632
    %v1761 = vunpack.c.l.b16 %v1633
    %v1762 = vunpack.c.l.b16 %v1634
    %v1763 = vunpack.c.l.b16 %v1635
    %v1764 = vunpack.c.l.b16 %v1636
    %v1765 = vunpack.c.l.b16 %v1637
    %v1766 = vunpack.c.l.b16 %v1638
    %v1767 = vunpack.c.l.b16 %v1639
    %v1768 = vunpack.c.l.b16 %v1640
    %v1769 = vunpack.c.l.b16 %v1641
    %v1770 = vunpack.c.l.b16 %v1642
    %v1771 = vunpack.c.l.b16 %v1643
    %v1772 = vunpack.c.l.b16 %v1644
    %v1773 = vunpack.c.l.b16 %v1645
    %v1774 = vunpack.c.l.b16 %v1646
    %v1775 = vunpack.c.l.b16 %v1647
    %v1776 = vunpack.c.l.b16 %v1648
    %v1777 = vunpack.c.l.b16 %v1649
    %v1778 = vunpack.c.l.b16 %v1650
    %v1779 = vunpack.c.l.b16 %v1651
    %v1780 = vunpack.c.l.b16 %v1652
    %v1781 = vpack.c.b16 %v1718, %v1717
    %v1782 = vpack.c.b16 %v1720, %v1719
    %v1783 = vpack.c.b16 %v1722, %v1721
    %v1784 = vpack.c.b16 %v1724, %v1723
    %v1785 = vpack.c.b16 %v1726, %v1725
    %v1786 = vpack.c.b16 %v1728, %v1727
    %v1787 = vpack.c.b16 %v1730, %v1729
    %v1788 = vpack.c.b16 %v1732, %v1731
    %v1789 = vpack.c.b16 %v1734, %v1733
    %v1790 = vpack.c.b16 %v1736, %v1735
    %v1791 = vpack.c.b16 %v1738, %v1737
    %v1792 = vpack.c.b16 %v1740, %v1739
    %v1793 = vpack.c.b16 %v1742, %v1741
    %v1794 = vpack.c.b16 %v1744, %v1743
    %v1795 = vpack.c.b16 %v1746, %v1745
    %v1796 = vpack.c.b16 %v1748, %v1747
    %v1797 = vpack.c.b16 %v1750, %v1749
    %v1798 = vpack.c.b16 %v1752, %v1751
    %v1799 = vpack.c.b16 %v1754, %v1753
    %v1800 = vpack.c.b16 %v1756, %v1755
    %v1801 = vpack.c.b16 %v1758, %v1757
    %v1802 = vpack.c.b16 %v1760, %v1759
    %v1803 = vpack.c.b16 %v1762, %v1761
    %v1804 = vpack.c.b16 %v1764, %v1763
    %v1805 = vpack.c.b16 %v1766, %v1765
    %v1806 = vpack.c.b16 %v1768, %v1767
    %v1807 = vpack.c.b16 %v1770, %v1769
    %v1808 = vpack.c.b16 %v1772, %v1771
    %v1809 = vpack.c.b16 %v1774, %v1773
    %v1810 = vpack.c.b16 %v1776, %v1775
    %v1811 = vpack.c.b16 %v1778, %v1777
    %v1812 = vpack.c.b16 %v1780, %v1779
    %1845 = vmatprep.subr.bf16.mxu0 0
    %1846 = vmatpush1.bf16.msra.mxu0 %v1781
    %1847 = vmatprep.subr.bf16.mxu0 0
    %1848 = vmatpush1.bf16.msra.mxu0 %v1782
    %1849 = vmatprep.subr.bf16.mxu0 0
    %1850 = vmatpush1.bf16.msra.mxu0 %v1783
    %1851 = vmatprep.subr.bf16.mxu0 0
    %1852 = vmatpush1.bf16.msra.mxu0 %v1784
    %1853 = vmatprep.subr.bf16.mxu0 0
    %1854 = vmatpush1.bf16.msra.mxu0 %v1785
    %1855 = vmatprep.subr.bf16.mxu0 0
    %1856 = vmatpush1.bf16.msra.mxu0 %v1786
    %1857 = vmatprep.subr.bf16.mxu0 0
    %1858 = vmatpush1.bf16.msra.mxu0 %v1787
    %1859 = vmatprep.subr.bf16.mxu0 0
    %1860 = vmatpush1.bf16.msra.mxu0 %v1788
    %1861 = vmatprep.subr.bf16.mxu0 0
    %1862 = vmatpush1.bf16.msra.mxu0 %v1789
    %1863 = vmatprep.subr.bf16.mxu0 0
    %1864 = vmatpush1.bf16.msra.mxu0 %v1790
    %1865 = vmatprep.subr.bf16.mxu0 0
    %1866 = vmatpush1.bf16.msra.mxu0 %v1791
    %1867 = vmatprep.subr.bf16.mxu0 0
    %1868 = vmatpush1.bf16.msra.mxu0 %v1792
    %1869 = vmatprep.subr.bf16.mxu0 0
    %1870 = vmatpush1.bf16.msra.mxu0 %v1793
    %1871 = vmatprep.subr.bf16.mxu0 0
    %1872 = vmatpush1.bf16.msra.mxu0 %v1794
    %1873 = vmatprep.subr.bf16.mxu0 0
    %1874 = vmatpush1.bf16.msra.mxu0 %v1795
    %1875 = vmatprep.subr.bf16.mxu0 0
    %1876 = vmatpush1.bf16.msra.mxu0 %v1796
    %1877 = vmatprep.mubr.bf16.mxu0 %v1586
    %1878 = vmatmul.mubr.bf16.gmra.mrb[0].mxu0 %v1585
    %v1879 = vpop.f32.mrb[0].mxu0
    %v1880 = vadd.f32 0.0, %v1879
    %v1881 = vpop.f32.mrb[0].mxu0
    %v1882 = vpop.f32.mrb[0].mxu0
    %v1883 = vadd.f32 0.0, %v1882
    %v1884 = vpop.f32.mrb[0].mxu0
    %1885 = vdwg.mxu0
    %1886 = vmatprep.subr.bf16.mxu0 0
    %1887 = vmatpush1.bf16.msra.mxu0 %v1797
    %1888 = vmatprep.subr.bf16.mxu0 0
    %1889 = vmatpush1.bf16.msra.mxu0 %v1798
    %1890 = vmatprep.subr.bf16.mxu0 0
    %1891 = vmatpush1.bf16.msra.mxu0 %v1799
    %1892 = vmatprep.subr.bf16.mxu0 0
    %1893 = vmatpush1.bf16.msra.mxu0 %v1800
    %1894 = vmatprep.subr.bf16.mxu0 0
    %1895 = vmatpush1.bf16.msra.mxu0 %v1801
    %1896 = vmatprep.subr.bf16.mxu0 0
    %1897 = vmatpush1.bf16.msra.mxu0 %v1802
    %1898 = vmatprep.subr.bf16.mxu0 0
    %1899 = vmatpush1.bf16.msra.mxu0 %v1803
    %1900 = vmatprep.subr.bf16.mxu0 0
    %1901 = vmatpush1.bf16.msra.mxu0 %v1804
    %1902 = vmatprep.subr.bf16.mxu0 0
    %1903 = vmatpush1.bf16.msra.mxu0 %v1805
    %1904 = vmatprep.subr.bf16.mxu0 0
    %1905 = vmatpush1.bf16.msra.mxu0 %v1806
    %1906 = vmatprep.subr.bf16.mxu0 0
    %1907 = vmatpush1.bf16.msra.mxu0 %v1807
    %1908 = vmatprep.subr.bf16.mxu0 0
    %1909 = vmatpush1.bf16.msra.mxu0 %v1808
    %1910 = vmatprep.subr.bf16.mxu0 0
    %1911 = vmatpush1.bf16.msra.mxu0 %v1809
    %1912 = vmatprep.subr.bf16.mxu0 0
    %1913 = vmatpush1.bf16.msra.mxu0 %v1810
    %1914 = vmatprep.subr.bf16.mxu0 0
    %1915 = vmatpush1.bf16.msra.mxu0 %v1811
    %1916 = vmatprep.subr.bf16.mxu0 0
    %1917 = vmatpush1.bf16.msra.mxu0 %v1812
    %1918 = vmatprep.mubr.bf16.mxu0 %v1588
    %1919 = vmatmul.mubr.bf16.gmra.mrb[0].mxu0 %v1587
    %v1920 = vpop.f32.mrb[0].mxu0
    %v1921 = vadd.f32 %v1880, %v1920
    %v1922 = vpop.f32.mrb[0].mxu0
    %v1923 = vpop.f32.mrb[0].mxu0
    %v1924 = vadd.f32 %v1883, %v1923
    %v1925 = vpop.f32.mrb[0].mxu0
    %1926 = vdwg.mxu0
    %v1927 = vadd.f32 %v1210, %v1921
    %v1928 = vadd.f32 %v1211, %v1924
    %v1929 = vld [vmem:[#allocation16] sm:$0x1]
    %v1931 = vlaneseq
    %v1932 = vshrl.u32 %v1931, 7
    %v1933 = vsub.s32 0, %v1932
    %v1934 = vrot.slane %v1929, %v1933
    %v1936 = vadd.f32 %v1927, %v1934
    %v1937 = vadd.f32 %v1928, %v1934
    %v1938 = vld [vmem:[#allocation17] sm:$0x1]
    %v1939 = vld [vmem:[#allocation19] sm:$0x1]
    %1940 = vadd.xlane.f32.xlu0 %v1936
    %v1941 = vpop.xlane.xlu0 %1940
    %1942 = vadd.xlane.f32.xlu0 %v1937
    %v1943 = vpop.xlane.xlu0 %1942
    %v1944 = vmul.f32 %v1941, %v231
    %v1945 = vmul.f32 %v1943, %v231
    %v1946 = vsub.f32 %v1936, %v1944
    %v1947 = vsub.f32 %v1937, %v1945
    %v1948 = vmul.f32 %v1946, %v1946
    %v1949 = vmul.f32 %v1947, %v1947
    %1950 = vadd.xlane.f32.xlu0 %v1948
    %v1951 = vpop.xlane.xlu0 %1950
    %1952 = vadd.xlane.f32.xlu0 %v1949
    %v1953 = vpop.xlane.xlu0 %1952
    %v1954 = vmul.f32 %v1951, %v231
    %v1955 = vmul.f32 %v1953, %v231
    %v1956 = vadd.f32 %v1954, 1e-12
    %v1957 = vadd.f32 %v1955, 1e-12
    %v1958 = vrsqrt.pop %v1956
    %v1959 = vrsqrt.pop %v1957
    %v1960 = vmul.f32 %v1946, %v1958
    %v1961 = vmul.f32 %v1947, %v1959
    %v1963 = vlaneseq
    %v1964 = vshrl.u32 %v1963, 7
    %v1965 = vsub.s32 0, %v1964
    %v1966 = vrot.slane %v1938, %v1965
    %v1968 = vmul.f32 %v1960, %v1966
    %v1969 = vmul.f32 %v1961, %v1966
    %v1971 = vlaneseq
    %v1972 = vshrl.u32 %v1971, 7
    %v1973 = vsub.s32 0, %v1972
    %v1974 = vrot.slane %v1939, %v1973
    %v1976 = vadd.f32 %v1968, %v1974
    %v1977 = vadd.f32 %v1969, %v1974
    %s1978 = scalar_lea.vmem [#allocation5], 384
    %v1979 = vld [vmem:[%s1978] sm:$0xff]
    %v1980 = vld [vmem:[%s1978 + $0x8] sm:$0xff]
    %v1981 = vld [vmem:[%s1978 + $0x10] sm:$0xff]
    %v1982 = vld [vmem:[%s1978 + $0x18] sm:$0xff]
    %v1983 = vld [vmem:[%s1978 + $0x20] sm:$0xff]
    %v1984 = vld [vmem:[%s1978 + $0x28] sm:$0xff]
    %v1985 = vld [vmem:[%s1978 + $0x30] sm:$0xff]
    %v1986 = vld [vmem:[%s1978 + $0x38] sm:$0xff]
    %v1987 = vld [vmem:[%s1978 + $0x40] sm:$0xff]
    %v1988 = vld [vmem:[%s1978 + $0x48] sm:$0xff]
    %v1989 = vld [vmem:[%s1978 + $0x50] sm:$0xff]
    %v1990 = vld [vmem:[%s1978 + $0x58] sm:$0xff]
    %v1991 = vld [vmem:[%s1978 + $0x60] sm:$0xff]
    %v1992 = vld [vmem:[%s1978 + $0x68] sm:$0xff]
    %v1993 = vld [vmem:[%s1978 + $0x70] sm:$0xff]
    %v1994 = vld [vmem:[%s1978 + $0x78] sm:$0xff]
    %v1995 = vld [vmem:[%s1978 + $0x80] sm:$0xff]
    %v1996 = vld [vmem:[%s1978 + $0x88] sm:$0xff]
    %v1997 = vld [vmem:[%s1978 + $0x90] sm:$0xff]
    %v1998 = vld [vmem:[%s1978 + $0x98] sm:$0xff]
    %v1999 = vld [vmem:[%s1978 + $0xa0] sm:$0xff]
    %v2000 = vld [vmem:[%s1978 + $0xa8] sm:$0xff]
    %v2001 = vld [vmem:[%s1978 + $0xb0] sm:$0xff]
    %v2002 = vld [vmem:[%s1978 + $0xb8] sm:$0xff]
    %v2003 = vld [vmem:[%s1978 + $0xc0] sm:$0xff]
    %v2004 = vld [vmem:[%s1978 + $0xc8] sm:$0xff]
    %v2005 = vld [vmem:[%s1978 + $0xd0] sm:$0xff]
    %v2006 = vld [vmem:[%s1978 + $0xd8] sm:$0xff]
    %v2007 = vld [vmem:[%s1978 + $0xe0] sm:$0xff]
    %v2008 = vld [vmem:[%s1978 + $0xe8] sm:$0xff]
    %v2009 = vld [vmem:[%s1978 + $0xf0] sm:$0xff]
    %v2010 = vld [vmem:[%s1978 + $0xf8] sm:$0xff]
    %v2011 = vld [vmem:[%s1978 + $0x100] sm:$0xff]
    %v2012 = vld [vmem:[%s1978 + $0x108] sm:$0xff]
    %v2013 = vld [vmem:[%s1978 + $0x110] sm:$0xff]
    %v2014 = vld [vmem:[%s1978 + $0x118] sm:$0xff]
    %v2015 = vld [vmem:[%s1978 + $0x120] sm:$0xff]
    %v2016 = vld [vmem:[%s1978 + $0x128] sm:$0xff]
    %v2017 = vld [vmem:[%s1978 + $0x130] sm:$0xff]
    %v2018 = vld [vmem:[%s1978 + $0x138] sm:$0xff]
    %v2019 = vld [vmem:[%s1978 + $0x140] sm:$0xff]
    %v2020 = vld [vmem:[%s1978 + $0x148] sm:$0xff]
    %v2021 = vld [vmem:[%s1978 + $0x150] sm:$0xff]
    %v2022 = vld [vmem:[%s1978 + $0x158] sm:$0xff]
    %v2023 = vld [vmem:[%s1978 + $0x160] sm:$0xff]
    %v2024 = vld [vmem:[%s1978 + $0x168] sm:$0xff]
    %v2025 = vld [vmem:[%s1978 + $0x170] sm:$0xff]
    %v2026 = vld [vmem:[%s1978 + $0x178] sm:$0xff]
    %v2027 = vpack.c.bf16 %v1977, %v1976
    %s2028 = scalar_lea.vmem [#allocation7], 6
    %v2029 = vld [vmem:[%s2028] sm:$0x3f]
    %v2031 = vlaneseq
    %v2032 = vshrl.u32 %v2031, 7
    %v2033 = vsub.s32 0, %v2032
    %v2034 = vrot.slane %v2029, %v2033
    %v2035 = vlaneseq
    %v2036 = vshrl.u32 %v2035, 7
    %v2037 = vsub.s32 1, %v2036
    %v2038 = vrot.slane %v2029, %v2037
    %v2039 = vlaneseq
    %v2040 = vshrl.u32 %v2039, 7
    %v2041 = vsub.s32 2, %v2040
    %v2042 = vrot.slane %v2029, %v2041
    %v2043 = vlaneseq
    %v2044 = vshrl.u32 %v2043, 7
    %v2045 = vsub.s32 3, %v2044
    %v2046 = vrot.slane %v2029, %v2045
    %v2047 = vlaneseq
    %v2048 = vshrl.u32 %v2047, 7
    %v2049 = vsub.s32 4, %v2048
    %v2050 = vrot.slane %v2029, %v2049
    %v2051 = vlaneseq
    %v2052 = vshrl.u32 %v2051, 7
    %v2053 = vsub.s32 5, %v2052
    %v2054 = vrot.slane %v2029, %v2053
    %v2109 = vunpack.c.l.b16 %v1979
    %v2110 = vunpack.c.h.b16 %v1979
    %v2111 = vunpack.c.l.b16 %v1980
    %v2112 = vunpack.c.h.b16 %v1980
    %v2113 = vunpack.c.l.b16 %v1981
    %v2114 = vunpack.c.h.b16 %v1981
    %v2115 = vunpack.c.l.b16 %v1982
    %v2116 = vunpack.c.h.b16 %v1982
    %v2117 = vunpack.c.l.b16 %v1983
    %v2118 = vunpack.c.h.b16 %v1983
    %v2119 = vunpack.c.l.b16 %v1984
    %v2120 = vunpack.c.h.b16 %v1984
    %v2121 = vunpack.c.l.b16 %v1985
    %v2122 = vunpack.c.h.b16 %v1985
    %v2123 = vunpack.c.l.b16 %v1986
    %v2124 = vunpack.c.h.b16 %v1986
    %v2125 = vunpack.c.l.b16 %v1987
    %v2126 = vunpack.c.h.b16 %v1987
    %v2127 = vunpack.c.l.b16 %v1988
    %v2128 = vunpack.c.h.b16 %v1988
    %v2129 = vunpack.c.l.b16 %v1989
    %v2130 = vunpack.c.h.b16 %v1989
    %v2131 = vunpack.c.l.b16 %v1990
    %v2132 = vunpack.c.h.b16 %v1990
    %v2133 = vunpack.c.l.b16 %v1991
    %v2134 = vunpack.c.h.b16 %v1991
    %v2135 = vunpack.c.l.b16 %v1992
    %v2136 = vunpack.c.h.b16 %v1992
    %v2137 = vunpack.c.l.b16 %v1993
    %v2138 = vunpack.c.h.b16 %v1993
    %v2139 = vunpack.c.l.b16 %v1994
    %v2140 = vunpack.c.h.b16 %v1994
    %v2141 = vunpack.c.l.b16 %v1995
    %v2142 = vunpack.c.h.b16 %v1995
    %v2143 = vunpack.c.l.b16 %v1996
    %v2144 = vunpack.c.h.b16 %v1996
    %v2145 = vunpack.c.l.b16 %v1997
    %v2146 = vunpack.c.h.b16 %v1997
    %v2147 = vunpack.c.l.b16 %v1998
    %v2148 = vunpack.c.h.b16 %v1998
    %v2149 = vunpack.c.l.b16 %v1999
    %v2150 = vunpack.c.h.b16 %v1999
    %v2151 = vunpack.c.l.b16 %v2000
    %v2152 = vunpack.c.h.b16 %v2000
    %v2153 = vunpack.c.l.b16 %v2001
    %v2154 = vunpack.c.h.b16 %v2001
    %v2155 = vunpack.c.l.b16 %v2002
    %v2156 = vunpack.c.h.b16 %v2002
    %v2157 = vunpack.c.l.b16 %v2003
    %v2158 = vunpack.c.h.b16 %v2003
    %v2159 = vunpack.c.l.b16 %v2004
    %v2160 = vunpack.c.h.b16 %v2004
    %v2161 = vunpack.c.l.b16 %v2005
    %v2162 = vunpack.c.h.b16 %v2005
    %v2163 = vunpack.c.l.b16 %v2006
    %v2164 = vunpack.c.h.b16 %v2006
    %v2165 = vunpack.c.l.b16 %v2007
    %v2166 = vunpack.c.h.b16 %v2007
    %v2167 = vunpack.c.l.b16 %v2008
    %v2168 = vunpack.c.h.b16 %v2008
    %v2169 = vunpack.c.l.b16 %v2009
    %v2170 = vunpack.c.h.b16 %v2009
    %v2171 = vunpack.c.l.b16 %v2010
    %v2172 = vunpack.c.h.b16 %v2010
    %v2173 = vunpack.c.l.b16 %v2011
    %v2174 = vunpack.c.h.b16 %v2011
    %v2175 = vunpack.c.l.b16 %v2012
    %v2176 = vunpack.c.h.b16 %v2012
    %v2177 = vunpack.c.l.b16 %v2013
    %v2178 = vunpack.c.h.b16 %v2013
    %v2179 = vunpack.c.l.b16 %v2014
    %v2180 = vunpack.c.h.b16 %v2014
    %v2181 = vunpack.c.l.b16 %v2015
    %v2182 = vunpack.c.h.b16 %v2015
    %v2183 = vunpack.c.l.b16 %v2016
    %v2184 = vunpack.c.h.b16 %v2016
    %v2185 = vunpack.c.l.b16 %v2017
    %v2186 = vunpack.c.h.b16 %v2017
    %v2187 = vunpack.c.l.b16 %v2018
    %v2188 = vunpack.c.h.b16 %v2018
    %v2189 = vunpack.c.l.b16 %v2019
    %v2190 = vunpack.c.h.b16 %v2019
    %v2191 = vunpack.c.l.b16 %v2020
    %v2192 = vunpack.c.h.b16 %v2020
    %v2193 = vunpack.c.l.b16 %v2021
    %v2194 = vunpack.c.h.b16 %v2021
    %v2195 = vunpack.c.l.b16 %v2022
    %v2196 = vunpack.c.h.b16 %v2022
    %v2197 = vunpack.c.l.b16 %v2023
    %v2198 = vunpack.c.h.b16 %v2023
    %v2199 = vunpack.c.l.b16 %v2024
    %v2200 = vunpack.c.h.b16 %v2024
    %v2201 = vunpack.c.l.b16 %v2025
    %v2202 = vunpack.c.h.b16 %v2025
    %v2203 = vunpack.c.l.b16 %v2026
    %v2204 = vunpack.c.h.b16 %v2026
    %v2205 = vpack.c.b16 %v2115, %v2109
    %v2206 = vpack.c.b16 %v2116, %v2110
    %v2207 = vpack.c.b16 %v2117, %v2111
    %v2208 = vpack.c.b16 %v2118, %v2112
    %v2209 = vpack.c.b16 %v2119, %v2113
    %v2210 = vpack.c.b16 %v2120, %v2114
    %v2211 = vpack.c.b16 %v2127, %v2121
    %v2212 = vpack.c.b16 %v2128, %v2122
    %v2213 = vpack.c.b16 %v2129, %v2123
    %v2214 = vpack.c.b16 %v2130, %v2124
    %v2215 = vpack.c.b16 %v2131, %v2125
    %v2216 = vpack.c.b16 %v2132, %v2126
    %v2217 = vpack.c.b16 %v2139, %v2133
    %v2218 = vpack.c.b16 %v2140, %v2134
    %v2219 = vpack.c.b16 %v2141, %v2135
    %v2220 = vpack.c.b16 %v2142, %v2136
    %v2221 = vpack.c.b16 %v2143, %v2137
    %v2222 = vpack.c.b16 %v2144, %v2138
    %v2223 = vpack.c.b16 %v2151, %v2145
    %v2224 = vpack.c.b16 %v2152, %v2146
    %v2225 = vpack.c.b16 %v2153, %v2147
    %v2226 = vpack.c.b16 %v2154, %v2148
    %v2227 = vpack.c.b16 %v2155, %v2149
    %v2228 = vpack.c.b16 %v2156, %v2150
    %v2229 = vpack.c.b16 %v2163, %v2157
    %v2230 = vpack.c.b16 %v2164, %v2158
    %v2231 = vpack.c.b16 %v2165, %v2159
    %v2232 = vpack.c.b16 %v2166, %v2160
    %v2233 = vpack.c.b16 %v2167, %v2161
    %v2234 = vpack.c.b16 %v2168, %v2162
    %v2235 = vpack.c.b16 %v2175, %v2169
    %v2236 = vpack.c.b16 %v2176, %v2170
    %v2237 = vpack.c.b16 %v2177, %v2171
    %v2238 = vpack.c.b16 %v2178, %v2172
    %v2239 = vpack.c.b16 %v2179, %v2173
    %v2240 = vpack.c.b16 %v2180, %v2174
    %v2241 = vpack.c.b16 %v2187, %v2181
    %v2242 = vpack.c.b16 %v2188, %v2182
    %v2243 = vpack.c.b16 %v2189, %v2183
    %v2244 = vpack.c.b16 %v2190, %v2184
    %v2245 = vpack.c.b16 %v2191, %v2185
    %v2246 = vpack.c.b16 %v2192, %v2186
    %v2247 = vpack.c.b16 %v2199, %v2193
    %v2248 = vpack.c.b16 %v2200, %v2194
    %v2249 = vpack.c.b16 %v2201, %v2195
    %v2250 = vpack.c.b16 %v2202, %v2196
    %v2251 = vpack.c.b16 %v2203, %v2197
    %v2252 = vpack.c.b16 %v2204, %v2198
    %2301 = vmatprep.subr.bf16.mxu0 %v2206
    %2302 = vmatpush1.bf16.msra.mxu0 %v2205
    %2303 = vmatprep.subr.bf16.mxu0 %v2212
    %2304 = vmatpush1.bf16.msra.mxu0 %v2211
    %2305 = vmatprep.subr.bf16.mxu0 %v2218
    %2306 = vmatpush1.bf16.msra.mxu0 %v2217
    %2307 = vmatprep.subr.bf16.mxu0 %v2224
    %2308 = vmatpush1.bf16.msra.mxu0 %v2223
    %2309 = vmatprep.subr.bf16.mxu0 %v2230
    %2310 = vmatpush1.bf16.msra.mxu0 %v2229
    %2311 = vmatprep.subr.bf16.mxu0 %v2236
    %2312 = vmatpush1.bf16.msra.mxu0 %v2235
    %2313 = vmatprep.subr.bf16.mxu0 %v2242
    %2314 = vmatpush1.bf16.msra.mxu0 %v2241
    %2315 = vmatprep.subr.bf16.mxu0 %v2248
    %2316 = vmatpush1.bf16.msra.mxu0 %v2247
    %2317 = vmatprep.subr.bf16.mxu0 0
    %2318 = vmatpush1.bf16.msra.mxu0 0
    %2319 = vmatprep.subr.bf16.mxu0 0
    %2320 = vmatpush1.bf16.msra.mxu0 0
    %2321 = vmatprep.subr.bf16.mxu0 0
    %2322 = vmatpush1.bf16.msra.mxu0 0
    %2323 = vmatprep.subr.bf16.mxu0 0
    %2324 = vmatpush1.bf16.msra.mxu0 0
    %2325 = vmatprep.subr.bf16.mxu0 0
    %2326 = vmatpush1.bf16.msra.mxu0 0
    %2327 = vmatprep.subr.bf16.mxu0 0
    %2328 = vmatpush1.bf16.msra.mxu0 0
    %2329 = vmatprep.subr.bf16.mxu0 0
    %2330 = vmatpush1.bf16.msra.mxu0 0
    %2331 = vmatprep.subr.bf16.mxu0 0
    %2332 = vmatpush1.bf16.msra.mxu0 0
    %2333 = vmatprep.mubr.bf16.mxu0 0
    %2334 = vmatmul.mubr.bf16.gmra.mrb[0].mxu0 %v2027
    %v2335 = vpop.f32.mrb[0].mxu0
    %v2336 = vadd.f32 %v2034, %v2335
    %v2337 = vpop.f32.mrb[0].mxu0
    %v2338 = vadd.f32 %v2038, %v2337
    %v2339 = vpop.f32.mrb[0].mxu0
    %v2340 = vadd.f32 %v2034, %v2339
    %v2341 = vpop.f32.mrb[0].mxu0
    %v2342 = vadd.f32 %v2038, %v2341
    %2343 = vdwg.mxu0
    %2344 = vmatprep.subr.bf16.mxu0 %v2208
    %2345 = vmatpush1.bf16.msra.mxu0 %v2207
    %2346 = vmatprep.subr.bf16.mxu0 %v2214
    %2347 = vmatpush1.bf16.msra.mxu0 %v2213
    %2348 = vmatprep.subr.bf16.mxu0 %v2220
    %2349 = vmatpush1.bf16.msra.mxu0 %v2219
    %2350 = vmatprep.subr.bf16.mxu0 %v2226
    %2351 = vmatpush1.bf16.msra.mxu0 %v2225
    %2352 = vmatprep.subr.bf16.mxu0 %v2232
    %2353 = vmatpush1.bf16.msra.mxu0 %v2231
    %2354 = vmatprep.subr.bf16.mxu0 %v2238
    %2355 = vmatpush1.bf16.msra.mxu0 %v2237
    %2356 = vmatprep.subr.bf16.mxu0 %v2244
    %2357 = vmatpush1.bf16.msra.mxu0 %v2243
    %2358 = vmatprep.subr.bf16.mxu0 %v2250
    %2359 = vmatpush1.bf16.msra.mxu0 %v2249
    %2360 = vmatprep.subr.bf16.mxu0 0
    %2361 = vmatpush1.bf16.msra.mxu0 0
    %2362 = vmatprep.subr.bf16.mxu0 0
    %2363 = vmatpush1.bf16.msra.mxu0 0
    %2364 = vmatprep.subr.bf16.mxu0 0
    %2365 = vmatpush1.bf16.msra.mxu0 0
    %2366 = vmatprep.subr.bf16.mxu0 0
    %2367 = vmatpush1.bf16.msra.mxu0 0
    %2368 = vmatprep.subr.bf16.mxu0 0
    %2369 = vmatpush1.bf16.msra.mxu0 0
    %2370 = vmatprep.subr.bf16.mxu0 0
    %2371 = vmatpush1.bf16.msra.mxu0 0
    %2372 = vmatprep.subr.bf16.mxu0 0
    %2373 = vmatpush1.bf16.msra.mxu0 0
    %2374 = vmatprep.subr.bf16.mxu0 0
    %2375 = vmatpush1.bf16.msra.mxu0 0
    %2376 = vmatprep.mubr.bf16.mxu0 0
    %2377 = vmatmul.mubr.bf16.gmra.mrb[0].mxu0 %v2027
    %v2378 = vpop.f32.mrb[0].mxu0
    %v2379 = vadd.f32 %v2042, %v2378
    %v2380 = vpop.f32.mrb[0].mxu0
    %v2381 = vadd.f32 %v2046, %v2380
    %v2382 = vpop.f32.mrb[0].mxu0
    %v2383 = vadd.f32 %v2042, %v2382
    %v2384 = vpop.f32.mrb[0].mxu0
    %v2385 = vadd.f32 %v2046, %v2384
    %2386 = vdwg.mxu0
    %2387 = vmatprep.subr.bf16.mxu0 %v2210
    %2388 = vmatpush1.bf16.msra.mxu0 %v2209
    %2389 = vmatprep.subr.bf16.mxu0 %v2216
    %2390 = vmatpush1.bf16.msra.mxu0 %v2215
    %2391 = vmatprep.subr.bf16.mxu0 %v2222
    %2392 = vmatpush1.bf16.msra.mxu0 %v2221
    %2393 = vmatprep.subr.bf16.mxu0 %v2228
    %2394 = vmatpush1.bf16.msra.mxu0 %v2227
    %2395 = vmatprep.subr.bf16.mxu0 %v2234
    %2396 = vmatpush1.bf16.msra.mxu0 %v2233
    %2397 = vmatprep.subr.bf16.mxu0 %v2240
    %2398 = vmatpush1.bf16.msra.mxu0 %v2239
    %2399 = vmatprep.subr.bf16.mxu0 %v2246
    %2400 = vmatpush1.bf16.msra.mxu0 %v2245
    %2401 = vmatprep.subr.bf16.mxu0 %v2252
    %2402 = vmatpush1.bf16.msra.mxu0 %v2251
    %2403 = vmatprep.subr.bf16.mxu0 0
    %2404 = vmatpush1.bf16.msra.mxu0 0
    %2405 = vmatprep.subr.bf16.mxu0 0
    %2406 = vmatpush1.bf16.msra.mxu0 0
    %2407 = vmatprep.subr.bf16.mxu0 0
    %2408 = vmatpush1.bf16.msra.mxu0 0
    %2409 = vmatprep.subr.bf16.mxu0 0
    %2410 = vmatpush1.bf16.msra.mxu0 0
    %2411 = vmatprep.subr.bf16.mxu0 0
    %2412 = vmatpush1.bf16.msra.mxu0 0
    %2413 = vmatprep.subr.bf16.mxu0 0
    %2414 = vmatpush1.bf16.msra.mxu0 0
    %2415 = vmatprep.subr.bf16.mxu0 0
    %2416 = vmatpush1.bf16.msra.mxu0 0
    %2417 = vmatprep.subr.bf16.mxu0 0
    %2418 = vmatpush1.bf16.msra.mxu0 0
    %2419 = vmatprep.mubr.bf16.mxu0 0
    %2420 = vmatmul.mubr.bf16.gmra.mrb[0].mxu0 %v2027
    %v2421 = vpop.f32.mrb[0].mxu0
    %v2422 = vadd.f32 %v2050, %v2421
    %v2423 = vpop.f32.mrb[0].mxu0
    %v2424 = vadd.f32 %v2054, %v2423
    %v2425 = vpop.f32.mrb[0].mxu0
    %v2426 = vadd.f32 %v2050, %v2425
    %v2427 = vpop.f32.mrb[0].mxu0
    %v2428 = vadd.f32 %v2054, %v2427
    %2429 = vdwg.mxu0
    %s2430 = scalar_lea.vmem %s6, 128
    %v2431 = vld [vmem:[%s2430] sm:$0xf]
    %v2432 = vld [vmem:[%s2430 + $0x4] sm:$0xf]
    %v2433 = vld [vmem:[%s2430 + $0x8] sm:$0xf]
    %v2434 = vld [vmem:[%s2430 + $0xc] sm:$0xf]
    %v2435 = vld [vmem:[%s2430 + $0x10] sm:$0xf]
    %v2436 = vld [vmem:[%s2430 + $0x14] sm:$0xf]
    %v2437 = vld [vmem:[%s2430 + $0x18] sm:$0xf]
    %v2438 = vld [vmem:[%s2430 + $0x1c] sm:$0xf]
    %v2439 = vld [vmem:[%s2430 + $0x20] sm:$0xf]
    %v2440 = vld [vmem:[%s2430 + $0x24] sm:$0xf]
    %v2441 = vld [vmem:[%s2430 + $0x28] sm:$0xf]
    %v2442 = vld [vmem:[%s2430 + $0x2c] sm:$0xf]
    %v2443 = vld [vmem:[%s2430 + $0x30] sm:$0xf]
    %v2444 = vld [vmem:[%s2430 + $0x34] sm:$0xf]
    %v2445 = vld [vmem:[%s2430 + $0x38] sm:$0xf]
    %v2446 = vld [vmem:[%s2430 + $0x3c] sm:$0xf]
    %v2447 = vld [vmem:[%s2430 + $0x40] sm:$0xf]
    %v2448 = vld [vmem:[%s2430 + $0x44] sm:$0xf]
    %v2449 = vld [vmem:[%s2430 + $0x48] sm:$0xf]
    %v2450 = vld [vmem:[%s2430 + $0x4c] sm:$0xf]
    %v2451 = vld [vmem:[%s2430 + $0x50] sm:$0xf]
    %v2452 = vld [vmem:[%s2430 + $0x54] sm:$0xf]
    %v2453 = vld [vmem:[%s2430 + $0x58] sm:$0xf]
    %v2454 = vld [vmem:[%s2430 + $0x5c] sm:$0xf]
    %v2455 = vld [vmem:[%s2430 + $0x60] sm:$0xf]
    %v2456 = vld [vmem:[%s2430 + $0x64] sm:$0xf]
    %v2457 = vld [vmem:[%s2430 + $0x68] sm:$0xf]
    %v2458 = vld [vmem:[%s2430 + $0x6c] sm:$0xf]
    %v2459 = vld [vmem:[%s2430 + $0x70] sm:$0xf]
    %v2460 = vld [vmem:[%s2430 + $0x74] sm:$0xf]
    %v2461 = vld [vmem:[%s2430 + $0x78] sm:$0xf]
    %v2462 = vld [vmem:[%s2430 + $0x7c] sm:$0xf]
    %v2463 = vpack.c.bf16 %v2340, %v2336
    %v2464 = vpack.c.bf16 %v2383, %v2379
    %2465 = vmatprep.subr.bf16.mxu0 0
    %2466 = vmatpush1.bf16.xpose.msra.mxu0 %v2464
    %2467 = vmatprep.subr.bf16.mxu0 0
    %2468 = vmatpush1.bf16.xpose.msra.mxu0 0
    %2469 = vmatprep.subr.bf16.mxu0 0
    %2470 = vmatpush1.bf16.xpose.msra.mxu0 0
    %2471 = vmatprep.subr.bf16.mxu0 0
    %2472 = vmatpush1.bf16.xpose.msra.mxu0 0
    %2473 = vmatprep.subr.bf16.mxu0 0
    %2474 = vmatpush1.bf16.xpose.msra.mxu0 0
    %2475 = vmatprep.subr.bf16.mxu0 0
    %2476 = vmatpush1.bf16.xpose.msra.mxu0 0
    %2477 = vmatprep.subr.bf16.mxu0 0
    %2478 = vmatpush1.bf16.xpose.msra.mxu0 0
    %2479 = vmatprep.subr.bf16.mxu0 0
    %2480 = vmatpush1.bf16.xpose.msra.mxu0 0
    %2481 = vmatprep.subr.bf16.mxu0 0
    %2482 = vmatpush1.bf16.xpose.msra.mxu0 0
    %2483 = vmatprep.subr.bf16.mxu0 0
    %2484 = vmatpush1.bf16.xpose.msra.mxu0 0
    %2485 = vmatprep.subr.bf16.mxu0 0
    %2486 = vmatpush1.bf16.xpose.msra.mxu0 0
    %2487 = vmatprep.subr.bf16.mxu0 0
    %2488 = vmatpush1.bf16.xpose.msra.mxu0 0
    %2489 = vmatprep.subr.bf16.mxu0 0
    %2490 = vmatpush1.bf16.xpose.msra.mxu0 0
    %2491 = vmatprep.subr.bf16.mxu0 0
    %2492 = vmatpush1.bf16.xpose.msra.mxu0 0
    %2493 = vmatprep.subr.bf16.mxu0 0
    %2494 = vmatpush1.bf16.xpose.msra.mxu0 0
    %2495 = vmatprep.subr.bf16.mxu0 0
    %2496 = vmatpush1.bf16.xpose.msra.mxu0 0
    %2497 = vmatprep.mubr.bf16.mxu0 0
    %2498 = vmatmul.mubr.bf16.gmra.mrb[0].mxu0 %v2463
    %v2499 = vpop.f32.mrb[0].mxu0
    %v2500 = vadd.f32 0.0, %v2499
    %v2501 = vpop.f32.mrb[0].mxu0
    %v2502 = vpop.f32.mrb[0].mxu0
    %v2503 = vadd.f32 0.0, %v2502
    %v2504 = vpop.f32.mrb[0].mxu0
    %2505 = vdwg.mxu0
    %v2506 = vmul.f32 %v2500, 0.125
    %v2507 = vmul.f32 %v2503, 0.125
    %v2508 = vadd.f32 %v2506, %v266
    %v2509 = vadd.f32 %v2507, %v267
    %v2510 = vsel %vm797, %v2508, -inf
    %2511 = vmax.xlane.f32.xlu0 %v2510
    %v2512 = vpop.xlane.xlu0 %2511
    %v2513 = vsel %vm797, %v2509, -inf
    %2514 = vmax.xlane.f32.xlu0 %v2513
    %v2515 = vpop.xlane.xlu0 %2514
    %v2516 = vsub.f32 %v2508, %v2512
    %v2517 = vsub.f32 %v2509, %v2515
    %v2518 = vmul.f32 %v2516, 1.442695
    %v2519 = vpow.pop %v2518
    %v2520 = vmul.f32 %v2517, 1.442695
    %v2521 = vpow.pop %v2520
    %v2522 = vsel %vm797, %v2519, 0.0
    %2523 = vadd.xlane.f32.xlu0 %v2522
    %v2524 = vpop.xlane.xlu0 %2523
    %v2525 = vsel %vm797, %v2521, 0.0
    %2526 = vadd.xlane.f32.xlu0 %v2525
    %v2527 = vpop.xlane.xlu0 %2526
    %v2528 = vrcp.pop %v2524
    %v2529 = vrcp.pop %v2527
    %v2530 = vmul.f32 %v2519, %v2528
    %v2531 = vmul.f32 %v2521, %v2529
    %v2532 = vpack.c.bf16 %v2531, %v2530
    %v2533 = vpack.c.bf16 %v2426, %v2422
    %v2535 = vsel %vm797, %v2532, 0
    %2537 = vmatprep.subr.bf16.mxu0 0
    %2538 = vmatpush1.bf16.msra.mxu0 %v2533
    %2539 = vmatprep.subr.bf16.mxu0 0
    %2540 = vmatpush1.bf16.msra.mxu0 0
    %2541 = vmatprep.subr.bf16.mxu0 0
    %2542 = vmatpush1.bf16.msra.mxu0 0
    %2543 = vmatprep.subr.bf16.mxu0 0
    %2544 = vmatpush1.bf16.msra.mxu0 0
    %2545 = vmatprep.subr.bf16.mxu0 0
    %2546 = vmatpush1.bf16.msra.mxu0 0
    %2547 = vmatprep.subr.bf16.mxu0 0
    %2548 = vmatpush1.bf16.msra.mxu0 0
    %2549 = vmatprep.subr.bf16.mxu0 0
    %2550 = vmatpush1.bf16.msra.mxu0 0
    %2551 = vmatprep.subr.bf16.mxu0 0
    %2552 = vmatpush1.bf16.msra.mxu0 0
    %2553 = vmatprep.subr.bf16.mxu0 0
    %2554 = vmatpush1.bf16.msra.mxu0 0
    %2555 = vmatprep.subr.bf16.mxu0 0
    %2556 = vmatpush1.bf16.msra.mxu0 0
    %2557 = vmatprep.subr.bf16.mxu0 0
    %2558 = vmatpush1.bf16.msra.mxu0 0
    %2559 = vmatprep.subr.bf16.mxu0 0
    %2560 = vmatpush1.bf16.msra.mxu0 0
    %2561 = vmatprep.subr.bf16.mxu0 0
    %2562 = vmatpush1.bf16.msra.mxu0 0
    %2563 = vmatprep.subr.bf16.mxu0 0
    %2564 = vmatpush1.bf16.msra.mxu0 0
    %2565 = vmatprep.subr.bf16.mxu0 0
    %2566 = vmatpush1.bf16.msra.mxu0 0
    %2567 = vmatprep.subr.bf16.mxu0 0
    %2568 = vmatpush1.bf16.msra.mxu0 0
    %2569 = vmatprep.mubr.bf16.mxu0 0
    %2570 = vmatmul.mubr.bf16.gmra.mrb[0].mxu0 %v2535
    %v2571 = vpop.f32.mrb[0].mxu0
    %v2572 = vadd.f32 0.0, %v2571
    %v2573 = vpop.f32.mrb[0].mxu0
    %v2574 = vpop.f32.mrb[0].mxu0
    %v2575 = vadd.f32 0.0, %v2574
    %v2576 = vpop.f32.mrb[0].mxu0
    %2577 = vdwg.mxu0
    %v2578 = vpack.c.bf16 %v2575, %v2572
    %v2579 = vpack.c.bf16 %v2342, %v2338
    %v2580 = vpack.c.bf16 %v2385, %v2381
    %2581 = vmatprep.subr.bf16.mxu0 0
    %2582 = vmatpush1.bf16.xpose.msra.mxu0 %v2580
    %2583 = vmatprep.subr.bf16.mxu0 0
    %2584 = vmatpush1.bf16.xpose.msra.mxu0 0
    %2585 = vmatprep.subr.bf16.mxu0 0
    %2586 = vmatpush1.bf16.xpose.msra.mxu0 0
    %2587 = vmatprep.subr.bf16.mxu0 0
    %2588 = vmatpush1.bf16.xpose.msra.mxu0 0
    %2589 = vmatprep.subr.bf16.mxu0 0
    %2590 = vmatpush1.bf16.xpose.msra.mxu0 0
    %2591 = vmatprep.subr.bf16.mxu0 0
    %2592 = vmatpush1.bf16.xpose.msra.mxu0 0
    %2593 = vmatprep.subr.bf16.mxu0 0
    %2594 = vmatpush1.bf16.xpose.msra.mxu0 0
    %2595 = vmatprep.subr.bf16.mxu0 0
    %2596 = vmatpush1.bf16.xpose.msra.mxu0 0
    %2597 = vmatprep.subr.bf16.mxu0 0
    %2598 = vmatpush1.bf16.xpose.msra.mxu0 0
    %2599 = vmatprep.subr.bf16.mxu0 0
    %2600 = vmatpush1.bf16.xpose.msra.mxu0 0
    %2601 = vmatprep.subr.bf16.mxu0 0
    %2602 = vmatpush1.bf16.xpose.msra.mxu0 0
    %2603 = vmatprep.subr.bf16.mxu0 0
    %2604 = vmatpush1.bf16.xpose.msra.mxu0 0
    %2605 = vmatprep.subr.bf16.mxu0 0
    %2606 = vmatpush1.bf16.xpose.msra.mxu0 0
    %2607 = vmatprep.subr.bf16.mxu0 0
    %2608 = vmatpush1.bf16.xpose.msra.mxu0 0
    %2609 = vmatprep.subr.bf16.mxu0 0
    %2610 = vmatpush1.bf16.xpose.msra.mxu0 0
    %2611 = vmatprep.subr.bf16.mxu0 0
    %2612 = vmatpush1.bf16.xpose.msra.mxu0 0
    %2613 = vmatprep.mubr.bf16.mxu0 0
    %2614 = vmatmul.mubr.bf16.gmra.mrb[0].mxu0 %v2579
    %v2615 = vpop.f32.mrb[0].mxu0
    %v2616 = vadd.f32 0.0, %v2615
    %v2617 = vpop.f32.mrb[0].mxu0
    %v2618 = vpop.f32.mrb[0].mxu0
    %v2619 = vadd.f32 0.0, %v2618
    %v2620 = vpop.f32.mrb[0].mxu0
    %2621 = vdwg.mxu0
    %v2622 = vmul.f32 %v2616, 0.125
    %v2623 = vmul.f32 %v2619, 0.125
    %v2624 = vadd.f32 %v2622, %v266
    %v2625 = vadd.f32 %v2623, %v267
    %v2626 = vsel %vm797, %v2624, -inf
    %2627 = vmax.xlane.f32.xlu0 %v2626
    %v2628 = vpop.xlane.xlu0 %2627
    %v2629 = vsel %vm797, %v2625, -inf
    %2630 = vmax.xlane.f32.xlu0 %v2629
    %v2631 = vpop.xlane.xlu0 %2630
    %v2632 = vsub.f32 %v2624, %v2628
    %v2633 = vsub.f32 %v2625, %v2631
    %v2634 = vmul.f32 %v2632, 1.442695
    %v2635 = vpow.pop %v2634
    %v2636 = vmul.f32 %v2633, 1.442695
    %v2637 = vpow.pop %v2636
    %v2638 = vsel %vm797, %v2635, 0.0
    %2639 = vadd.xlane.f32.xlu0 %v2638
    %v2640 = vpop.xlane.xlu0 %2639
    %v2641 = vsel %vm797, %v2637, 0.0
    %2642 = vadd.xlane.f32.xlu0 %v2641
    %v2643 = vpop.xlane.xlu0 %2642
    %v2644 = vrcp.pop %v2640
    %v2645 = vrcp.pop %v2643
    %v2646 = vmul.f32 %v2635, %v2644
    %v2647 = vmul.f32 %v2637, %v2645
    %v2648 = vpack.c.bf16 %v2647, %v2646
    %v2649 = vpack.c.bf16 %v2428, %v2424
    %v2651 = vsel %vm797, %v2648, 0
    %2653 = vmatprep.subr.bf16.mxu0 0
    %2654 = vmatpush1.bf16.msra.mxu0 %v2649
    %2655 = vmatprep.subr.bf16.mxu0 0
    %2656 = vmatpush1.bf16.msra.mxu0 0
    %2657 = vmatprep.subr.bf16.mxu0 0
    %2658 = vmatpush1.bf16.msra.mxu0 0
    %2659 = vmatprep.subr.bf16.mxu0 0
    %2660 = vmatpush1.bf16.msra.mxu0 0
    %2661 = vmatprep.subr.bf16.mxu0 0
    %2662 = vmatpush1.bf16.msra.mxu0 0
    %2663 = vmatprep.subr.bf16.mxu0 0
    %2664 = vmatpush1.bf16.msra.mxu0 0
    %2665 = vmatprep.subr.bf16.mxu0 0
    %2666 = vmatpush1.bf16.msra.mxu0 0
    %2667 = vmatprep.subr.bf16.mxu0 0
    %2668 = vmatpush1.bf16.msra.mxu0 0
    %2669 = vmatprep.subr.bf16.mxu0 0
    %2670 = vmatpush1.bf16.msra.mxu0 0
    %2671 = vmatprep.subr.bf16.mxu0 0
    %2672 = vmatpush1.bf16.msra.mxu0 0
    %2673 = vmatprep.subr.bf16.mxu0 0
    %2674 = vmatpush1.bf16.msra.mxu0 0
    %2675 = vmatprep.subr.bf16.mxu0 0
    %2676 = vmatpush1.bf16.msra.mxu0 0
    %2677 = vmatprep.subr.bf16.mxu0 0
    %2678 = vmatpush1.bf16.msra.mxu0 0
    %2679 = vmatprep.subr.bf16.mxu0 0
    %2680 = vmatpush1.bf16.msra.mxu0 0
    %2681 = vmatprep.subr.bf16.mxu0 0
    %2682 = vmatpush1.bf16.msra.mxu0 0
    %2683 = vmatprep.subr.bf16.mxu0 0
    %2684 = vmatpush1.bf16.msra.mxu0 0
    %2685 = vmatprep.mubr.bf16.mxu0 0
    %2686 = vmatmul.mubr.bf16.gmra.mrb[0].mxu0 %v2651
    %v2687 = vpop.f32.mrb[0].mxu0
    %v2688 = vadd.f32 0.0, %v2687
    %v2689 = vpop.f32.mrb[0].mxu0
    %v2690 = vpop.f32.mrb[0].mxu0
    %v2691 = vadd.f32 0.0, %v2690
    %v2692 = vpop.f32.mrb[0].mxu0
    %2693 = vdwg.mxu0
    %v2694 = vpack.c.bf16 %v2691, %v2688
    %v2711 = vunpack.c.l.b16 %v2447
    %v2712 = vunpack.c.l.b16 %v2448
    %v2713 = vunpack.c.l.b16 %v2449
    %v2714 = vunpack.c.l.b16 %v2450
    %v2715 = vunpack.c.l.b16 %v2451
    %v2716 = vunpack.c.l.b16 %v2452
    %v2717 = vunpack.c.l.b16 %v2453
    %v2718 = vunpack.c.l.b16 %v2454
    %v2719 = vunpack.c.l.b16 %v2455
    %v2720 = vunpack.c.l.b16 %v2456
    %v2721 = vunpack.c.l.b16 %v2457
    %v2722 = vunpack.c.l.b16 %v2458
    %v2723 = vunpack.c.l.b16 %v2459
    %v2724 = vunpack.c.l.b16 %v2460
    %v2725 = vunpack.c.l.b16 %v2461
    %v2726 = vunpack.c.l.b16 %v2462
    %v2727 = vpack.c.b16 %v2712, %v2711
    %v2728 = vpack.c.b16 %v2714, %v2713
    %v2729 = vpack.c.b16 %v2716, %v2715
    %v2730 = vpack.c.b16 %v2718, %v2717
    %v2731 = vpack.c.b16 %v2720, %v2719
    %v2732 = vpack.c.b16 %v2722, %v2721
    %v2733 = vpack.c.b16 %v2724, %v2723
    %v2734 = vpack.c.b16 %v2726, %v2725
    %2743 = vmatprep.subr.bf16.mxu0 0
    %2744 = vmatpush1.bf16.msra.mxu0 %v2727
    %2745 = vmatprep.subr.bf16.mxu0 0
    %2746 = vmatpush1.bf16.msra.mxu0 %v2728
    %2747 = vmatprep.subr.bf16.mxu0 0
    %2748 = vmatpush1.bf16.msra.mxu0 %v2729
    %2749 = vmatprep.subr.bf16.mxu0 0
    %2750 = vmatpush1.bf16.msra.mxu0 %v2730
    %2751 = vmatprep.subr.bf16.mxu0 0
    %2752 = vmatpush1.bf16.msra.mxu0 %v2731
    %2753 = vmatprep.subr.bf16.mxu0 0
    %2754 = vmatpush1.bf16.msra.mxu0 %v2732
    %2755 = vmatprep.subr.bf16.mxu0 0
    %2756 = vmatpush1.bf16.msra.mxu0 %v2733
    %2757 = vmatprep.subr.bf16.mxu0 0
    %2758 = vmatpush1.bf16.msra.mxu0 %v2734
    %2759 = vmatprep.subr.bf16.mxu0 0
    %2760 = vmatpush1.bf16.msra.mxu0 0
    %2761 = vmatprep.subr.bf16.mxu0 0
    %2762 = vmatpush1.bf16.msra.mxu0 0
    %2763 = vmatprep.subr.bf16.mxu0 0
    %2764 = vmatpush1.bf16.msra.mxu0 0
    %2765 = vmatprep.subr.bf16.mxu0 0
    %2766 = vmatpush1.bf16.msra.mxu0 0
    %2767 = vmatprep.subr.bf16.mxu0 0
    %2768 = vmatpush1.bf16.msra.mxu0 0
    %2769 = vmatprep.subr.bf16.mxu0 0
    %2770 = vmatpush1.bf16.msra.mxu0 0
    %2771 = vmatprep.subr.bf16.mxu0 0
    %2772 = vmatpush1.bf16.msra.mxu0 0
    %2773 = vmatprep.subr.bf16.mxu0 0
    %2774 = vmatpush1.bf16.msra.mxu0 0
    %2775 = vmatprep.mubr.bf16.mxu0 0
    %2776 = vmatmul.mubr.bf16.gmra.mrb[0].mxu0 %v2694
    %v2777 = vpop.f32.mrb[0].mxu0
    %v2778 = vadd.f32 0.0, %v2777
    %v2779 = vpop.f32.mrb[0].mxu0
    %v2780 = vpop.f32.mrb[0].mxu0
    %v2781 = vadd.f32 0.0, %v2780
    %v2782 = vpop.f32.mrb[0].mxu0
    %2783 = vdwg.mxu0
    %v2800 = vunpack.c.l.b16 %v2431
    %v2801 = vunpack.c.l.b16 %v2432
    %v2802 = vunpack.c.l.b16 %v2433
    %v2803 = vunpack.c.l.b16 %v2434
    %v2804 = vunpack.c.l.b16 %v2435
    %v2805 = vunpack.c.l.b16 %v2436
    %v2806 = vunpack.c.l.b16 %v2437
    %v2807 = vunpack.c.l.b16 %v2438
    %v2808 = vunpack.c.l.b16 %v2439
    %v2809 = vunpack.c.l.b16 %v2440
    %v2810 = vunpack.c.l.b16 %v2441
    %v2811 = vunpack.c.l.b16 %v2442
    %v2812 = vunpack.c.l.b16 %v2443
    %v2813 = vunpack.c.l.b16 %v2444
    %v2814 = vunpack.c.l.b16 %v2445
    %v2815 = vunpack.c.l.b16 %v2446
    %v2816 = vpack.c.b16 %v2801, %v2800
    %v2817 = vpack.c.b16 %v2803, %v2802
    %v2818 = vpack.c.b16 %v2805, %v2804
    %v2819 = vpack.c.b16 %v2807, %v2806
    %v2820 = vpack.c.b16 %v2809, %v2808
    %v2821 = vpack.c.b16 %v2811, %v2810
    %v2822 = vpack.c.b16 %v2813, %v2812
    %v2823 = vpack.c.b16 %v2815, %v2814
    %2832 = vmatprep.subr.bf16.mxu0 0
    %2833 = vmatpush1.bf16.msra.mxu0 %v2816
    %2834 = vmatprep.subr.bf16.mxu0 0
    %2835 = vmatpush1.bf16.msra.mxu0 %v2817
    %2836 = vmatprep.subr.bf16.mxu0 0
    %2837 = vmatpush1.bf16.msra.mxu0 %v2818
    %2838 = vmatprep.subr.bf16.mxu0 0
    %2839 = vmatpush1.bf16.msra.mxu0 %v2819
    %2840 = vmatprep.subr.bf16.mxu0 0
    %2841 = vmatpush1.bf16.msra.mxu0 %v2820
    %2842 = vmatprep.subr.bf16.mxu0 0
    %2843 = vmatpush1.bf16.msra.mxu0 %v2821
    %2844 = vmatprep.subr.bf16.mxu0 0
    %2845 = vmatpush1.bf16.msra.mxu0 %v2822
    %2846 = vmatprep.subr.bf16.mxu0 0
    %2847 = vmatpush1.bf16.msra.mxu0 %v2823
    %2848 = vmatprep.subr.bf16.mxu0 0
    %2849 = vmatpush1.bf16.msra.mxu0 0
    %2850 = vmatprep.subr.bf16.mxu0 0
    %2851 = vmatpush1.bf16.msra.mxu0 0
    %2852 = vmatprep.subr.bf16.mxu0 0
    %2853 = vmatpush1.bf16.msra.mxu0 0
    %2854 = vmatprep.subr.bf16.mxu0 0
    %2855 = vmatpush1.bf16.msra.mxu0 0
    %2856 = vmatprep.subr.bf16.mxu0 0
    %2857 = vmatpush1.bf16.msra.mxu0 0
    %2858 = vmatprep.subr.bf16.mxu0 0
    %2859 = vmatpush1.bf16.msra.mxu0 0
    %2860 = vmatprep.subr.bf16.mxu0 0
    %2861 = vmatpush1.bf16.msra.mxu0 0
    %2862 = vmatprep.subr.bf16.mxu0 0
    %2863 = vmatpush1.bf16.msra.mxu0 0
    %2864 = vmatprep.mubr.bf16.mxu0 0
    %2865 = vmatmul.mubr.bf16.gmra.mrb[0].mxu0 %v2578
    %v2866 = vpop.f32.mrb[0].mxu0
    %v2867 = vadd.f32 %v2778, %v2866
    %v2868 = vpop.f32.mrb[0].mxu0
    %v2869 = vpop.f32.mrb[0].mxu0
    %v2870 = vadd.f32 %v2781, %v2869
    %v2871 = vpop.f32.mrb[0].mxu0
    %2872 = vdwg.mxu0
    %v2873 = vadd.f32 %v1976, %v2867
    %v2874 = vadd.f32 %v1977, %v2870
    %s2875 = scalar_lea.vmem %s7, 1
    %v2876 = vld [vmem:[%s2875] sm:$0x1]
    %v2878 = vlaneseq
    %v2879 = vshrl.u32 %v2878, 7
    %v2880 = vsub.s32 0, %v2879
    %v2881 = vrot.slane %v2876, %v2880
    %v2883 = vadd.f32 %v2873, %v2881
    %v2884 = vadd.f32 %v2874, %v2881
    %s2885 = scalar_lea.vmem [#allocation8], 1
    %v2886 = vld [vmem:[%s2885] sm:$0x1]
    %s2887 = scalar_lea.vmem [#allocation10], 1
    %v2888 = vld [vmem:[%s2887] sm:$0x1]
    %2889 = vadd.xlane.f32.xlu0 %v2883
    %v2890 = vpop.xlane.xlu0 %2889
    %2891 = vadd.xlane.f32.xlu0 %v2884
    %v2892 = vpop.xlane.xlu0 %2891
    %v2893 = vmul.f32 %v2890, %v231
    %v2894 = vmul.f32 %v2892, %v231
    %v2895 = vsub.f32 %v2883, %v2893
    %v2896 = vsub.f32 %v2884, %v2894
    %v2897 = vmul.f32 %v2895, %v2895
    %v2898 = vmul.f32 %v2896, %v2896
    %2899 = vadd.xlane.f32.xlu0 %v2897
    %v2900 = vpop.xlane.xlu0 %2899
    %2901 = vadd.xlane.f32.xlu0 %v2898
    %v2902 = vpop.xlane.xlu0 %2901
    %v2903 = vmul.f32 %v2900, %v231
    %v2904 = vmul.f32 %v2902, %v231
    %v2905 = vadd.f32 %v2903, 1e-12
    %v2906 = vadd.f32 %v2904, 1e-12
    %v2907 = vrsqrt.pop %v2905
    %v2908 = vrsqrt.pop %v2906
    %v2909 = vmul.f32 %v2895, %v2907
    %v2910 = vmul.f32 %v2896, %v2908
    %v2912 = vlaneseq
    %v2913 = vshrl.u32 %v2912, 7
    %v2914 = vsub.s32 0, %v2913
    %v2915 = vrot.slane %v2886, %v2914
    %v2917 = vmul.f32 %v2909, %v2915
    %v2918 = vmul.f32 %v2910, %v2915
    %v2920 = vlaneseq
    %v2921 = vshrl.u32 %v2920, 7
    %v2922 = vsub.s32 0, %v2921
    %v2923 = vrot.slane %v2888, %v2922
    %v2925 = vadd.f32 %v2917, %v2923
    %v2926 = vadd.f32 %v2918, %v2923
    %v2927 = vpack.c.bf16 %v2926, %v2925
    %s2928 = scalar_lea.vmem [#allocation11], 256
    %v2929 = vld [vmem:[%s2928] sm:$0xff]
    %v2930 = vld [vmem:[%s2928 + $0x8] sm:$0xff]
    %v2931 = vld [vmem:[%s2928 + $0x10] sm:$0xff]
    %v2932 = vld [vmem:[%s2928 + $0x18] sm:$0xff]
    %v2933 = vld [vmem:[%s2928 + $0x20] sm:$0xff]
    %v2934 = vld [vmem:[%s2928 + $0x28] sm:$0xff]
    %v2935 = vld [vmem:[%s2928 + $0x30] sm:$0xff]
    %v2936 = vld [vmem:[%s2928 + $0x38] sm:$0xff]
    %v2937 = vld [vmem:[%s2928 + $0x40] sm:$0xff]
    %v2938 = vld [vmem:[%s2928 + $0x48] sm:$0xff]
    %v2939 = vld [vmem:[%s2928 + $0x50] sm:$0xff]
    %v2940 = vld [vmem:[%s2928 + $0x58] sm:$0xff]
    %v2941 = vld [vmem:[%s2928 + $0x60] sm:$0xff]
    %v2942 = vld [vmem:[%s2928 + $0x68] sm:$0xff]
    %v2943 = vld [vmem:[%s2928 + $0x70] sm:$0xff]
    %v2944 = vld [vmem:[%s2928 + $0x78] sm:$0xff]
    %v2945 = vld [vmem:[%s2928 + $0x80] sm:$0xff]
    %v2946 = vld [vmem:[%s2928 + $0x88] sm:$0xff]
    %v2947 = vld [vmem:[%s2928 + $0x90] sm:$0xff]
    %v2948 = vld [vmem:[%s2928 + $0x98] sm:$0xff]
    %v2949 = vld [vmem:[%s2928 + $0xa0] sm:$0xff]
    %v2950 = vld [vmem:[%s2928 + $0xa8] sm:$0xff]
    %v2951 = vld [vmem:[%s2928 + $0xb0] sm:$0xff]
    %v2952 = vld [vmem:[%s2928 + $0xb8] sm:$0xff]
    %v2953 = vld [vmem:[%s2928 + $0xc0] sm:$0xff]
    %v2954 = vld [vmem:[%s2928 + $0xc8] sm:$0xff]
    %v2955 = vld [vmem:[%s2928 + $0xd0] sm:$0xff]
    %v2956 = vld [vmem:[%s2928 + $0xd8] sm:$0xff]
    %v2957 = vld [vmem:[%s2928 + $0xe0] sm:$0xff]
    %v2958 = vld [vmem:[%s2928 + $0xe8] sm:$0xff]
    %v2959 = vld [vmem:[%s2928 + $0xf0] sm:$0xff]
    %v2960 = vld [vmem:[%s2928 + $0xf8] sm:$0xff]
    %s2961 = scalar_lea.vmem [#allocation13], 4
    %v2962 = vld [vmem:[%s2961] sm:$0xf]
    %v2964 = vlaneseq
    %v2965 = vshrl.u32 %v2964, 7
    %v2966 = vsub.s32 0, %v2965
    %v2967 = vrot.slane %v2962, %v2966
    %v2968 = vlaneseq
    %v2969 = vshrl.u32 %v2968, 7
    %v2970 = vsub.s32 1, %v2969
    %v2971 = vrot.slane %v2962, %v2970
    %v2972 = vlaneseq
    %v2973 = vshrl.u32 %v2972, 7
    %v2974 = vsub.s32 2, %v2973
    %v2975 = vrot.slane %v2962, %v2974
    %v2976 = vlaneseq
    %v2977 = vshrl.u32 %v2976, 7
    %v2978 = vsub.s32 3, %v2977
    %v2979 = vrot.slane %v2962, %v2978
    %v3016 = vunpack.c.l.b16 %v2929
    %v3017 = vunpack.c.h.b16 %v2929
    %v3018 = vunpack.c.l.b16 %v2930
    %v3019 = vunpack.c.h.b16 %v2930
    %v3020 = vunpack.c.l.b16 %v2931
    %v3021 = vunpack.c.h.b16 %v2931
    %v3022 = vunpack.c.l.b16 %v2932
    %v3023 = vunpack.c.h.b16 %v2932
    %v3024 = vunpack.c.l.b16 %v2933
    %v3025 = vunpack.c.h.b16 %v2933
    %v3026 = vunpack.c.l.b16 %v2934
    %v3027 = vunpack.c.h.b16 %v2934
    %v3028 = vunpack.c.l.b16 %v2935
    %v3029 = vunpack.c.h.b16 %v2935
    %v3030 = vunpack.c.l.b16 %v2936
    %v3031 = vunpack.c.h.b16 %v2936
    %v3032 = vunpack.c.l.b16 %v2937
    %v3033 = vunpack.c.h.b16 %v2937
    %v3034 = vunpack.c.l.b16 %v2938
    %v3035 = vunpack.c.h.b16 %v2938
    %v3036 = vunpack.c.l.b16 %v2939
    %v3037 = vunpack.c.h.b16 %v2939
    %v3038 = vunpack.c.l.b16 %v2940
    %v3039 = vunpack.c.h.b16 %v2940
    %v3040 = vunpack.c.l.b16 %v2941
    %v3041 = vunpack.c.h.b16 %v2941
    %v3042 = vunpack.c.l.b16 %v2942
    %v3043 = vunpack.c.h.b16 %v2942
    %v3044 = vunpack.c.l.b16 %v2943
    %v3045 = vunpack.c.h.b16 %v2943
    %v3046 = vunpack.c.l.b16 %v2944
    %v3047 = vunpack.c.h.b16 %v2944
    %v3048 = vunpack.c.l.b16 %v2945
    %v3049 = vunpack.c.h.b16 %v2945
    %v3050 = vunpack.c.l.b16 %v2946
    %v3051 = vunpack.c.h.b16 %v2946
    %v3052 = vunpack.c.l.b16 %v2947
    %v3053 = vunpack.c.h.b16 %v2947
    %v3054 = vunpack.c.l.b16 %v2948
    %v3055 = vunpack.c.h.b16 %v2948
    %v3056 = vunpack.c.l.b16 %v2949
    %v3057 = vunpack.c.h.b16 %v2949
    %v3058 = vunpack.c.l.b16 %v2950
    %v3059 = vunpack.c.h.b16 %v2950
    %v3060 = vunpack.c.l.b16 %v2951
    %v3061 = vunpack.c.h.b16 %v2951
    %v3062 = vunpack.c.l.b16 %v2952
    %v3063 = vunpack.c.h.b16 %v2952
    %v3064 = vunpack.c.l.b16 %v2953
    %v3065 = vunpack.c.h.b16 %v2953
    %v3066 = vunpack.c.l.b16 %v2954
    %v3067 = vunpack.c.h.b16 %v2954
    %v3068 = vunpack.c.l.b16 %v2955
    %v3069 = vunpack.c.h.b16 %v2955
    %v3070 = vunpack.c.l.b16 %v2956
    %v3071 = vunpack.c.h.b16 %v2956
    %v3072 = vunpack.c.l.b16 %v2957
    %v3073 = vunpack.c.h.b16 %v2957
    %v3074 = vunpack.c.l.b16 %v2958
    %v3075 = vunpack.c.h.b16 %v2958
    %v3076 = vunpack.c.l.b16 %v2959
    %v3077 = vunpack.c.h.b16 %v2959
    %v3078 = vunpack.c.l.b16 %v2960
    %v3079 = vunpack.c.h.b16 %v2960
    %v3080 = vpack.c.b16 %v3020, %v3016
    %v3081 = vpack.c.b16 %v3021, %v3017
    %v3082 = vpack.c.b16 %v3022, %v3018
    %v3083 = vpack.c.b16 %v3023, %v3019
    %v3084 = vpack.c.b16 %v3028, %v3024
    %v3085 = vpack.c.b16 %v3029, %v3025
    %v3086 = vpack.c.b16 %v3030, %v3026
    %v3087 = vpack.c.b16 %v3031, %v3027
    %v3088 = vpack.c.b16 %v3036, %v3032
    %v3089 = vpack.c.b16 %v3037, %v3033
    %v3090 = vpack.c.b16 %v3038, %v3034
    %v3091 = vpack.c.b16 %v3039, %v3035
    %v3092 = vpack.c.b16 %v3044, %v3040
    %v3093 = vpack.c.b16 %v3045, %v3041
    %v3094 = vpack.c.b16 %v3046, %v3042
    %v3095 = vpack.c.b16 %v3047, %v3043
    %v3096 = vpack.c.b16 %v3052, %v3048
    %v3097 = vpack.c.b16 %v3053, %v3049
    %v3098 = vpack.c.b16 %v3054, %v3050
    %v3099 = vpack.c.b16 %v3055, %v3051
    %v3100 = vpack.c.b16 %v3060, %v3056
    %v3101 = vpack.c.b16 %v3061, %v3057
    %v3102 = vpack.c.b16 %v3062, %v3058
    %v3103 = vpack.c.b16 %v3063, %v3059
    %v3104 = vpack.c.b16 %v3068, %v3064
    %v3105 = vpack.c.b16 %v3069, %v3065
    %v3106 = vpack.c.b16 %v3070, %v3066
    %v3107 = vpack.c.b16 %v3071, %v3067
    %v3108 = vpack.c.b16 %v3076, %v3072
    %v3109 = vpack.c.b16 %v3077, %v3073
    %v3110 = vpack.c.b16 %v3078, %v3074
    %v3111 = vpack.c.b16 %v3079, %v3075
    %3144 = vmatprep.subr.bf16.mxu0 %v3081
    %3145 = vmatpush1.bf16.msra.mxu0 %v3080
    %3146 = vmatprep.subr.bf16.mxu0 %v3085
    %3147 = vmatpush1.bf16.msra.mxu0 %v3084
    %3148 = vmatprep.subr.bf16.mxu0 %v3089
    %3149 = vmatpush1.bf16.msra.mxu0 %v3088
    %3150 = vmatprep.subr.bf16.mxu0 %v3093
    %3151 = vmatpush1.bf16.msra.mxu0 %v3092
    %3152 = vmatprep.subr.bf16.mxu0 %v3097
    %3153 = vmatpush1.bf16.msra.mxu0 %v3096
    %3154 = vmatprep.subr.bf16.mxu0 %v3101
    %3155 = vmatpush1.bf16.msra.mxu0 %v3100
    %3156 = vmatprep.subr.bf16.mxu0 %v3105
    %3157 = vmatpush1.bf16.msra.mxu0 %v3104
    %3158 = vmatprep.subr.bf16.mxu0 %v3109
    %3159 = vmatpush1.bf16.msra.mxu0 %v3108
    %3160 = vmatprep.subr.bf16.mxu0 0
    %3161 = vmatpush1.bf16.msra.mxu0 0
    %3162 = vmatprep.subr.bf16.mxu0 0
    %3163 = vmatpush1.bf16.msra.mxu0 0
    %3164 = vmatprep.subr.bf16.mxu0 0
    %3165 = vmatpush1.bf16.msra.mxu0 0
    %3166 = vmatprep.subr.bf16.mxu0 0
    %3167 = vmatpush1.bf16.msra.mxu0 0
    %3168 = vmatprep.subr.bf16.mxu0 0
    %3169 = vmatpush1.bf16.msra.mxu0 0
    %3170 = vmatprep.subr.bf16.mxu0 0
    %3171 = vmatpush1.bf16.msra.mxu0 0
    %3172 = vmatprep.subr.bf16.mxu0 0
    %3173 = vmatpush1.bf16.msra.mxu0 0
    %3174 = vmatprep.subr.bf16.mxu0 0
    %3175 = vmatpush1.bf16.msra.mxu0 0
    %3176 = vmatprep.mubr.bf16.mxu0 0
    %3177 = vmatmul.mubr.bf16.gmra.mrb[0].mxu0 %v2927
    %v3178 = vpop.f32.mrb[0].mxu0
    %v3179 = vadd.f32 %v2967, %v3178
    %v3180 = vpop.f32.mrb[0].mxu0
    %v3181 = vadd.f32 %v2971, %v3180
    %v3182 = vpop.f32.mrb[0].mxu0
    %v3183 = vadd.f32 %v2967, %v3182
    %v3184 = vpop.f32.mrb[0].mxu0
    %v3185 = vadd.f32 %v2971, %v3184
    %3186 = vdwg.mxu0
    %3187 = vmatprep.subr.bf16.mxu0 %v3083
    %3188 = vmatpush1.bf16.msra.mxu0 %v3082
    %3189 = vmatprep.subr.bf16.mxu0 %v3087
    %3190 = vmatpush1.bf16.msra.mxu0 %v3086
    %3191 = vmatprep.subr.bf16.mxu0 %v3091
    %3192 = vmatpush1.bf16.msra.mxu0 %v3090
    %3193 = vmatprep.subr.bf16.mxu0 %v3095
    %3194 = vmatpush1.bf16.msra.mxu0 %v3094
    %3195 = vmatprep.subr.bf16.mxu0 %v3099
    %3196 = vmatpush1.bf16.msra.mxu0 %v3098
    %3197 = vmatprep.subr.bf16.mxu0 %v3103
    %3198 = vmatpush1.bf16.msra.mxu0 %v3102
    %3199 = vmatprep.subr.bf16.mxu0 %v3107
    %3200 = vmatpush1.bf16.msra.mxu0 %v3106
    %3201 = vmatprep.subr.bf16.mxu0 %v3111
    %3202 = vmatpush1.bf16.msra.mxu0 %v3110
    %3203 = vmatprep.subr.bf16.mxu0 0
    %3204 = vmatpush1.bf16.msra.mxu0 0
    %3205 = vmatprep.subr.bf16.mxu0 0
    %3206 = vmatpush1.bf16.msra.mxu0 0
    %3207 = vmatprep.subr.bf16.mxu0 0
    %3208 = vmatpush1.bf16.msra.mxu0 0
    %3209 = vmatprep.subr.bf16.mxu0 0
    %3210 = vmatpush1.bf16.msra.mxu0 0
    %3211 = vmatprep.subr.bf16.mxu0 0
    %3212 = vmatpush1.bf16.msra.mxu0 0
    %3213 = vmatprep.subr.bf16.mxu0 0
    %3214 = vmatpush1.bf16.msra.mxu0 0
    %3215 = vmatprep.subr.bf16.mxu0 0
    %3216 = vmatpush1.bf16.msra.mxu0 0
    %3217 = vmatprep.subr.bf16.mxu0 0
    %3218 = vmatpush1.bf16.msra.mxu0 0
    %3219 = vmatprep.mubr.bf16.mxu0 0
    %3220 = vmatmul.mubr.bf16.gmra.mrb[0].mxu0 %v2927
    %v3221 = vpop.f32.mrb[0].mxu0
    %v3222 = vadd.f32 %v2975, %v3221
    %v3223 = vpop.f32.mrb[0].mxu0
    %v3224 = vadd.f32 %v2979, %v3223
    %v3225 = vpop.f32.mrb[0].mxu0
    %v3226 = vadd.f32 %v2975, %v3225
    %v3227 = vpop.f32.mrb[0].mxu0
    %v3228 = vadd.f32 %v2979, %v3227
    %3229 = vdwg.mxu0
    %v3230 = vmul.f32 %v3179, 0.5
    %v3231 = vmul.f32 %v3181, 0.5
    %v3232 = vmul.f32 %v3222, 0.5
    %v3233 = vmul.f32 %v3224, 0.5
    %v3234 = vmul.f32 %v3183, 0.5
    %v3235 = vmul.f32 %v3185, 0.5
    %v3236 = vmul.f32 %v3226, 0.5
    %v3237 = vmul.f32 %v3228, 0.5
    %v3238 = vmul.f32 %v3179, 0.044715
    %v3239 = vmul.f32 %v3181, 0.044715
    %v3240 = vmul.f32 %v3222, 0.044715
    %v3241 = vmul.f32 %v3224, 0.044715
    %v3242 = vmul.f32 %v3183, 0.044715
    %v3243 = vmul.f32 %v3185, 0.044715
    %v3244 = vmul.f32 %v3226, 0.044715
    %v3245 = vmul.f32 %v3228, 0.044715
    %v3246 = vmul.f32 %v3238, %v3179
    %v3247 = vmul.f32 %v3239, %v3181
    %v3248 = vmul.f32 %v3240, %v3222
    %v3249 = vmul.f32 %v3241, %v3224
    %v3250 = vmul.f32 %v3242, %v3183
    %v3251 = vmul.f32 %v3243, %v3185
    %v3252 = vmul.f32 %v3244, %v3226
    %v3253 = vmul.f32 %v3245, %v3228
    %v3254 = vmul.f32 %v3246, %v3179
    %v3255 = vmul.f32 %v3247, %v3181
    %v3256 = vmul.f32 %v3248, %v3222
    %v3257 = vmul.f32 %v3249, %v3224
    %v3258 = vmul.f32 %v3250, %v3183
    %v3259 = vmul.f32 %v3251, %v3185
    %v3260 = vmul.f32 %v3252, %v3226
    %v3261 = vmul.f32 %v3253, %v3228
    %v3262 = vadd.f32 %v3179, %v3254
    %v3263 = vadd.f32 %v3181, %v3255
    %v3264 = vadd.f32 %v3222, %v3256
    %v3265 = vadd.f32 %v3224, %v3257
    %v3266 = vadd.f32 %v3183, %v3258
    %v3267 = vadd.f32 %v3185, %v3259
    %v3268 = vadd.f32 %v3226, %v3260
    %v3269 = vadd.f32 %v3228, %v3261
    %v3270 = vmul.f32 %v3262, 0.7978846
    %v3271 = vmul.f32 %v3263, 0.7978846
    %v3272 = vmul.f32 %v3264, 0.7978846
    %v3273 = vmul.f32 %v3265, 0.7978846
    %v3274 = vmul.f32 %v3266, 0.7978846
    %v3275 = vmul.f32 %v3267, 0.7978846
    %v3276 = vmul.f32 %v3268, 0.7978846
    %v3277 = vmul.f32 %v3269, 0.7978846
    %v3278 = vtanh.pop %v3270
    %v3279 = vtanh.pop %v3271
    %v3280 = vtanh.pop %v3272
    %v3281 = vtanh.pop %v3273
    %v3282 = vtanh.pop %v3274
    %v3283 = vtanh.pop %v3275
    %v3284 = vtanh.pop %v3276
    %v3285 = vtanh.pop %v3277
    %v3286 = vadd.f32 %v3278, 1.0
    %v3287 = vadd.f32 %v3279, 1.0
    %v3288 = vadd.f32 %v3280, 1.0
    %v3289 = vadd.f32 %v3281, 1.0
    %v3290 = vadd.f32 %v3282, 1.0
    %v3291 = vadd.f32 %v3283, 1.0
    %v3292 = vadd.f32 %v3284, 1.0
    %v3293 = vadd.f32 %v3285, 1.0
    %v3294 = vmul.f32 %v3230, %v3286
    %v3295 = vmul.f32 %v3231, %v3287
    %v3296 = vmul.f32 %v3232, %v3288
    %v3297 = vmul.f32 %v3233, %v3289
    %v3298 = vmul.f32 %v3234, %v3290
    %v3299 = vmul.f32 %v3235, %v3291
    %v3300 = vmul.f32 %v3236, %v3292
    %v3301 = vmul.f32 %v3237, %v3293
    %v3302 = vpack.c.bf16 %v3298, %v3294
    %v3303 = vpack.c.bf16 %v3299, %v3295
    %v3304 = vpack.c.bf16 %v3300, %v3296
    %v3305 = vpack.c.bf16 %v3301, %v3297
    %s3306 = scalar_lea.vmem [#allocation14], 256
    %v3307 = vld [vmem:[%s3306] sm:$0xf]
    %v3308 = vld [vmem:[%s3306 + $0x4] sm:$0xf]
    %v3309 = vld [vmem:[%s3306 + $0x8] sm:$0xf]
    %v3310 = vld [vmem:[%s3306 + $0xc] sm:$0xf]
    %v3311 = vld [vmem:[%s3306 + $0x10] sm:$0xf]
    %v3312 = vld [vmem:[%s3306 + $0x14] sm:$0xf]
    %v3313 = vld [vmem:[%s3306 + $0x18] sm:$0xf]
    %v3314 = vld [vmem:[%s3306 + $0x1c] sm:$0xf]
    %v3315 = vld [vmem:[%s3306 + $0x20] sm:$0xf]
    %v3316 = vld [vmem:[%s3306 + $0x24] sm:$0xf]
    %v3317 = vld [vmem:[%s3306 + $0x28] sm:$0xf]
    %v3318 = vld [vmem:[%s3306 + $0x2c] sm:$0xf]
    %v3319 = vld [vmem:[%s3306 + $0x30] sm:$0xf]
    %v3320 = vld [vmem:[%s3306 + $0x34] sm:$0xf]
    %v3321 = vld [vmem:[%s3306 + $0x38] sm:$0xf]
    %v3322 = vld [vmem:[%s3306 + $0x3c] sm:$0xf]
    %v3323 = vld [vmem:[%s3306 + $0x40] sm:$0xf]
    %v3324 = vld [vmem:[%s3306 + $0x44] sm:$0xf]
    %v3325 = vld [vmem:[%s3306 + $0x48] sm:$0xf]
    %v3326 = vld [vmem:[%s3306 + $0x4c] sm:$0xf]
    %v3327 = vld [vmem:[%s3306 + $0x50] sm:$0xf]
    %v3328 = vld [vmem:[%s3306 + $0x54] sm:$0xf]
    %v3329 = vld [vmem:[%s3306 + $0x58] sm:$0xf]
    %v3330 = vld [vmem:[%s3306 + $0x5c] sm:$0xf]
    %v3331 = vld [vmem:[%s3306 + $0x60] sm:$0xf]
    %v3332 = vld [vmem:[%s3306 + $0x64] sm:$0xf]
    %v3333 = vld [vmem:[%s3306 + $0x68] sm:$0xf]
    %v3334 = vld [vmem:[%s3306 + $0x6c] sm:$0xf]
    %v3335 = vld [vmem:[%s3306 + $0x70] sm:$0xf]
    %v3336 = vld [vmem:[%s3306 + $0x74] sm:$0xf]
    %v3337 = vld [vmem:[%s3306 + $0x78] sm:$0xf]
    %v3338 = vld [vmem:[%s3306 + $0x7c] sm:$0xf]
    %v3339 = vld [vmem:[%s3306 + $0x80] sm:$0xf]
    %v3340 = vld [vmem:[%s3306 + $0x84] sm:$0xf]
    %v3341 = vld [vmem:[%s3306 + $0x88] sm:$0xf]
    %v3342 = vld [vmem:[%s3306 + $0x8c] sm:$0xf]
    %v3343 = vld [vmem:[%s3306 + $0x90] sm:$0xf]
    %v3344 = vld [vmem:[%s3306 + $0x94] sm:$0xf]
    %v3345 = vld [vmem:[%s3306 + $0x98] sm:$0xf]
    %v3346 = vld [vmem:[%s3306 + $0x9c] sm:$0xf]
    %v3347 = vld [vmem:[%s3306 + $0xa0] sm:$0xf]
    %v3348 = vld [vmem:[%s3306 + $0xa4] sm:$0xf]
    %v3349 = vld [vmem:[%s3306 + $0xa8] sm:$0xf]
    %v3350 = vld [vmem:[%s3306 + $0xac] sm:$0xf]
    %v3351 = vld [vmem:[%s3306 + $0xb0] sm:$0xf]
    %v3352 = vld [vmem:[%s3306 + $0xb4] sm:$0xf]
    %v3353 = vld [vmem:[%s3306 + $0xb8] sm:$0xf]
    %v3354 = vld [vmem:[%s3306 + $0xbc] sm:$0xf]
    %v3355 = vld [vmem:[%s3306 + $0xc0] sm:$0xf]
    %v3356 = vld [vmem:[%s3306 + $0xc4] sm:$0xf]
    %v3357 = vld [vmem:[%s3306 + $0xc8] sm:$0xf]
    %v3358 = vld [vmem:[%s3306 + $0xcc] sm:$0xf]
    %v3359 = vld [vmem:[%s3306 + $0xd0] sm:$0xf]
    %v3360 = vld [vmem:[%s3306 + $0xd4] sm:$0xf]
    %v3361 = vld [vmem:[%s3306 + $0xd8] sm:$0xf]
    %v3362 = vld [vmem:[%s3306 + $0xdc] sm:$0xf]
    %v3363 = vld [vmem:[%s3306 + $0xe0] sm:$0xf]
    %v3364 = vld [vmem:[%s3306 + $0xe4] sm:$0xf]
    %v3365 = vld [vmem:[%s3306 + $0xe8] sm:$0xf]
    %v3366 = vld [vmem:[%s3306 + $0xec] sm:$0xf]
    %v3367 = vld [vmem:[%s3306 + $0xf0] sm:$0xf]
    %v3368 = vld [vmem:[%s3306 + $0xf4] sm:$0xf]
    %v3369 = vld [vmem:[%s3306 + $0xf8] sm:$0xf]
    %v3370 = vld [vmem:[%s3306 + $0xfc] sm:$0xf]
    %v3435 = vunpack.c.l.b16 %v3307
    %v3436 = vunpack.c.l.b16 %v3308
    %v3437 = vunpack.c.l.b16 %v3309
    %v3438 = vunpack.c.l.b16 %v3310
    %v3439 = vunpack.c.l.b16 %v3311
    %v3440 = vunpack.c.l.b16 %v3312
    %v3441 = vunpack.c.l.b16 %v3313
    %v3442 = vunpack.c.l.b16 %v3314
    %v3443 = vunpack.c.l.b16 %v3315
    %v3444 = vunpack.c.l.b16 %v3316
    %v3445 = vunpack.c.l.b16 %v3317
    %v3446 = vunpack.c.l.b16 %v3318
    %v3447 = vunpack.c.l.b16 %v3319
    %v3448 = vunpack.c.l.b16 %v3320
    %v3449 = vunpack.c.l.b16 %v3321
    %v3450 = vunpack.c.l.b16 %v3322
    %v3451 = vunpack.c.l.b16 %v3323
    %v3452 = vunpack.c.l.b16 %v3324
    %v3453 = vunpack.c.l.b16 %v3325
    %v3454 = vunpack.c.l.b16 %v3326
    %v3455 = vunpack.c.l.b16 %v3327
    %v3456 = vunpack.c.l.b16 %v3328
    %v3457 = vunpack.c.l.b16 %v3329
    %v3458 = vunpack.c.l.b16 %v3330
    %v3459 = vunpack.c.l.b16 %v3331
    %v3460 = vunpack.c.l.b16 %v3332
    %v3461 = vunpack.c.l.b16 %v3333
    %v3462 = vunpack.c.l.b16 %v3334
    %v3463 = vunpack.c.l.b16 %v3335
    %v3464 = vunpack.c.l.b16 %v3336
    %v3465 = vunpack.c.l.b16 %v3337
    %v3466 = vunpack.c.l.b16 %v3338
    %v3467 = vunpack.c.l.b16 %v3339
    %v3468 = vunpack.c.l.b16 %v3340
    %v3469 = vunpack.c.l.b16 %v3341
    %v3470 = vunpack.c.l.b16 %v3342
    %v3471 = vunpack.c.l.b16 %v3343
    %v3472 = vunpack.c.l.b16 %v3344
    %v3473 = vunpack.c.l.b16 %v3345
    %v3474 = vunpack.c.l.b16 %v3346
    %v3475 = vunpack.c.l.b16 %v3347
    %v3476 = vunpack.c.l.b16 %v3348
    %v3477 = vunpack.c.l.b16 %v3349
    %v3478 = vunpack.c.l.b16 %v3350
    %v3479 = vunpack.c.l.b16 %v3351
    %v3480 = vunpack.c.l.b16 %v3352
    %v3481 = vunpack.c.l.b16 %v3353
    %v3482 = vunpack.c.l.b16 %v3354
    %v3483 = vunpack.c.l.b16 %v3355
    %v3484 = vunpack.c.l.b16 %v3356
    %v3485 = vunpack.c.l.b16 %v3357
    %v3486 = vunpack.c.l.b16 %v3358
    %v3487 = vunpack.c.l.b16 %v3359
    %v3488 = vunpack.c.l.b16 %v3360
    %v3489 = vunpack.c.l.b16 %v3361
    %v3490 = vunpack.c.l.b16 %v3362
    %v3491 = vunpack.c.l.b16 %v3363
    %v3492 = vunpack.c.l.b16 %v3364
    %v3493 = vunpack.c.l.b16 %v3365
    %v3494 = vunpack.c.l.b16 %v3366
    %v3495 = vunpack.c.l.b16 %v3367
    %v3496 = vunpack.c.l.b16 %v3368
    %v3497 = vunpack.c.l.b16 %v3369
    %v3498 = vunpack.c.l.b16 %v3370
    %v3499 = vpack.c.b16 %v3436, %v3435
    %v3500 = vpack.c.b16 %v3438, %v3437
    %v3501 = vpack.c.b16 %v3440, %v3439
    %v3502 = vpack.c.b16 %v3442, %v3441
    %v3503 = vpack.c.b16 %v3444, %v3443
    %v3504 = vpack.c.b16 %v3446, %v3445
    %v3505 = vpack.c.b16 %v3448, %v3447
    %v3506 = vpack.c.b16 %v3450, %v3449
    %v3507 = vpack.c.b16 %v3452, %v3451
    %v3508 = vpack.c.b16 %v3454, %v3453
    %v3509 = vpack.c.b16 %v3456, %v3455
    %v3510 = vpack.c.b16 %v3458, %v3457
    %v3511 = vpack.c.b16 %v3460, %v3459
    %v3512 = vpack.c.b16 %v3462, %v3461
    %v3513 = vpack.c.b16 %v3464, %v3463
    %v3514 = vpack.c.b16 %v3466, %v3465
    %v3515 = vpack.c.b16 %v3468, %v3467
    %v3516 = vpack.c.b16 %v3470, %v3469
    %v3517 = vpack.c.b16 %v3472, %v3471
    %v3518 = vpack.c.b16 %v3474, %v3473
    %v3519 = vpack.c.b16 %v3476, %v3475
    %v3520 = vpack.c.b16 %v3478, %v3477
    %v3521 = vpack.c.b16 %v3480, %v3479
    %v3522 = vpack.c.b16 %v3482, %v3481
    %v3523 = vpack.c.b16 %v3484, %v3483
    %v3524 = vpack.c.b16 %v3486, %v3485
    %v3525 = vpack.c.b16 %v3488, %v3487
    %v3526 = vpack.c.b16 %v3490, %v3489
    %v3527 = vpack.c.b16 %v3492, %v3491
    %v3528 = vpack.c.b16 %v3494, %v3493
    %v3529 = vpack.c.b16 %v3496, %v3495
    %v3530 = vpack.c.b16 %v3498, %v3497
    %3563 = vmatprep.subr.bf16.mxu0 0
    %3564 = vmatpush1.bf16.msra.mxu0 %v3499
    %3565 = vmatprep.subr.bf16.mxu0 0
    %3566 = vmatpush1.bf16.msra.mxu0 %v3500
    %3567 = vmatprep.subr.bf16.mxu0 0
    %3568 = vmatpush1.bf16.msra.mxu0 %v3501
    %3569 = vmatprep.subr.bf16.mxu0 0
    %3570 = vmatpush1.bf16.msra.mxu0 %v3502
    %3571 = vmatprep.subr.bf16.mxu0 0
    %3572 = vmatpush1.bf16.msra.mxu0 %v3503
    %3573 = vmatprep.subr.bf16.mxu0 0
    %3574 = vmatpush1.bf16.msra.mxu0 %v3504
    %3575 = vmatprep.subr.bf16.mxu0 0
    %3576 = vmatpush1.bf16.msra.mxu0 %v3505
    %3577 = vmatprep.subr.bf16.mxu0 0
    %3578 = vmatpush1.bf16.msra.mxu0 %v3506
    %3579 = vmatprep.subr.bf16.mxu0 0
    %3580 = vmatpush1.bf16.msra.mxu0 %v3507
    %3581 = vmatprep.subr.bf16.mxu0 0
    %3582 = vmatpush1.bf16.msra.mxu0 %v3508
    %3583 = vmatprep.subr.bf16.mxu0 0
    %3584 = vmatpush1.bf16.msra.mxu0 %v3509
    %3585 = vmatprep.subr.bf16.mxu0 0
    %3586 = vmatpush1.bf16.msra.mxu0 %v3510
    %3587 = vmatprep.subr.bf16.mxu0 0
    %3588 = vmatpush1.bf16.msra.mxu0 %v3511
    %3589 = vmatprep.subr.bf16.mxu0 0
    %3590 = vmatpush1.bf16.msra.mxu0 %v3512
    %3591 = vmatprep.subr.bf16.mxu0 0
    %3592 = vmatpush1.bf16.msra.mxu0 %v3513
    %3593 = vmatprep.subr.bf16.mxu0 0
    %3594 = vmatpush1.bf16.msra.mxu0 %v3514
    %3595 = vmatprep.mubr.bf16.mxu0 %v3303
    %3596 = vmatmul.mubr.bf16.gmra.mrb[0].mxu0 %v3302
    %v3597 = vpop.f32.mrb[0].mxu0
    %v3598 = vadd.f32 0.0, %v3597
    %v3599 = vpop.f32.mrb[0].mxu0
    %v3600 = vpop.f32.mrb[0].mxu0
    %v3601 = vadd.f32 0.0, %v3600
    %v3602 = vpop.f32.mrb[0].mxu0
    %3603 = vdwg.mxu0
    %3604 = vmatprep.subr.bf16.mxu0 0
    %3605 = vmatpush1.bf16.msra.mxu0 %v3515
    %3606 = vmatprep.subr.bf16.mxu0 0
    %3607 = vmatpush1.bf16.msra.mxu0 %v3516
    %3608 = vmatprep.subr.bf16.mxu0 0
    %3609 = vmatpush1.bf16.msra.mxu0 %v3517
    %3610 = vmatprep.subr.bf16.mxu0 0
    %3611 = vmatpush1.bf16.msra.mxu0 %v3518
    %3612 = vmatprep.subr.bf16.mxu0 0
    %3613 = vmatpush1.bf16.msra.mxu0 %v3519
    %3614 = vmatprep.subr.bf16.mxu0 0
    %3615 = vmatpush1.bf16.msra.mxu0 %v3520
    %3616 = vmatprep.subr.bf16.mxu0 0
    %3617 = vmatpush1.bf16.msra.mxu0 %v3521
    %3618 = vmatprep.subr.bf16.mxu0 0
    %3619 = vmatpush1.bf16.msra.mxu0 %v3522
    %3620 = vmatprep.subr.bf16.mxu0 0
    %3621 = vmatpush1.bf16.msra.mxu0 %v3523
    %3622 = vmatprep.subr.bf16.mxu0 0
    %3623 = vmatpush1.bf16.msra.mxu0 %v3524
    %3624 = vmatprep.subr.bf16.mxu0 0
    %3625 = vmatpush1.bf16.msra.mxu0 %v3525
    %3626 = vmatprep.subr.bf16.mxu0 0
    %3627 = vmatpush1.bf16.msra.mxu0 %v3526
    %3628 = vmatprep.subr.bf16.mxu0 0
    %3629 = vmatpush1.bf16.msra.mxu0 %v3527
    %3630 = vmatprep.subr.bf16.mxu0 0
    %3631 = vmatpush1.bf16.msra.mxu0 %v3528
    %3632 = vmatprep.subr.bf16.mxu0 0
    %3633 = vmatpush1.bf16.msra.mxu0 %v3529
    %3634 = vmatprep.subr.bf16.mxu0 0
    %3635 = vmatpush1.bf16.msra.mxu0 %v3530
    %3636 = vmatprep.mubr.bf16.mxu0 %v3305
    %3637 = vmatmul.mubr.bf16.gmra.mrb[0].mxu0 %v3304
    %v3638 = vpop.f32.mrb[0].mxu0
    %v3639 = vadd.f32 %v3598, %v3638
    %v3640 = vpop.f32.mrb[0].mxu0
    %v3641 = vpop.f32.mrb[0].mxu0
    %v3642 = vadd.f32 %v3601, %v3641
    %v3643 = vpop.f32.mrb[0].mxu0
    %3644 = vdwg.mxu0
    %v3645 = vadd.f32 %v2925, %v3639
    %v3646 = vadd.f32 %v2926, %v3642
    %s3647 = scalar_lea.vmem [#allocation16], 1
    %v3648 = vld [vmem:[%s3647] sm:$0x1]
    %v3650 = vlaneseq
    %v3651 = vshrl.u32 %v3650, 7
    %v3652 = vsub.s32 0, %v3651
    %v3653 = vrot.slane %v3648, %v3652
    %v3655 = vadd.f32 %v3645, %v3653
    %v3656 = vadd.f32 %v3646, %v3653
    %s3657 = scalar_lea.vmem [#allocation17], 1
    %v3658 = vld [vmem:[%s3657] sm:$0x1]
    %s3659 = scalar_lea.vmem [#allocation19], 1
    %v3660 = vld [vmem:[%s3659] sm:$0x1]
    %3661 = vadd.xlane.f32.xlu0 %v3655
    %v3662 = vpop.xlane.xlu0 %3661
    %3663 = vadd.xlane.f32.xlu0 %v3656
    %v3664 = vpop.xlane.xlu0 %3663
    %v3665 = vmul.f32 %v3662, %v231
    %v3666 = vmul.f32 %v3664, %v231
    %v3667 = vsub.f32 %v3655, %v3665
    %v3668 = vsub.f32 %v3656, %v3666
    %v3669 = vmul.f32 %v3667, %v3667
    %v3670 = vmul.f32 %v3668, %v3668
    %3671 = vadd.xlane.f32.xlu0 %v3669
    %v3672 = vpop.xlane.xlu0 %3671
    %3673 = vadd.xlane.f32.xlu0 %v3670
    %v3674 = vpop.xlane.xlu0 %3673
    %v3675 = vmul.f32 %v3672, %v231
    %v3676 = vmul.f32 %v3674, %v231
    %v3677 = vadd.f32 %v3675, 1e-12
    %v3678 = vadd.f32 %v3676, 1e-12
    %v3679 = vrsqrt.pop %v3677
    %v3680 = vrsqrt.pop %v3678
    %v3681 = vmul.f32 %v3667, %v3679
    %v3682 = vmul.f32 %v3668, %v3680
    %v3684 = vlaneseq
    %v3685 = vshrl.u32 %v3684, 7
    %v3686 = vsub.s32 0, %v3685
    %v3687 = vrot.slane %v3658, %v3686
    %v3689 = vmul.f32 %v3681, %v3687
    %v3690 = vmul.f32 %v3682, %v3687
    %v3692 = vlaneseq
    %v3693 = vshrl.u32 %v3692, 7
    %v3694 = vsub.s32 0, %v3693
    %v3695 = vrot.slane %v3660, %v3694
    %v3697 = vadd.f32 %v3689, %v3695
    %v3698 = vadd.f32 %v3690, %v3695
    %3699 = vst [vmem:[#allocation22] sm:$0xff] %v3697
    %3700 = vst [vmem:[#allocation22 + $0x8] sm:$0xff] %v3698
    %v3701 = vpack.c.bf16 %v3697, %v3697
    %v3702 = vpack.c.bf16 %v3698, %v3698
    %v3703 = vld [vmem:[%s16] sm:$0xf]
    %v3704 = vld [vmem:[%s16 + $0x4] sm:$0xf]
    %v3705 = vld [vmem:[%s16 + $0x8] sm:$0xf]
    %v3706 = vld [vmem:[%s16 + $0xc] sm:$0xf]
    %v3707 = vld [vmem:[%s16 + $0x10] sm:$0xf]
    %v3708 = vld [vmem:[%s16 + $0x14] sm:$0xf]
    %v3709 = vld [vmem:[%s16 + $0x18] sm:$0xf]
    %v3710 = vld [vmem:[%s16 + $0x1c] sm:$0xf]
    %v3711 = vld [vmem:[%s16 + $0x20] sm:$0xf]
    %v3712 = vld [vmem:[%s16 + $0x24] sm:$0xf]
    %v3713 = vld [vmem:[%s16 + $0x28] sm:$0xf]
    %v3714 = vld [vmem:[%s16 + $0x2c] sm:$0xf]
    %v3715 = vld [vmem:[%s16 + $0x30] sm:$0xf]
    %v3716 = vld [vmem:[%s16 + $0x34] sm:$0xf]
    %v3717 = vld [vmem:[%s16 + $0x38] sm:$0xf]
    %v3718 = vld [vmem:[%s16 + $0x3c] sm:$0xf]
    %v3719 = vld [vmem:[#allocation20] sm:$0x1]
    %v3721 = vlaneseq
    %v3722 = vshrl.u32 %v3721, 7
    %v3723 = vsub.s32 0, %v3722
    %v3724 = vrot.slane %v3719, %v3723
    %v3728 = vunpack.c.l.b16 %v3701
    %v3729 = vunpack.c.l.b16 %v3702
    %v3730 = vrot.slane %v3729, 7
    %vm3731 = vcmask 1041409
    %v3732 = vsel %vm3731, %v3730, %v3728
    %v3733 = vpack.c.b16 %v3732, %v3732
    %v3751 = vunpack.c.l.b16 %v3703
    %v3752 = vunpack.c.l.b16 %v3704
    %v3753 = vunpack.c.l.b16 %v3705
    %v3754 = vunpack.c.l.b16 %v3706
    %v3755 = vunpack.c.l.b16 %v3707
    %v3756 = vunpack.c.l.b16 %v3708
    %v3757 = vunpack.c.l.b16 %v3709
    %v3758 = vunpack.c.l.b16 %v3710
    %v3759 = vunpack.c.l.b16 %v3711
    %v3760 = vunpack.c.l.b16 %v3712
    %v3761 = vunpack.c.l.b16 %v3713
    %v3762 = vunpack.c.l.b16 %v3714
    %v3763 = vunpack.c.l.b16 %v3715
    %v3764 = vunpack.c.l.b16 %v3716
    %v3765 = vunpack.c.l.b16 %v3717
    %v3766 = vunpack.c.l.b16 %v3718
    %v3767 = vpack.c.b16 %v3752, %v3751
    %v3768 = vpack.c.b16 %v3754, %v3753
    %v3769 = vpack.c.b16 %v3756, %v3755
    %v3770 = vpack.c.b16 %v3758, %v3757
    %v3771 = vpack.c.b16 %v3760, %v3759
    %v3772 = vpack.c.b16 %v3762, %v3761
    %v3773 = vpack.c.b16 %v3764, %v3763
    %v3774 = vpack.c.b16 %v3766, %v3765
    %3783 = vmatprep.subr.bf16.mxu0 0
    %3784 = vmatpush1.bf16.msra.mxu0 %v3767
    %3785 = vmatprep.subr.bf16.mxu0 0
    %3786 = vmatpush1.bf16.msra.mxu0 %v3768
    %3787 = vmatprep.subr.bf16.mxu0 0
    %3788 = vmatpush1.bf16.msra.mxu0 %v3769
    %3789 = vmatprep.subr.bf16.mxu0 0
    %3790 = vmatpush1.bf16.msra.mxu0 %v3770
    %3791 = vmatprep.subr.bf16.mxu0 0
    %3792 = vmatpush1.bf16.msra.mxu0 %v3771
    %3793 = vmatprep.subr.bf16.mxu0 0
    %3794 = vmatpush1.bf16.msra.mxu0 %v3772
    %3795 = vmatprep.subr.bf16.mxu0 0
    %3796 = vmatpush1.bf16.msra.mxu0 %v3773
    %3797 = vmatprep.subr.bf16.mxu0 0
    %3798 = vmatpush1.bf16.msra.mxu0 %v3774
    %3799 = vmatprep.subr.bf16.mxu0 0
    %3800 = vmatpush1.bf16.msra.mxu0 0
    %3801 = vmatprep.subr.bf16.mxu0 0
    %3802 = vmatpush1.bf16.msra.mxu0 0
    %3803 = vmatprep.subr.bf16.mxu0 0
    %3804 = vmatpush1.bf16.msra.mxu0 0
    %3805 = vmatprep.subr.bf16.mxu0 0
    %3806 = vmatpush1.bf16.msra.mxu0 0
    %3807 = vmatprep.subr.bf16.mxu0 0
    %3808 = vmatpush1.bf16.msra.mxu0 0
    %3809 = vmatprep.subr.bf16.mxu0 0
    %3810 = vmatpush1.bf16.msra.mxu0 0
    %3811 = vmatprep.subr.bf16.mxu0 0
    %3812 = vmatpush1.bf16.msra.mxu0 0
    %3813 = vmatprep.subr.bf16.mxu0 0
    %3814 = vmatpush1.bf16.msra.mxu0 0
    %3815 = vmatprep.mubr.bf16.mxu0 0
    %3816 = vmatmul.mubr.bf16.gmra.mrb[0].mxu0 %v3733
    %v3817 = vpop.f32.mrb[0].mxu0
    %v3818 = vadd.f32 %v3724, %v3817
    %v3819 = vpop.f32.mrb[0].mxu0
    %v3820 = vpop.f32.mrb[0].mxu0
    %v3821 = vpop.f32.mrb[0].mxu0
    %3822 = vdwg.mxu0
    %v3823 = vtanh.pop %v3818
    %3824 = vst [vmem:[#allocation23] sm:$0x3] %v3823
    // Predicated region
    $region122: #{_bert_backbone.1} parent=1 // pred_check
      _
    $region123: #{_bert_backbone.1} parent=1 // pred_check_branch
      %3826 = sbr.rel (0) target = $region125
    $region124: #{_bert_backbone.1} parent=1 // pred_region
      %s3828 = ssub.s32 256, 256
      %3829 = vsyncadd [#allocation4], %s3828
      %s3830 = sshll.u32 [#allocation22], 4
      %s3831 = int_to_ptr.vmem [resolvable:$true] %s3830
      %3836 = dma.vmem_to_hbm [thread:$0]  %s3831, 256, %s18, [#allocation4], 128, 128, 8
    $region125: #{_bert_backbone.1} parent=1 // pred_fallthru
      _
    // Predicated region
    $region126: #{_bert_backbone.1} parent=1 // pred_check
      _
    $region127: #{_bert_backbone.1} parent=1 // pred_check_branch
      %3838 = sbr.rel (0) target = $region129
    $region128: #{_bert_backbone.1} parent=1 // pred_region
      %s3840 = ssub.s32 32, 32
      %3841 = vsyncadd [#allocation24], %s3840
      %s3843 = sshll.u32 [#allocation23], 4
      %s3844 = int_to_ptr.vmem [resolvable:$true] %s3843
      %3846 = dma.vmem_to_hbm [thread:$0]  %s3844, 32, %s19, [#allocation24]
    $region129: #{_bert_backbone.1} parent=1 // pred_fallthru
      _
    // Predicated region
    $region130: #{_bert_backbone.1} parent=1 // pred_check
      _
    $region131: #{_bert_backbone.1} parent=1 // pred_check_branch
      %3848 = sbr.rel (0) target = $region133
    $region132: #{_bert_backbone.1} parent=1 // pred_region
      %3849 = dma.done [#allocation4], 256
    $region133: #{_bert_backbone.1} parent=1 // pred_fallthru
      _
    // Predicated region
    $region134: #{_bert_backbone.1} parent=1 // pred_check
      _
    $region135: #{_bert_backbone.1} parent=1 // pred_check_branch
      %3851 = sbr.rel (0) target = $region137
    $region136: #{_bert_backbone.1} parent=1 // pred_region
      %3852 = dma.done [#allocation24], 32
    $region137: #{_bert_backbone.1} parent=1 // pred_fallthru
      _
    %3853 = vsyncpa [#allocation3], 1
    %3854 = vsyncpa [#allocation6], 1
    %3855 = vsyncpa [#allocation9], 1
    %3856 = vsyncpa [#allocation12], 1
    %3857 = vsyncpa [#allocation15], 1
    %3858 = vsyncpa [#allocation18], 1
    %3859 = vsyncpa [#allocation21], 1
    %3860 = vsyncpa [#allocation4], 1
    %3861 = vsyncpa [#allocation24], 1

</llo_original>
